<compile_context>
chip_gen: v6e
topology: v6e:2x2x1
jax: 0.10.0
libtpu: 0.0.40
codegen_flags: <defaults>
</compile_context>

<pallas_src>
import math

import jax
import jax.numpy as jnp
from jax.experimental import pallas as pl
from jax.experimental.pallas import tpu as pltpu  # noqa: F401

# ----------------------------- small ViT config -----------------------------
IMG = 16          # img_size
PATCH = 8         # patch_size
IN_CHANS = 3
EMBED = 32        # embed_dim
DEPTH = 2         # depth
HEADS = 4         # num_heads
MLP_RATIO = 4
CLASS_DIM = 10
CLASS_PAD = 128   # lane-dense padded class dim
EPS = 1e-5

B = 2
P = (IMG // PATCH) * (IMG // PATCH)   # num patches = 4
N = P + 1                             # sequence length (with cls token) = 5
HD = EMBED // HEADS                   # head dim = 8
HIDDEN = EMBED * MLP_RATIO            # mlp hidden = 128
K_PATCH = IN_CHANS * PATCH * PATCH    # flattened patch dim = 192

# q @ k^T without materializing a transpose (MXU handles trans_b natively)
_TRANS_B_DIMS = (((1,), (1,)), ((), ()))


# ------------------------------ kernel helpers ------------------------------
def _layernorm(v, g, b):
    # biased variance + eps inside the sqrt -> matches torch.nn.LayerNorm
    mu = jnp.mean(v, axis=-1, keepdims=True)
    var = jnp.mean((v - mu) ** 2, axis=-1, keepdims=True)
    return (v - mu) * jax.lax.rsqrt(var + EPS) * g + b


def _softmax(a):
    m = jnp.max(a, axis=-1, keepdims=True)
    e = jnp.exp(a - m)
    # approx reciprocal lowers to the (otherwise idle) EUP slot
    return e * pl.reciprocal(jnp.sum(e, axis=-1, keepdims=True), approx=True)


def _gelu_exact(x):
    # nn.GELU default (erf-based)
    return 0.5 * x * (1.0 + jax.lax.erf(x * (1.0 / math.sqrt(2.0))))


# ------------------------------ fused ViT kernel -----------------------------
def vit_kernel(patches_ref, pw_ref, poscls_ref, mask_ref,
               ln1g_ref, ln1b_ref, wq_ref, wk_ref, wvp_ref, bproj_ref,
               ln2g_ref, ln2b_ref, w1_ref, b1_ref, w2_ref, b2_ref,
               ng_ref, nb_ref, wh_ref, bh_ref,
               o_ref):
    # ---- patch embed + cls/pos in one shot: zero cls rows in patches_ref ----
    # x : (B*N, EMBED), flat tokens for the whole kernel
    x = (jnp.dot(patches_ref[...], pw_ref[...],
                 preferred_element_type=jnp.float32)
         + poscls_ref[...])

    mask = mask_ref[...]                                        # (B*N, B*N)

    # ---- transformer blocks (statically unrolled over depth & heads) ----
    for d in range(DEPTH):
        # --- attention branch (flat 2-D, block-diagonal masked) ---
        h1 = _layernorm(x, ln1g_ref[d], ln1b_ref[d])            # (B*N, D)
        attn_out = None
        for hh in range(HEADS):
            idx = d * HEADS + hh
            # static weight-ref slices: pure addressing, no XLU relayouts
            q = jnp.dot(h1, wq_ref[idx],
                        preferred_element_type=jnp.float32)     # (B*N, HD), scale folded
            k = jnp.dot(h1, wk_ref[idx],
                        preferred_element_type=jnp.float32)     # (B*N, HD)
            vp = jnp.dot(h1, wvp_ref[idx],
                         preferred_element_type=jnp.float32)    # (B*N, D) = h1 @ (Wv_h @ Wproj_h)
            s = jax.lax.dot_general(q, k, _TRANS_B_DIMS,
                                    preferred_element_type=jnp.float32) + mask
            p = _softmax(s)                                     # (B*N, B*N)
            c = jnp.dot(p, vp, preferred_element_type=jnp.float32)
            attn_out = c if attn_out is None else attn_out + c
        x = x + attn_out + bproj_ref[d]

        # --- MLP branch ---
        h2 = _layernorm(x, ln2g_ref[d], ln2b_ref[d])
        h2 = jnp.dot(h2, w1_ref[d],
                     preferred_element_type=jnp.float32) + b1_ref[d]
        h2 = _gelu_exact(h2)
        h2 = jnp.dot(h2, w2_ref[d],
                     preferred_element_type=jnp.float32) + b2_ref[d]
        x = x + h2

    # ---- final LayerNorm + classification head on ALL rows (lane-dense) ----
    # (computing the extra non-cls rows is cheaper than an in-kernel sublane
    #  gather; the wrapper picks rows 0, N, 2N, ... and the first 10 lanes)
    hc = _layernorm(x, ng_ref[...], nb_ref[...])
    o_ref[...] = (jnp.dot(hc, wh_ref[...],
                          preferred_element_type=jnp.float32)
                  + bh_ref[...]).astype(o_ref.dtype)


# ------------------------------ wrapper --------------------------------------
@jax.jit
def vit_forward(x, params):
    # NCHW -> (B, Hp, Wp, C, ph, pw) -> (B, P, C*ph*pw)  (tiny XLA data-move)
    hp = IMG // PATCH
    patches = x.reshape(B, IN_CHANS, hp, PATCH, hp, PATCH)
    patches = patches.transpose(0, 2, 4, 1, 3, 5).reshape(B, P, K_PATCH)
    # prepend one zero row per image -> patch-embed matmul yields a zero row
    # exactly where the cls token goes
    patches = jnp.concatenate(
        [jnp.zeros((B, 1, K_PATCH), jnp.float32), patches], axis=1
    ).reshape(B * N, K_PATCH)

    # (B*N, EMBED) additive table: cls_token + pos[0] on cls rows,
    # pos[1:] + conv bias on patch rows  (parameter-only)
    cls_row = params["cls_token"] + params["pos_embed"][0:1, :]
    patch_rows = params["pos_embed"][1:, :] + params["patch_b"]
    poscls = jnp.tile(jnp.concatenate([cls_row, patch_rows], axis=0), (B, 1))

    # block-diagonal additive mask so flat (B*N, B*N) attention never mixes images
    rb = jnp.arange(B * N, dtype=jnp.int32) // N
    mask = jnp.where(rb[:, None] == rb[None, :], 0.0, -1e30).astype(jnp.float32)

    # head-major Q/K weights, 1/sqrt(HD) folded into Q
    scale = HD ** (-0.5)
    w_qkv = params["w_qkv"]                                     # (DEPTH, D, 3D)

    def split_heads(w):  # (DEPTH, D, D) -> (DEPTH*HEADS, D, HD)
        return (w.reshape(DEPTH, EMBED, HEADS, HD)
                 .transpose(0, 2, 1, 3)
                 .reshape(DEPTH * HEADS, EMBED, HD))

    wq = split_heads(w_qkv[:, :, 0:EMBED] * scale)
    wk = split_heads(w_qkv[:, :, EMBED:2 * EMBED])
    # fold per-head V weight into the output projection:
    #   concat_h(P_h @ (h1 @ Wv_h)) @ Wproj == sum_h P_h @ (h1 @ (Wv_h @ Wproj_h))
    wv_heads = (w_qkv[:, :, 2 * EMBED:3 * EMBED]
                .reshape(DEPTH, EMBED, HEADS, HD).transpose(0, 2, 1, 3))
    wp_heads = params["w_proj"].reshape(DEPTH, HEADS, HD, EMBED)
    wvp = jnp.einsum("dhek,dhkf->dhef", wv_heads, wp_heads
                     ).reshape(DEPTH * HEADS, EMBED, EMBED)

    # lane-dense classification head (pad 10 -> 128 lanes, slice back below)
    wh = jnp.zeros((EMBED, CLASS_PAD), jnp.float32).at[:, :CLASS_DIM].set(
        params["head_w"])
    bh = jnp.zeros((1, CLASS_PAD), jnp.float32).at[:, :CLASS_DIM].set(
        params["head_b"])

    out = pl.pallas_call(
        vit_kernel,
        out_shape=jax.ShapeDtypeStruct((B * N, CLASS_PAD), jnp.float32),
    )(patches, params["patch_w"], poscls, mask,
      params["ln1_g"], params["ln1_b"], wq, wk, wvp, params["b_proj"],
      params["ln2_g"], params["ln2_b"],
      params["w_fc1"], params["b_fc1"], params["w_fc2"], params["b_fc2"],
      params["norm_g"], params["norm_b"], wh, bh)

    # cls-token rows, un-padded class dim
    return out[0::N, :CLASS_DIM]


# ------------------------------ param init -----------------------------------
def init_params(key):
    keys = jax.random.split(key, 16)
    ki = iter(keys)

    def tn(k, shape):
        return (0.02 * jax.random.normal(k, shape)).astype(jnp.float32)

    # per-block weights stacked along a leading DEPTH axis (torch-equivalent
    # layout: x @ W, qkv columns ordered [q | k | v] each head-major)
    w_qkv = jnp.stack([tn(next(ki), (EMBED, 3 * EMBED)) for _ in range(DEPTH)])
    w_proj = jnp.stack([tn(next(ki), (EMBED, EMBED)) for _ in range(DEPTH)])
    w_fc1 = jnp.stack([tn(next(ki), (EMBED, HIDDEN)) for _ in range(DEPTH)])
    w_fc2 = jnp.stack([tn(next(ki), (HIDDEN, EMBED)) for _ in range(DEPTH)])

    params = {
        # conv weight flattened: (C*ph*pw, EMBED)
        "patch_w": tn(next(ki), (K_PATCH, EMBED)),
        "patch_b": jnp.zeros((1, EMBED), jnp.float32),
        "cls_token": tn(next(ki), (1, EMBED)),
        "pos_embed": tn(next(ki), (N, EMBED)),
        "ln1_g": jnp.ones((DEPTH, 1, EMBED), jnp.float32),
        "ln1_b": jnp.zeros((DEPTH, 1, EMBED), jnp.float32),
        "w_qkv": w_qkv,                                     # qkv_bias = False
        "w_proj": w_proj,
        "b_proj": jnp.zeros((DEPTH, 1, EMBED), jnp.float32),
        "ln2_g": jnp.ones((DEPTH, 1, EMBED), jnp.float32),
        "ln2_b": jnp.zeros((DEPTH, 1, EMBED), jnp.float32),
        "w_fc1": w_fc1,
        "b_fc1": jnp.zeros((DEPTH, 1, HIDDEN), jnp.float32),
        "w_fc2": w_fc2,
        "b_fc2": jnp.zeros((DEPTH, 1, EMBED), jnp.float32),
        "norm_g": jnp.ones((1, EMBED), jnp.float32),
        "norm_b": jnp.zeros((1, EMBED), jnp.float32),
        "head_w": tn(next(ki), (EMBED, CLASS_DIM)),
        "head_b": jnp.zeros((1, CLASS_DIM), jnp.float32),
    }
    return params


if __name__ == "__main__":
    key = jax.random.PRNGKey(0)
    k_x, k_p = jax.random.split(key)
    x = jax.random.normal(k_x, (B, IN_CHANS, IMG, IMG), dtype=jnp.float32)
    params = init_params(k_p)

    logits = vit_forward(x, params)
    jax.block_until_ready(logits)
    assert logits.shape == (B, CLASS_DIM)
    print("KERNEL_OK")
</pallas_src>

<mosaic_0001>
module attributes {stable_mosaic.version = 11 : i64} {
  func.func @vit_kernel(%arg0: memref<10x192xf32, #tpu.memory_space<vmem>>, %arg1: memref<192x32xf32, #tpu.memory_space<vmem>>, %arg2: memref<10x32xf32, #tpu.memory_space<vmem>>, %arg3: memref<10x10xf32, #tpu.memory_space<vmem>>, %arg4: memref<2x1x32xf32, #tpu.memory_space<vmem>>, %arg5: memref<2x1x32xf32, #tpu.memory_space<vmem>>, %arg6: memref<8x32x8xf32, #tpu.memory_space<vmem>>, %arg7: memref<8x32x8xf32, #tpu.memory_space<vmem>>, %arg8: memref<8x32x32xf32, #tpu.memory_space<vmem>>, %arg9: memref<2x1x32xf32, #tpu.memory_space<vmem>>, %arg10: memref<2x1x32xf32, #tpu.memory_space<vmem>>, %arg11: memref<2x1x32xf32, #tpu.memory_space<vmem>>, %arg12: memref<2x32x128xf32, #tpu.memory_space<vmem>>, %arg13: memref<2x1x128xf32, #tpu.memory_space<vmem>>, %arg14: memref<2x128x32xf32, #tpu.memory_space<vmem>>, %arg15: memref<2x1x32xf32, #tpu.memory_space<vmem>>, %arg16: memref<1x32xf32, #tpu.memory_space<vmem>>, %arg17: memref<1x32xf32, #tpu.memory_space<vmem>>, %arg18: memref<32x128xf32, #tpu.memory_space<vmem>>, %arg19: memref<1x128xf32, #tpu.memory_space<vmem>>, %arg20: memref<10x128xf32, #tpu.memory_space<vmem>>) attributes {dimension_semantics = [], scalar_prefetch = 0 : i64, scratch_operands = 0 : i64, tpu.core_type = #tpu.core_type<tc>} {
    %c0 = arith.constant 0 : index
    %c0_0 = arith.constant 0 : index
    %0 = vector.load %arg0[%c0, %c0_0] : memref<10x192xf32, #tpu.memory_space<vmem>>, vector<10x192xf32>
    %c0_1 = arith.constant 0 : index
    %c0_2 = arith.constant 0 : index
    %1 = vector.load %arg1[%c0_1, %c0_2] : memref<192x32xf32, #tpu.memory_space<vmem>>, vector<192x32xf32>
    %cst = arith.constant dense<0.000000e+00> : vector<10x32xf32>
    %2 = tpu.matmul %0, %1, %cst {dimension_numbers = #tpu.dot_dimension_numbers<[1], [0], [0], [1], [0, 0, 1, 1], [], []>} : vector<10x192xf32>, vector<192x32xf32>, vector<10x32xf32> -> vector<10x32xf32>
    %c0_3 = arith.constant 0 : index
    %c0_4 = arith.constant 0 : index
    %3 = vector.load %arg2[%c0_3, %c0_4] : memref<10x32xf32, #tpu.memory_space<vmem>>, vector<10x32xf32>
    %4 = arith.addf %2, %3 : vector<10x32xf32>
    %c0_5 = arith.constant 0 : index
    %c0_6 = arith.constant 0 : index
    %5 = vector.load %arg3[%c0_5, %c0_6] : memref<10x10xf32, #tpu.memory_space<vmem>>, vector<10x10xf32>
    %c0_7 = arith.constant 0 : index
    %c0_8 = arith.constant 0 : index
    %c0_9 = arith.constant 0 : index
    %6 = vector.load %arg4[%c0_7, %c0_8, %c0_9] : memref<2x1x32xf32, #tpu.memory_space<vmem>>, vector<1x1x32xf32>
    %7 = vector.shape_cast %6 : vector<1x1x32xf32> to vector<1x32xf32>
    %c0_10 = arith.constant 0 : index
    %c0_11 = arith.constant 0 : index
    %c0_12 = arith.constant 0 : index
    %8 = vector.load %arg5[%c0_10, %c0_11, %c0_12] : memref<2x1x32xf32, #tpu.memory_space<vmem>>, vector<1x1x32xf32>
    %9 = vector.shape_cast %8 : vector<1x1x32xf32> to vector<1x32xf32>
    %cst_13 = arith.constant dense<0.000000e+00> : vector<10xf32>
    %10 = vector.multi_reduction <add>, %4, %cst_13 [1] : vector<10x32xf32> to vector<10xf32>
    %11 = vector.shape_cast %10 : vector<10xf32> to vector<10x1xf32>
    %cst_14 = arith.constant 3.200000e+01 : f32
    %12 = vector.broadcast %cst_14 : f32 to vector<10x1xf32>
    %13 = arith.divf %11, %12 : vector<10x1xf32>
    %14 = vector.broadcast %13 : vector<10x1xf32> to vector<10x32xf32>
    %15 = arith.subf %4, %14 : vector<10x32xf32>
    %16 = arith.mulf %15, %15 : vector<10x32xf32>
    %cst_15 = arith.constant dense<0.000000e+00> : vector<10xf32>
    %17 = vector.multi_reduction <add>, %16, %cst_15 [1] : vector<10x32xf32> to vector<10xf32>
    %18 = vector.shape_cast %17 : vector<10xf32> to vector<10x1xf32>
    %cst_16 = arith.constant 3.200000e+01 : f32
    %19 = vector.broadcast %cst_16 : f32 to vector<10x1xf32>
    %20 = arith.divf %18, %19 : vector<10x1xf32>
    %21 = vector.broadcast %13 : vector<10x1xf32> to vector<10x32xf32>
    %22 = arith.subf %4, %21 : vector<10x32xf32>
    %cst_17 = arith.constant 9.99999974E-6 : f32
    %23 = vector.broadcast %cst_17 : f32 to vector<10x1xf32>
    %24 = arith.addf %20, %23 : vector<10x1xf32>
    %25 = math.rsqrt %24 : vector<10x1xf32>
    %26 = vector.broadcast %25 : vector<10x1xf32> to vector<10x32xf32>
    %27 = arith.mulf %22, %26 : vector<10x32xf32>
    %28 = vector.broadcast %7 : vector<1x32xf32> to vector<10x32xf32>
    %29 = arith.mulf %27, %28 : vector<10x32xf32>
    %30 = vector.broadcast %9 : vector<1x32xf32> to vector<10x32xf32>
    %31 = arith.addf %29, %30 : vector<10x32xf32>
    %c0_18 = arith.constant 0 : index
    %c0_19 = arith.constant 0 : index
    %c0_20 = arith.constant 0 : index
    %32 = vector.load %arg6[%c0_18, %c0_19, %c0_20] : memref<8x32x8xf32, #tpu.memory_space<vmem>>, vector<1x32x8xf32>
    %33 = vector.shape_cast %32 : vector<1x32x8xf32> to vector<32x8xf32>
    %cst_21 = arith.constant dense<0.000000e+00> : vector<10x8xf32>
    %34 = tpu.matmul %31, %33, %cst_21 {dimension_numbers = #tpu.dot_dimension_numbers<[1], [0], [0], [1], [0, 0, 1, 1], [], []>} : vector<10x32xf32>, vector<32x8xf32>, vector<10x8xf32> -> vector<10x8xf32>
    %c0_22 = arith.constant 0 : index
    %c0_23 = arith.constant 0 : index
    %c0_24 = arith.constant 0 : index
    %35 = vector.load %arg7[%c0_22, %c0_23, %c0_24] : memref<8x32x8xf32, #tpu.memory_space<vmem>>, vector<1x32x8xf32>
    %36 = vector.shape_cast %35 : vector<1x32x8xf32> to vector<32x8xf32>
    %cst_25 = arith.constant dense<0.000000e+00> : vector<10x8xf32>
    %37 = tpu.matmul %31, %36, %cst_25 {dimension_numbers = #tpu.dot_dimension_numbers<[1], [0], [0], [1], [0, 0, 1, 1], [], []>} : vector<10x32xf32>, vector<32x8xf32>, vector<10x8xf32> -> vector<10x8xf32>
    %c0_26 = arith.constant 0 : index
    %c0_27 = arith.constant 0 : index
    %c0_28 = arith.constant 0 : index
    %38 = vector.load %arg8[%c0_26, %c0_27, %c0_28] : memref<8x32x32xf32, #tpu.memory_space<vmem>>, vector<1x32x32xf32>
    %39 = vector.shape_cast %38 : vector<1x32x32xf32> to vector<32x32xf32>
    %cst_29 = arith.constant dense<0.000000e+00> : vector<10x32xf32>
    %40 = tpu.matmul %31, %39, %cst_29 {dimension_numbers = #tpu.dot_dimension_numbers<[1], [0], [0], [1], [0, 0, 1, 1], [], []>} : vector<10x32xf32>, vector<32x32xf32>, vector<10x32xf32> -> vector<10x32xf32>
    %cst_30 = arith.constant dense<0.000000e+00> : vector<10x10xf32>
    %41 = tpu.matmul %34, %37, %cst_30 {dimension_numbers = #tpu.dot_dimension_numbers<[1], [1], [0], [0], [0, 0, 1, 0], [], []>} : vector<10x8xf32>, vector<10x8xf32>, vector<10x10xf32> -> vector<10x10xf32>
    %42 = arith.addf %41, %5 : vector<10x10xf32>
    %cst_31 = arith.constant dense<0xFF800000> : vector<10xf32>
    %43 = vector.multi_reduction <maximumf>, %42, %cst_31 [1] : vector<10x10xf32> to vector<10xf32>
    %44 = vector.shape_cast %43 : vector<10xf32> to vector<10x1xf32>
    %45 = vector.broadcast %44 : vector<10x1xf32> to vector<10x10xf32>
    %46 = arith.subf %42, %45 : vector<10x10xf32>
    %47 = math.exp %46 : vector<10x10xf32>
    %cst_32 = arith.constant dense<0.000000e+00> : vector<10xf32>
    %48 = vector.multi_reduction <add>, %47, %cst_32 [1] : vector<10x10xf32> to vector<10xf32>
    %49 = vector.shape_cast %48 : vector<10xf32> to vector<10x1xf32>
    %50 = tpu.reciprocal %49 {approx = true} : vector<10x1xf32> -> vector<10x1xf32>
    %51 = vector.broadcast %50 : vector<10x1xf32> to vector<10x10xf32>
    %52 = arith.mulf %47, %51 : vector<10x10xf32>
    %cst_33 = arith.constant dense<0.000000e+00> : vector<10x32xf32>
    %53 = tpu.matmul %52, %40, %cst_33 {dimension_numbers = #tpu.dot_dimension_numbers<[1], [0], [0], [1], [0, 0, 1, 1], [], []>} : vector<10x10xf32>, vector<10x32xf32>, vector<10x32xf32> -> vector<10x32xf32>
    %c1 = arith.constant 1 : index
    %c0_34 = arith.constant 0 : index
    %c0_35 = arith.constant 0 : index
    %54 = vector.load %arg6[%c1, %c0_34, %c0_35] : memref<8x32x8xf32, #tpu.memory_space<vmem>>, vector<1x32x8xf32>
    %55 = vector.shape_cast %54 : vector<1x32x8xf32> to vector<32x8xf32>
    %cst_36 = arith.constant dense<0.000000e+00> : vector<10x8xf32>
    %56 = tpu.matmul %31, %55, %cst_36 {dimension_numbers = #tpu.dot_dimension_numbers<[1], [0], [0], [1], [0, 0, 1, 1], [], []>} : vector<10x32xf32>, vector<32x8xf32>, vector<10x8xf32> -> vector<10x8xf32>
    %c1_37 = arith.constant 1 : index
    %c0_38 = arith.constant 0 : index
    %c0_39 = arith.constant 0 : index
    %57 = vector.load %arg7[%c1_37, %c0_38, %c0_39] : memref<8x32x8xf32, #tpu.memory_space<vmem>>, vector<1x32x8xf32>
    %58 = vector.shape_cast %57 : vector<1x32x8xf32> to vector<32x8xf32>
    %cst_40 = arith.constant dense<0.000000e+00> : vector<10x8xf32>
    %59 = tpu.matmul %31, %58, %cst_40 {dimension_numbers = #tpu.dot_dimension_numbers<[1], [0], [0], [1], [0, 0, 1, 1], [], []>} : vector<10x32xf32>, vector<32x8xf32>, vector<10x8xf32> -> vector<10x8xf32>
    %c1_41 = arith.constant 1 : index
    %c0_42 = arith.constant 0 : index
    %c0_43 = arith.constant 0 : index
    %60 = vector.load %arg8[%c1_41, %c0_42, %c0_43] : memref<8x32x32xf32, #tpu.memory_space<vmem>>, vector<1x32x32xf32>
    %61 = vector.shape_cast %60 : vector<1x32x32xf32> to vector<32x32xf32>
    %cst_44 = arith.constant dense<0.000000e+00> : vector<10x32xf32>
    %62 = tpu.matmul %31, %61, %cst_44 {dimension_numbers = #tpu.dot_dimension_numbers<[1], [0], [0], [1], [0, 0, 1, 1], [], []>} : vector<10x32xf32>, vector<32x32xf32>, vector<10x32xf32> -> vector<10x32xf32>
    %cst_45 = arith.constant dense<0.000000e+00> : vector<10x10xf32>
    %63 = tpu.matmul %56, %59, %cst_45 {dimension_numbers = #tpu.dot_dimension_numbers<[1], [1], [0], [0], [0, 0, 1, 0], [], []>} : vector<10x8xf32>, vector<10x8xf32>, vector<10x10xf32> -> vector<10x10xf32>
    %64 = arith.addf %63, %5 : vector<10x10xf32>
    %cst_46 = arith.constant dense<0xFF800000> : vector<10xf32>
    %65 = vector.multi_reduction <maximumf>, %64, %cst_46 [1] : vector<10x10xf32> to vector<10xf32>
    %66 = vector.shape_cast %65 : vector<10xf32> to vector<10x1xf32>
    %67 = vector.broadcast %66 : vector<10x1xf32> to vector<10x10xf32>
    %68 = arith.subf %64, %67 : vector<10x10xf32>
    %69 = math.exp %68 : vector<10x10xf32>
    %cst_47 = arith.constant dense<0.000000e+00> : vector<10xf32>
    %70 = vector.multi_reduction <add>, %69, %cst_47 [1] : vector<10x10xf32> to vector<10xf32>
    %71 = vector.shape_cast %70 : vector<10xf32> to vector<10x1xf32>
    %72 = tpu.reciprocal %71 {approx = true} : vector<10x1xf32> -> vector<10x1xf32>
    %73 = vector.broadcast %72 : vector<10x1xf32> to vector<10x10xf32>
    %74 = arith.mulf %69, %73 : vector<10x10xf32>
    %cst_48 = arith.constant dense<0.000000e+00> : vector<10x32xf32>
    %75 = tpu.matmul %74, %62, %cst_48 {dimension_numbers = #tpu.dot_dimension_numbers<[1], [0], [0], [1], [0, 0, 1, 1], [], []>} : vector<10x10xf32>, vector<10x32xf32>, vector<10x32xf32> -> vector<10x32xf32>
    %76 = arith.addf %53, %75 : vector<10x32xf32>
    %c2 = arith.constant 2 : index
    %c0_49 = arith.constant 0 : index
    %c0_50 = arith.constant 0 : index
    %77 = vector.load %arg6[%c2, %c0_49, %c0_50] : memref<8x32x8xf32, #tpu.memory_space<vmem>>, vector<1x32x8xf32>
    %78 = vector.shape_cast %77 : vector<1x32x8xf32> to vector<32x8xf32>
    %cst_51 = arith.constant dense<0.000000e+00> : vector<10x8xf32>
    %79 = tpu.matmul %31, %78, %cst_51 {dimension_numbers = #tpu.dot_dimension_numbers<[1], [0], [0], [1], [0, 0, 1, 1], [], []>} : vector<10x32xf32>, vector<32x8xf32>, vector<10x8xf32> -> vector<10x8xf32>
    %c2_52 = arith.constant 2 : index
    %c0_53 = arith.constant 0 : index
    %c0_54 = arith.constant 0 : index
    %80 = vector.load %arg7[%c2_52, %c0_53, %c0_54] : memref<8x32x8xf32, #tpu.memory_space<vmem>>, vector<1x32x8xf32>
    %81 = vector.shape_cast %80 : vector<1x32x8xf32> to vector<32x8xf32>
    %cst_55 = arith.constant dense<0.000000e+00> : vector<10x8xf32>
    %82 = tpu.matmul %31, %81, %cst_55 {dimension_numbers = #tpu.dot_dimension_numbers<[1], [0], [0], [1], [0, 0, 1, 1], [], []>} : vector<10x32xf32>, vector<32x8xf32>, vector<10x8xf32> -> vector<10x8xf32>
    %c2_56 = arith.constant 2 : index
    %c0_57 = arith.constant 0 : index
    %c0_58 = arith.constant 0 : index
    %83 = vector.load %arg8[%c2_56, %c0_57, %c0_58] : memref<8x32x32xf32, #tpu.memory_space<vmem>>, vector<1x32x32xf32>
    %84 = vector.shape_cast %83 : vector<1x32x32xf32> to vector<32x32xf32>
    %cst_59 = arith.constant dense<0.000000e+00> : vector<10x32xf32>
    %85 = tpu.matmul %31, %84, %cst_59 {dimension_numbers = #tpu.dot_dimension_numbers<[1], [0], [0], [1], [0, 0, 1, 1], [], []>} : vector<10x32xf32>, vector<32x32xf32>, vector<10x32xf32> -> vector<10x32xf32>
    %cst_60 = arith.constant dense<0.000000e+00> : vector<10x10xf32>
    %86 = tpu.matmul %79, %82, %cst_60 {dimension_numbers = #tpu.dot_dimension_numbers<[1], [1], [0], [0], [0, 0, 1, 0], [], []>} : vector<10x8xf32>, vector<10x8xf32>, vector<10x10xf32> -> vector<10x10xf32>
    %87 = arith.addf %86, %5 : vector<10x10xf32>
    %cst_61 = arith.constant dense<0xFF800000> : vector<10xf32>
    %88 = vector.multi_reduction <maximumf>, %87, %cst_61 [1] : vector<10x10xf32> to vector<10xf32>
    %89 = vector.shape_cast %88 : vector<10xf32> to vector<10x1xf32>
    %90 = vector.broadcast %89 : vector<10x1xf32> to vector<10x10xf32>
    %91 = arith.subf %87, %90 : vector<10x10xf32>
    %92 = math.exp %91 : vector<10x10xf32>
    %cst_62 = arith.constant dense<0.000000e+00> : vector<10xf32>
    %93 = vector.multi_reduction <add>, %92, %cst_62 [1] : vector<10x10xf32> to vector<10xf32>
    %94 = vector.shape_cast %93 : vector<10xf32> to vector<10x1xf32>
    %95 = tpu.reciprocal %94 {approx = true} : vector<10x1xf32> -> vector<10x1xf32>
    %96 = vector.broadcast %95 : vector<10x1xf32> to vector<10x10xf32>
    %97 = arith.mulf %92, %96 : vector<10x10xf32>
    %cst_63 = arith.constant dense<0.000000e+00> : vector<10x32xf32>
    %98 = tpu.matmul %97, %85, %cst_63 {dimension_numbers = #tpu.dot_dimension_numbers<[1], [0], [0], [1], [0, 0, 1, 1], [], []>} : vector<10x10xf32>, vector<10x32xf32>, vector<10x32xf32> -> vector<10x32xf32>
    %99 = arith.addf %76, %98 : vector<10x32xf32>
    %c3 = arith.constant 3 : index
    %c0_64 = arith.constant 0 : index
    %c0_65 = arith.constant 0 : index
    %100 = vector.load %arg6[%c3, %c0_64, %c0_65] : memref<8x32x8xf32, #tpu.memory_space<vmem>>, vector<1x32x8xf32>
    %101 = vector.shape_cast %100 : vector<1x32x8xf32> to vector<32x8xf32>
    %cst_66 = arith.constant dense<0.000000e+00> : vector<10x8xf32>
    %102 = tpu.matmul %31, %101, %cst_66 {dimension_numbers = #tpu.dot_dimension_numbers<[1], [0], [0], [1], [0, 0, 1, 1], [], []>} : vector<10x32xf32>, vector<32x8xf32>, vector<10x8xf32> -> vector<10x8xf32>
    %c3_67 = arith.constant 3 : index
    %c0_68 = arith.constant 0 : index
    %c0_69 = arith.constant 0 : index
    %103 = vector.load %arg7[%c3_67, %c0_68, %c0_69] : memref<8x32x8xf32, #tpu.memory_space<vmem>>, vector<1x32x8xf32>
    %104 = vector.shape_cast %103 : vector<1x32x8xf32> to vector<32x8xf32>
    %cst_70 = arith.constant dense<0.000000e+00> : vector<10x8xf32>
    %105 = tpu.matmul %31, %104, %cst_70 {dimension_numbers = #tpu.dot_dimension_numbers<[1], [0], [0], [1], [0, 0, 1, 1], [], []>} : vector<10x32xf32>, vector<32x8xf32>, vector<10x8xf32> -> vector<10x8xf32>
    %c3_71 = arith.constant 3 : index
    %c0_72 = arith.constant 0 : index
    %c0_73 = arith.constant 0 : index
    %106 = vector.load %arg8[%c3_71, %c0_72, %c0_73] : memref<8x32x32xf32, #tpu.memory_space<vmem>>, vector<1x32x32xf32>
    %107 = vector.shape_cast %106 : vector<1x32x32xf32> to vector<32x32xf32>
    %cst_74 = arith.constant dense<0.000000e+00> : vector<10x32xf32>
    %108 = tpu.matmul %31, %107, %cst_74 {dimension_numbers = #tpu.dot_dimension_numbers<[1], [0], [0], [1], [0, 0, 1, 1], [], []>} : vector<10x32xf32>, vector<32x32xf32>, vector<10x32xf32> -> vector<10x32xf32>
    %cst_75 = arith.constant dense<0.000000e+00> : vector<10x10xf32>
    %109 = tpu.matmul %102, %105, %cst_75 {dimension_numbers = #tpu.dot_dimension_numbers<[1], [1], [0], [0], [0, 0, 1, 0], [], []>} : vector<10x8xf32>, vector<10x8xf32>, vector<10x10xf32> -> vector<10x10xf32>
    %110 = arith.addf %109, %5 : vector<10x10xf32>
    %cst_76 = arith.constant dense<0xFF800000> : vector<10xf32>
    %111 = vector.multi_reduction <maximumf>, %110, %cst_76 [1] : vector<10x10xf32> to vector<10xf32>
    %112 = vector.shape_cast %111 : vector<10xf32> to vector<10x1xf32>
    %113 = vector.broadcast %112 : vector<10x1xf32> to vector<10x10xf32>
    %114 = arith.subf %110, %113 : vector<10x10xf32>
    %115 = math.exp %114 : vector<10x10xf32>
    %cst_77 = arith.constant dense<0.000000e+00> : vector<10xf32>
    %116 = vector.multi_reduction <add>, %115, %cst_77 [1] : vector<10x10xf32> to vector<10xf32>
    %117 = vector.shape_cast %116 : vector<10xf32> to vector<10x1xf32>
    %118 = tpu.reciprocal %117 {approx = true} : vector<10x1xf32> -> vector<10x1xf32>
    %119 = vector.broadcast %118 : vector<10x1xf32> to vector<10x10xf32>
    %120 = arith.mulf %115, %119 : vector<10x10xf32>
    %cst_78 = arith.constant dense<0.000000e+00> : vector<10x32xf32>
    %121 = tpu.matmul %120, %108, %cst_78 {dimension_numbers = #tpu.dot_dimension_numbers<[1], [0], [0], [1], [0, 0, 1, 1], [], []>} : vector<10x10xf32>, vector<10x32xf32>, vector<10x32xf32> -> vector<10x32xf32>
    %122 = arith.addf %99, %121 : vector<10x32xf32>
    %123 = arith.addf %4, %122 : vector<10x32xf32>
    %c0_79 = arith.constant 0 : index
    %c0_80 = arith.constant 0 : index
    %c0_81 = arith.constant 0 : index
    %124 = vector.load %arg9[%c0_79, %c0_80, %c0_81] : memref<2x1x32xf32, #tpu.memory_space<vmem>>, vector<1x1x32xf32>
    %125 = vector.shape_cast %124 : vector<1x1x32xf32> to vector<1x32xf32>
    %126 = vector.broadcast %125 : vector<1x32xf32> to vector<10x32xf32>
    %127 = arith.addf %123, %126 : vector<10x32xf32>
    %c0_82 = arith.constant 0 : index
    %c0_83 = arith.constant 0 : index
    %c0_84 = arith.constant 0 : index
    %128 = vector.load %arg10[%c0_82, %c0_83, %c0_84] : memref<2x1x32xf32, #tpu.memory_space<vmem>>, vector<1x1x32xf32>
    %129 = vector.shape_cast %128 : vector<1x1x32xf32> to vector<1x32xf32>
    %c0_85 = arith.constant 0 : index
    %c0_86 = arith.constant 0 : index
    %c0_87 = arith.constant 0 : index
    %130 = vector.load %arg11[%c0_85, %c0_86, %c0_87] : memref<2x1x32xf32, #tpu.memory_space<vmem>>, vector<1x1x32xf32>
    %131 = vector.shape_cast %130 : vector<1x1x32xf32> to vector<1x32xf32>
    %cst_88 = arith.constant dense<0.000000e+00> : vector<10xf32>
    %132 = vector.multi_reduction <add>, %127, %cst_88 [1] : vector<10x32xf32> to vector<10xf32>
    %133 = vector.shape_cast %132 : vector<10xf32> to vector<10x1xf32>
    %cst_89 = arith.constant 3.200000e+01 : f32
    %134 = vector.broadcast %cst_89 : f32 to vector<10x1xf32>
    %135 = arith.divf %133, %134 : vector<10x1xf32>
    %136 = vector.broadcast %135 : vector<10x1xf32> to vector<10x32xf32>
    %137 = arith.subf %127, %136 : vector<10x32xf32>
    %138 = arith.mulf %137, %137 : vector<10x32xf32>
    %cst_90 = arith.constant dense<0.000000e+00> : vector<10xf32>
    %139 = vector.multi_reduction <add>, %138, %cst_90 [1] : vector<10x32xf32> to vector<10xf32>
    %140 = vector.shape_cast %139 : vector<10xf32> to vector<10x1xf32>
    %cst_91 = arith.constant 3.200000e+01 : f32
    %141 = vector.broadcast %cst_91 : f32 to vector<10x1xf32>
    %142 = arith.divf %140, %141 : vector<10x1xf32>
    %143 = vector.broadcast %135 : vector<10x1xf32> to vector<10x32xf32>
    %144 = arith.subf %127, %143 : vector<10x32xf32>
    %cst_92 = arith.constant 9.99999974E-6 : f32
    %145 = vector.broadcast %cst_92 : f32 to vector<10x1xf32>
    %146 = arith.addf %142, %145 : vector<10x1xf32>
    %147 = math.rsqrt %146 : vector<10x1xf32>
    %148 = vector.broadcast %147 : vector<10x1xf32> to vector<10x32xf32>
    %149 = arith.mulf %144, %148 : vector<10x32xf32>
    %150 = vector.broadcast %129 : vector<1x32xf32> to vector<10x32xf32>
    %151 = arith.mulf %149, %150 : vector<10x32xf32>
    %152 = vector.broadcast %131 : vector<1x32xf32> to vector<10x32xf32>
    %153 = arith.addf %151, %152 : vector<10x32xf32>
    %c0_93 = arith.constant 0 : index
    %c0_94 = arith.constant 0 : index
    %c0_95 = arith.constant 0 : index
    %154 = vector.load %arg12[%c0_93, %c0_94, %c0_95] : memref<2x32x128xf32, #tpu.memory_space<vmem>>, vector<1x32x128xf32>
    %155 = vector.shape_cast %154 : vector<1x32x128xf32> to vector<32x128xf32>
    %cst_96 = arith.constant dense<0.000000e+00> : vector<10x128xf32>
    %156 = tpu.matmul %153, %155, %cst_96 {dimension_numbers = #tpu.dot_dimension_numbers<[1], [0], [0], [1], [0, 0, 1, 1], [], []>} : vector<10x32xf32>, vector<32x128xf32>, vector<10x128xf32> -> vector<10x128xf32>
    %c0_97 = arith.constant 0 : index
    %c0_98 = arith.constant 0 : index
    %c0_99 = arith.constant 0 : index
    %157 = vector.load %arg13[%c0_97, %c0_98, %c0_99] : memref<2x1x128xf32, #tpu.memory_space<vmem>>, vector<1x1x128xf32>
    %158 = vector.shape_cast %157 : vector<1x1x128xf32> to vector<1x128xf32>
    %159 = vector.broadcast %158 : vector<1x128xf32> to vector<10x128xf32>
    %160 = arith.addf %156, %159 : vector<10x128xf32>
    %cst_100 = arith.constant 5.000000e-01 : f32
    %161 = vector.broadcast %cst_100 : f32 to vector<10x128xf32>
    %162 = arith.mulf %161, %160 : vector<10x128xf32>
    %cst_101 = arith.constant 0.707106769 : f32
    %163 = vector.broadcast %cst_101 : f32 to vector<10x128xf32>
    %164 = arith.mulf %160, %163 : vector<10x128xf32>
    %165 = math.erf %164 : vector<10x128xf32>
    %cst_102 = arith.constant 1.000000e+00 : f32
    %166 = vector.broadcast %cst_102 : f32 to vector<10x128xf32>
    %167 = arith.addf %166, %165 : vector<10x128xf32>
    %168 = arith.mulf %162, %167 : vector<10x128xf32>
    %c0_103 = arith.constant 0 : index
    %c0_104 = arith.constant 0 : index
    %c0_105 = arith.constant 0 : index
    %169 = vector.load %arg14[%c0_103, %c0_104, %c0_105] : memref<2x128x32xf32, #tpu.memory_space<vmem>>, vector<1x128x32xf32>
    %170 = vector.shape_cast %169 : vector<1x128x32xf32> to vector<128x32xf32>
    %cst_106 = arith.constant dense<0.000000e+00> : vector<10x32xf32>
    %171 = tpu.matmul %168, %170, %cst_106 {dimension_numbers = #tpu.dot_dimension_numbers<[1], [0], [0], [1], [0, 0, 1, 1], [], []>} : vector<10x128xf32>, vector<128x32xf32>, vector<10x32xf32> -> vector<10x32xf32>
    %c0_107 = arith.constant 0 : index
    %c0_108 = arith.constant 0 : index
    %c0_109 = arith.constant 0 : index
    %172 = vector.load %arg15[%c0_107, %c0_108, %c0_109] : memref<2x1x32xf32, #tpu.memory_space<vmem>>, vector<1x1x32xf32>
    %173 = vector.shape_cast %172 : vector<1x1x32xf32> to vector<1x32xf32>
    %174 = vector.broadcast %173 : vector<1x32xf32> to vector<10x32xf32>
    %175 = arith.addf %171, %174 : vector<10x32xf32>
    %176 = arith.addf %127, %175 : vector<10x32xf32>
    %c1_110 = arith.constant 1 : index
    %c0_111 = arith.constant 0 : index
    %c0_112 = arith.constant 0 : index
    %177 = vector.load %arg4[%c1_110, %c0_111, %c0_112] : memref<2x1x32xf32, #tpu.memory_space<vmem>>, vector<1x1x32xf32>
    %178 = vector.shape_cast %177 : vector<1x1x32xf32> to vector<1x32xf32>
    %c1_113 = arith.constant 1 : index
    %c0_114 = arith.constant 0 : index
    %c0_115 = arith.constant 0 : index
    %179 = vector.load %arg5[%c1_113, %c0_114, %c0_115] : memref<2x1x32xf32, #tpu.memory_space<vmem>>, vector<1x1x32xf32>
    %180 = vector.shape_cast %179 : vector<1x1x32xf32> to vector<1x32xf32>
    %cst_116 = arith.constant dense<0.000000e+00> : vector<10xf32>
    %181 = vector.multi_reduction <add>, %176, %cst_116 [1] : vector<10x32xf32> to vector<10xf32>
    %182 = vector.shape_cast %181 : vector<10xf32> to vector<10x1xf32>
    %cst_117 = arith.constant 3.200000e+01 : f32
    %183 = vector.broadcast %cst_117 : f32 to vector<10x1xf32>
    %184 = arith.divf %182, %183 : vector<10x1xf32>
    %185 = vector.broadcast %184 : vector<10x1xf32> to vector<10x32xf32>
    %186 = arith.subf %176, %185 : vector<10x32xf32>
    %187 = arith.mulf %186, %186 : vector<10x32xf32>
    %cst_118 = arith.constant dense<0.000000e+00> : vector<10xf32>
    %188 = vector.multi_reduction <add>, %187, %cst_118 [1] : vector<10x32xf32> to vector<10xf32>
    %189 = vector.shape_cast %188 : vector<10xf32> to vector<10x1xf32>
    %cst_119 = arith.constant 3.200000e+01 : f32
    %190 = vector.broadcast %cst_119 : f32 to vector<10x1xf32>
    %191 = arith.divf %189, %190 : vector<10x1xf32>
    %192 = vector.broadcast %184 : vector<10x1xf32> to vector<10x32xf32>
    %193 = arith.subf %176, %192 : vector<10x32xf32>
    %cst_120 = arith.constant 9.99999974E-6 : f32
    %194 = vector.broadcast %cst_120 : f32 to vector<10x1xf32>
    %195 = arith.addf %191, %194 : vector<10x1xf32>
    %196 = math.rsqrt %195 : vector<10x1xf32>
    %197 = vector.broadcast %196 : vector<10x1xf32> to vector<10x32xf32>
    %198 = arith.mulf %193, %197 : vector<10x32xf32>
    %199 = vector.broadcast %178 : vector<1x32xf32> to vector<10x32xf32>
    %200 = arith.mulf %198, %199 : vector<10x32xf32>
    %201 = vector.broadcast %180 : vector<1x32xf32> to vector<10x32xf32>
    %202 = arith.addf %200, %201 : vector<10x32xf32>
    %c4 = arith.constant 4 : index
    %c0_121 = arith.constant 0 : index
    %c0_122 = arith.constant 0 : index
    %203 = vector.load %arg6[%c4, %c0_121, %c0_122] : memref<8x32x8xf32, #tpu.memory_space<vmem>>, vector<1x32x8xf32>
    %204 = vector.shape_cast %203 : vector<1x32x8xf32> to vector<32x8xf32>
    %cst_123 = arith.constant dense<0.000000e+00> : vector<10x8xf32>
    %205 = tpu.matmul %202, %204, %cst_123 {dimension_numbers = #tpu.dot_dimension_numbers<[1], [0], [0], [1], [0, 0, 1, 1], [], []>} : vector<10x32xf32>, vector<32x8xf32>, vector<10x8xf32> -> vector<10x8xf32>
    %c4_124 = arith.constant 4 : index
    %c0_125 = arith.constant 0 : index
    %c0_126 = arith.constant 0 : index
    %206 = vector.load %arg7[%c4_124, %c0_125, %c0_126] : memref<8x32x8xf32, #tpu.memory_space<vmem>>, vector<1x32x8xf32>
    %207 = vector.shape_cast %206 : vector<1x32x8xf32> to vector<32x8xf32>
    %cst_127 = arith.constant dense<0.000000e+00> : vector<10x8xf32>
    %208 = tpu.matmul %202, %207, %cst_127 {dimension_numbers = #tpu.dot_dimension_numbers<[1], [0], [0], [1], [0, 0, 1, 1], [], []>} : vector<10x32xf32>, vector<32x8xf32>, vector<10x8xf32> -> vector<10x8xf32>
    %c4_128 = arith.constant 4 : index
    %c0_129 = arith.constant 0 : index
    %c0_130 = arith.constant 0 : index
    %209 = vector.load %arg8[%c4_128, %c0_129, %c0_130] : memref<8x32x32xf32, #tpu.memory_space<vmem>>, vector<1x32x32xf32>
    %210 = vector.shape_cast %209 : vector<1x32x32xf32> to vector<32x32xf32>
    %cst_131 = arith.constant dense<0.000000e+00> : vector<10x32xf32>
    %211 = tpu.matmul %202, %210, %cst_131 {dimension_numbers = #tpu.dot_dimension_numbers<[1], [0], [0], [1], [0, 0, 1, 1], [], []>} : vector<10x32xf32>, vector<32x32xf32>, vector<10x32xf32> -> vector<10x32xf32>
    %cst_132 = arith.constant dense<0.000000e+00> : vector<10x10xf32>
    %212 = tpu.matmul %205, %208, %cst_132 {dimension_numbers = #tpu.dot_dimension_numbers<[1], [1], [0], [0], [0, 0, 1, 0], [], []>} : vector<10x8xf32>, vector<10x8xf32>, vector<10x10xf32> -> vector<10x10xf32>
    %213 = arith.addf %212, %5 : vector<10x10xf32>
    %cst_133 = arith.constant dense<0xFF800000> : vector<10xf32>
    %214 = vector.multi_reduction <maximumf>, %213, %cst_133 [1] : vector<10x10xf32> to vector<10xf32>
    %215 = vector.shape_cast %214 : vector<10xf32> to vector<10x1xf32>
    %216 = vector.broadcast %215 : vector<10x1xf32> to vector<10x10xf32>
    %217 = arith.subf %213, %216 : vector<10x10xf32>
    %218 = math.exp %217 : vector<10x10xf32>
    %cst_134 = arith.constant dense<0.000000e+00> : vector<10xf32>
    %219 = vector.multi_reduction <add>, %218, %cst_134 [1] : vector<10x10xf32> to vector<10xf32>
    %220 = vector.shape_cast %219 : vector<10xf32> to vector<10x1xf32>
    %221 = tpu.reciprocal %220 {approx = true} : vector<10x1xf32> -> vector<10x1xf32>
    %222 = vector.broadcast %221 : vector<10x1xf32> to vector<10x10xf32>
    %223 = arith.mulf %218, %222 : vector<10x10xf32>
    %cst_135 = arith.constant dense<0.000000e+00> : vector<10x32xf32>
    %224 = tpu.matmul %223, %211, %cst_135 {dimension_numbers = #tpu.dot_dimension_numbers<[1], [0], [0], [1], [0, 0, 1, 1], [], []>} : vector<10x10xf32>, vector<10x32xf32>, vector<10x32xf32> -> vector<10x32xf32>
    %c5 = arith.constant 5 : index
    %c0_136 = arith.constant 0 : index
    %c0_137 = arith.constant 0 : index
    %225 = vector.load %arg6[%c5, %c0_136, %c0_137] : memref<8x32x8xf32, #tpu.memory_space<vmem>>, vector<1x32x8xf32>
    %226 = vector.shape_cast %225 : vector<1x32x8xf32> to vector<32x8xf32>
    %cst_138 = arith.constant dense<0.000000e+00> : vector<10x8xf32>
    %227 = tpu.matmul %202, %226, %cst_138 {dimension_numbers = #tpu.dot_dimension_numbers<[1], [0], [0], [1], [0, 0, 1, 1], [], []>} : vector<10x32xf32>, vector<32x8xf32>, vector<10x8xf32> -> vector<10x8xf32>
    %c5_139 = arith.constant 5 : index
    %c0_140 = arith.constant 0 : index
    %c0_141 = arith.constant 0 : index
    %228 = vector.load %arg7[%c5_139, %c0_140, %c0_141] : memref<8x32x8xf32, #tpu.memory_space<vmem>>, vector<1x32x8xf32>
    %229 = vector.shape_cast %228 : vector<1x32x8xf32> to vector<32x8xf32>
    %cst_142 = arith.constant dense<0.000000e+00> : vector<10x8xf32>
    %230 = tpu.matmul %202, %229, %cst_142 {dimension_numbers = #tpu.dot_dimension_numbers<[1], [0], [0], [1], [0, 0, 1, 1], [], []>} : vector<10x32xf32>, vector<32x8xf32>, vector<10x8xf32> -> vector<10x8xf32>
    %c5_143 = arith.constant 5 : index
    %c0_144 = arith.constant 0 : index
    %c0_145 = arith.constant 0 : index
    %231 = vector.load %arg8[%c5_143, %c0_144, %c0_145] : memref<8x32x32xf32, #tpu.memory_space<vmem>>, vector<1x32x32xf32>
    %232 = vector.shape_cast %231 : vector<1x32x32xf32> to vector<32x32xf32>
    %cst_146 = arith.constant dense<0.000000e+00> : vector<10x32xf32>
    %233 = tpu.matmul %202, %232, %cst_146 {dimension_numbers = #tpu.dot_dimension_numbers<[1], [0], [0], [1], [0, 0, 1, 1], [], []>} : vector<10x32xf32>, vector<32x32xf32>, vector<10x32xf32> -> vector<10x32xf32>
    %cst_147 = arith.constant dense<0.000000e+00> : vector<10x10xf32>
    %234 = tpu.matmul %227, %230, %cst_147 {dimension_numbers = #tpu.dot_dimension_numbers<[1], [1], [0], [0], [0, 0, 1, 0], [], []>} : vector<10x8xf32>, vector<10x8xf32>, vector<10x10xf32> -> vector<10x10xf32>
    %235 = arith.addf %234, %5 : vector<10x10xf32>
    %cst_148 = arith.constant dense<0xFF800000> : vector<10xf32>
    %236 = vector.multi_reduction <maximumf>, %235, %cst_148 [1] : vector<10x10xf32> to vector<10xf32>
    %237 = vector.shape_cast %236 : vector<10xf32> to vector<10x1xf32>
    %238 = vector.broadcast %237 : vector<10x1xf32> to vector<10x10xf32>
    %239 = arith.subf %235, %238 : vector<10x10xf32>
    %240 = math.exp %239 : vector<10x10xf32>
    %cst_149 = arith.constant dense<0.000000e+00> : vector<10xf32>
    %241 = vector.multi_reduction <add>, %240, %cst_149 [1] : vector<10x10xf32> to vector<10xf32>
    %242 = vector.shape_cast %241 : vector<10xf32> to vector<10x1xf32>
    %243 = tpu.reciprocal %242 {approx = true} : vector<10x1xf32> -> vector<10x1xf32>
    %244 = vector.broadcast %243 : vector<10x1xf32> to vector<10x10xf32>
    %245 = arith.mulf %240, %244 : vector<10x10xf32>
    %cst_150 = arith.constant dense<0.000000e+00> : vector<10x32xf32>
    %246 = tpu.matmul %245, %233, %cst_150 {dimension_numbers = #tpu.dot_dimension_numbers<[1], [0], [0], [1], [0, 0, 1, 1], [], []>} : vector<10x10xf32>, vector<10x32xf32>, vector<10x32xf32> -> vector<10x32xf32>
    %247 = arith.addf %224, %246 : vector<10x32xf32>
    %c6 = arith.constant 6 : index
    %c0_151 = arith.constant 0 : index
    %c0_152 = arith.constant 0 : index
    %248 = vector.load %arg6[%c6, %c0_151, %c0_152] : memref<8x32x8xf32, #tpu.memory_space<vmem>>, vector<1x32x8xf32>
    %249 = vector.shape_cast %248 : vector<1x32x8xf32> to vector<32x8xf32>
    %cst_153 = arith.constant dense<0.000000e+00> : vector<10x8xf32>
    %250 = tpu.matmul %202, %249, %cst_153 {dimension_numbers = #tpu.dot_dimension_numbers<[1], [0], [0], [1], [0, 0, 1, 1], [], []>} : vector<10x32xf32>, vector<32x8xf32>, vector<10x8xf32> -> vector<10x8xf32>
    %c6_154 = arith.constant 6 : index
    %c0_155 = arith.constant 0 : index
    %c0_156 = arith.constant 0 : index
    %251 = vector.load %arg7[%c6_154, %c0_155, %c0_156] : memref<8x32x8xf32, #tpu.memory_space<vmem>>, vector<1x32x8xf32>
    %252 = vector.shape_cast %251 : vector<1x32x8xf32> to vector<32x8xf32>
    %cst_157 = arith.constant dense<0.000000e+00> : vector<10x8xf32>
    %253 = tpu.matmul %202, %252, %cst_157 {dimension_numbers = #tpu.dot_dimension_numbers<[1], [0], [0], [1], [0, 0, 1, 1], [], []>} : vector<10x32xf32>, vector<32x8xf32>, vector<10x8xf32> -> vector<10x8xf32>
    %c6_158 = arith.constant 6 : index
    %c0_159 = arith.constant 0 : index
    %c0_160 = arith.constant 0 : index
    %254 = vector.load %arg8[%c6_158, %c0_159, %c0_160] : memref<8x32x32xf32, #tpu.memory_space<vmem>>, vector<1x32x32xf32>
    %255 = vector.shape_cast %254 : vector<1x32x32xf32> to vector<32x32xf32>
    %cst_161 = arith.constant dense<0.000000e+00> : vector<10x32xf32>
    %256 = tpu.matmul %202, %255, %cst_161 {dimension_numbers = #tpu.dot_dimension_numbers<[1], [0], [0], [1], [0, 0, 1, 1], [], []>} : vector<10x32xf32>, vector<32x32xf32>, vector<10x32xf32> -> vector<10x32xf32>
    %cst_162 = arith.constant dense<0.000000e+00> : vector<10x10xf32>
    %257 = tpu.matmul %250, %253, %cst_162 {dimension_numbers = #tpu.dot_dimension_numbers<[1], [1], [0], [0], [0, 0, 1, 0], [], []>} : vector<10x8xf32>, vector<10x8xf32>, vector<10x10xf32> -> vector<10x10xf32>
    %258 = arith.addf %257, %5 : vector<10x10xf32>
    %cst_163 = arith.constant dense<0xFF800000> : vector<10xf32>
    %259 = vector.multi_reduction <maximumf>, %258, %cst_163 [1] : vector<10x10xf32> to vector<10xf32>
    %260 = vector.shape_cast %259 : vector<10xf32> to vector<10x1xf32>
    %261 = vector.broadcast %260 : vector<10x1xf32> to vector<10x10xf32>
    %262 = arith.subf %258, %261 : vector<10x10xf32>
    %263 = math.exp %262 : vector<10x10xf32>
    %cst_164 = arith.constant dense<0.000000e+00> : vector<10xf32>
    %264 = vector.multi_reduction <add>, %263, %cst_164 [1] : vector<10x10xf32> to vector<10xf32>
    %265 = vector.shape_cast %264 : vector<10xf32> to vector<10x1xf32>
    %266 = tpu.reciprocal %265 {approx = true} : vector<10x1xf32> -> vector<10x1xf32>
    %267 = vector.broadcast %266 : vector<10x1xf32> to vector<10x10xf32>
    %268 = arith.mulf %263, %267 : vector<10x10xf32>
    %cst_165 = arith.constant dense<0.000000e+00> : vector<10x32xf32>
    %269 = tpu.matmul %268, %256, %cst_165 {dimension_numbers = #tpu.dot_dimension_numbers<[1], [0], [0], [1], [0, 0, 1, 1], [], []>} : vector<10x10xf32>, vector<10x32xf32>, vector<10x32xf32> -> vector<10x32xf32>
    %270 = arith.addf %247, %269 : vector<10x32xf32>
    %c7 = arith.constant 7 : index
    %c0_166 = arith.constant 0 : index
    %c0_167 = arith.constant 0 : index
    %271 = vector.load %arg6[%c7, %c0_166, %c0_167] : memref<8x32x8xf32, #tpu.memory_space<vmem>>, vector<1x32x8xf32>
    %272 = vector.shape_cast %271 : vector<1x32x8xf32> to vector<32x8xf32>
    %cst_168 = arith.constant dense<0.000000e+00> : vector<10x8xf32>
    %273 = tpu.matmul %202, %272, %cst_168 {dimension_numbers = #tpu.dot_dimension_numbers<[1], [0], [0], [1], [0, 0, 1, 1], [], []>} : vector<10x32xf32>, vector<32x8xf32>, vector<10x8xf32> -> vector<10x8xf32>
    %c7_169 = arith.constant 7 : index
    %c0_170 = arith.constant 0 : index
    %c0_171 = arith.constant 0 : index
    %274 = vector.load %arg7[%c7_169, %c0_170, %c0_171] : memref<8x32x8xf32, #tpu.memory_space<vmem>>, vector<1x32x8xf32>
    %275 = vector.shape_cast %274 : vector<1x32x8xf32> to vector<32x8xf32>
    %cst_172 = arith.constant dense<0.000000e+00> : vector<10x8xf32>
    %276 = tpu.matmul %202, %275, %cst_172 {dimension_numbers = #tpu.dot_dimension_numbers<[1], [0], [0], [1], [0, 0, 1, 1], [], []>} : vector<10x32xf32>, vector<32x8xf32>, vector<10x8xf32> -> vector<10x8xf32>
    %c7_173 = arith.constant 7 : index
    %c0_174 = arith.constant 0 : index
    %c0_175 = arith.constant 0 : index
    %277 = vector.load %arg8[%c7_173, %c0_174, %c0_175] : memref<8x32x32xf32, #tpu.memory_space<vmem>>, vector<1x32x32xf32>
    %278 = vector.shape_cast %277 : vector<1x32x32xf32> to vector<32x32xf32>
    %cst_176 = arith.constant dense<0.000000e+00> : vector<10x32xf32>
    %279 = tpu.matmul %202, %278, %cst_176 {dimension_numbers = #tpu.dot_dimension_numbers<[1], [0], [0], [1], [0, 0, 1, 1], [], []>} : vector<10x32xf32>, vector<32x32xf32>, vector<10x32xf32> -> vector<10x32xf32>
    %cst_177 = arith.constant dense<0.000000e+00> : vector<10x10xf32>
    %280 = tpu.matmul %273, %276, %cst_177 {dimension_numbers = #tpu.dot_dimension_numbers<[1], [1], [0], [0], [0, 0, 1, 0], [], []>} : vector<10x8xf32>, vector<10x8xf32>, vector<10x10xf32> -> vector<10x10xf32>
    %281 = arith.addf %280, %5 : vector<10x10xf32>
    %cst_178 = arith.constant dense<0xFF800000> : vector<10xf32>
    %282 = vector.multi_reduction <maximumf>, %281, %cst_178 [1] : vector<10x10xf32> to vector<10xf32>
    %283 = vector.shape_cast %282 : vector<10xf32> to vector<10x1xf32>
    %284 = vector.broadcast %283 : vector<10x1xf32> to vector<10x10xf32>
    %285 = arith.subf %281, %284 : vector<10x10xf32>
    %286 = math.exp %285 : vector<10x10xf32>
    %cst_179 = arith.constant dense<0.000000e+00> : vector<10xf32>
    %287 = vector.multi_reduction <add>, %286, %cst_179 [1] : vector<10x10xf32> to vector<10xf32>
    %288 = vector.shape_cast %287 : vector<10xf32> to vector<10x1xf32>
    %289 = tpu.reciprocal %288 {approx = true} : vector<10x1xf32> -> vector<10x1xf32>
    %290 = vector.broadcast %289 : vector<10x1xf32> to vector<10x10xf32>
    %291 = arith.mulf %286, %290 : vector<10x10xf32>
    %cst_180 = arith.constant dense<0.000000e+00> : vector<10x32xf32>
    %292 = tpu.matmul %291, %279, %cst_180 {dimension_numbers = #tpu.dot_dimension_numbers<[1], [0], [0], [1], [0, 0, 1, 1], [], []>} : vector<10x10xf32>, vector<10x32xf32>, vector<10x32xf32> -> vector<10x32xf32>
    %293 = arith.addf %270, %292 : vector<10x32xf32>
    %294 = arith.addf %176, %293 : vector<10x32xf32>
    %c1_181 = arith.constant 1 : index
    %c0_182 = arith.constant 0 : index
    %c0_183 = arith.constant 0 : index
    %295 = vector.load %arg9[%c1_181, %c0_182, %c0_183] : memref<2x1x32xf32, #tpu.memory_space<vmem>>, vector<1x1x32xf32>
    %296 = vector.shape_cast %295 : vector<1x1x32xf32> to vector<1x32xf32>
    %297 = vector.broadcast %296 : vector<1x32xf32> to vector<10x32xf32>
    %298 = arith.addf %294, %297 : vector<10x32xf32>
    %c1_184 = arith.constant 1 : index
    %c0_185 = arith.constant 0 : index
    %c0_186 = arith.constant 0 : index
    %299 = vector.load %arg10[%c1_184, %c0_185, %c0_186] : memref<2x1x32xf32, #tpu.memory_space<vmem>>, vector<1x1x32xf32>
    %300 = vector.shape_cast %299 : vector<1x1x32xf32> to vector<1x32xf32>
    %c1_187 = arith.constant 1 : index
    %c0_188 = arith.constant 0 : index
    %c0_189 = arith.constant 0 : index
    %301 = vector.load %arg11[%c1_187, %c0_188, %c0_189] : memref<2x1x32xf32, #tpu.memory_space<vmem>>, vector<1x1x32xf32>
    %302 = vector.shape_cast %301 : vector<1x1x32xf32> to vector<1x32xf32>
    %cst_190 = arith.constant dense<0.000000e+00> : vector<10xf32>
    %303 = vector.multi_reduction <add>, %298, %cst_190 [1] : vector<10x32xf32> to vector<10xf32>
    %304 = vector.shape_cast %303 : vector<10xf32> to vector<10x1xf32>
    %cst_191 = arith.constant 3.200000e+01 : f32
    %305 = vector.broadcast %cst_191 : f32 to vector<10x1xf32>
    %306 = arith.divf %304, %305 : vector<10x1xf32>
    %307 = vector.broadcast %306 : vector<10x1xf32> to vector<10x32xf32>
    %308 = arith.subf %298, %307 : vector<10x32xf32>
    %309 = arith.mulf %308, %308 : vector<10x32xf32>
    %cst_192 = arith.constant dense<0.000000e+00> : vector<10xf32>
    %310 = vector.multi_reduction <add>, %309, %cst_192 [1] : vector<10x32xf32> to vector<10xf32>
    %311 = vector.shape_cast %310 : vector<10xf32> to vector<10x1xf32>
    %cst_193 = arith.constant 3.200000e+01 : f32
    %312 = vector.broadcast %cst_193 : f32 to vector<10x1xf32>
    %313 = arith.divf %311, %312 : vector<10x1xf32>
    %314 = vector.broadcast %306 : vector<10x1xf32> to vector<10x32xf32>
    %315 = arith.subf %298, %314 : vector<10x32xf32>
    %cst_194 = arith.constant 9.99999974E-6 : f32
    %316 = vector.broadcast %cst_194 : f32 to vector<10x1xf32>
    %317 = arith.addf %313, %316 : vector<10x1xf32>
    %318 = math.rsqrt %317 : vector<10x1xf32>
    %319 = vector.broadcast %318 : vector<10x1xf32> to vector<10x32xf32>
    %320 = arith.mulf %315, %319 : vector<10x32xf32>
    %321 = vector.broadcast %300 : vector<1x32xf32> to vector<10x32xf32>
    %322 = arith.mulf %320, %321 : vector<10x32xf32>
    %323 = vector.broadcast %302 : vector<1x32xf32> to vector<10x32xf32>
    %324 = arith.addf %322, %323 : vector<10x32xf32>
    %c1_195 = arith.constant 1 : index
    %c0_196 = arith.constant 0 : index
    %c0_197 = arith.constant 0 : index
    %325 = vector.load %arg12[%c1_195, %c0_196, %c0_197] : memref<2x32x128xf32, #tpu.memory_space<vmem>>, vector<1x32x128xf32>
    %326 = vector.shape_cast %325 : vector<1x32x128xf32> to vector<32x128xf32>
    %cst_198 = arith.constant dense<0.000000e+00> : vector<10x128xf32>
    %327 = tpu.matmul %324, %326, %cst_198 {dimension_numbers = #tpu.dot_dimension_numbers<[1], [0], [0], [1], [0, 0, 1, 1], [], []>} : vector<10x32xf32>, vector<32x128xf32>, vector<10x128xf32> -> vector<10x128xf32>
    %c1_199 = arith.constant 1 : index
    %c0_200 = arith.constant 0 : index
    %c0_201 = arith.constant 0 : index
    %328 = vector.load %arg13[%c1_199, %c0_200, %c0_201] : memref<2x1x128xf32, #tpu.memory_space<vmem>>, vector<1x1x128xf32>
    %329 = vector.shape_cast %328 : vector<1x1x128xf32> to vector<1x128xf32>
    %330 = vector.broadcast %329 : vector<1x128xf32> to vector<10x128xf32>
    %331 = arith.addf %327, %330 : vector<10x128xf32>
    %cst_202 = arith.constant 5.000000e-01 : f32
    %332 = vector.broadcast %cst_202 : f32 to vector<10x128xf32>
    %333 = arith.mulf %332, %331 : vector<10x128xf32>
    %cst_203 = arith.constant 0.707106769 : f32
    %334 = vector.broadcast %cst_203 : f32 to vector<10x128xf32>
    %335 = arith.mulf %331, %334 : vector<10x128xf32>
    %336 = math.erf %335 : vector<10x128xf32>
    %cst_204 = arith.constant 1.000000e+00 : f32
    %337 = vector.broadcast %cst_204 : f32 to vector<10x128xf32>
    %338 = arith.addf %337, %336 : vector<10x128xf32>
    %339 = arith.mulf %333, %338 : vector<10x128xf32>
    %c1_205 = arith.constant 1 : index
    %c0_206 = arith.constant 0 : index
    %c0_207 = arith.constant 0 : index
    %340 = vector.load %arg14[%c1_205, %c0_206, %c0_207] : memref<2x128x32xf32, #tpu.memory_space<vmem>>, vector<1x128x32xf32>
    %341 = vector.shape_cast %340 : vector<1x128x32xf32> to vector<128x32xf32>
    %cst_208 = arith.constant dense<0.000000e+00> : vector<10x32xf32>
    %342 = tpu.matmul %339, %341, %cst_208 {dimension_numbers = #tpu.dot_dimension_numbers<[1], [0], [0], [1], [0, 0, 1, 1], [], []>} : vector<10x128xf32>, vector<128x32xf32>, vector<10x32xf32> -> vector<10x32xf32>
    %c1_209 = arith.constant 1 : index
    %c0_210 = arith.constant 0 : index
    %c0_211 = arith.constant 0 : index
    %343 = vector.load %arg15[%c1_209, %c0_210, %c0_211] : memref<2x1x32xf32, #tpu.memory_space<vmem>>, vector<1x1x32xf32>
    %344 = vector.shape_cast %343 : vector<1x1x32xf32> to vector<1x32xf32>
    %345 = vector.broadcast %344 : vector<1x32xf32> to vector<10x32xf32>
    %346 = arith.addf %342, %345 : vector<10x32xf32>
    %347 = arith.addf %298, %346 : vector<10x32xf32>
    %c0_212 = arith.constant 0 : index
    %c0_213 = arith.constant 0 : index
    %348 = vector.load %arg16[%c0_212, %c0_213] : memref<1x32xf32, #tpu.memory_space<vmem>>, vector<1x32xf32>
    %c0_214 = arith.constant 0 : index
    %c0_215 = arith.constant 0 : index
    %349 = vector.load %arg17[%c0_214, %c0_215] : memref<1x32xf32, #tpu.memory_space<vmem>>, vector<1x32xf32>
    %cst_216 = arith.constant dense<0.000000e+00> : vector<10xf32>
    %350 = vector.multi_reduction <add>, %347, %cst_216 [1] : vector<10x32xf32> to vector<10xf32>
    %351 = vector.shape_cast %350 : vector<10xf32> to vector<10x1xf32>
    %cst_217 = arith.constant 3.200000e+01 : f32
    %352 = vector.broadcast %cst_217 : f32 to vector<10x1xf32>
    %353 = arith.divf %351, %352 : vector<10x1xf32>
    %354 = vector.broadcast %353 : vector<10x1xf32> to vector<10x32xf32>
    %355 = arith.subf %347, %354 : vector<10x32xf32>
    %356 = arith.mulf %355, %355 : vector<10x32xf32>
    %cst_218 = arith.constant dense<0.000000e+00> : vector<10xf32>
    %357 = vector.multi_reduction <add>, %356, %cst_218 [1] : vector<10x32xf32> to vector<10xf32>
    %358 = vector.shape_cast %357 : vector<10xf32> to vector<10x1xf32>
    %cst_219 = arith.constant 3.200000e+01 : f32
    %359 = vector.broadcast %cst_219 : f32 to vector<10x1xf32>
    %360 = arith.divf %358, %359 : vector<10x1xf32>
    %361 = vector.broadcast %353 : vector<10x1xf32> to vector<10x32xf32>
    %362 = arith.subf %347, %361 : vector<10x32xf32>
    %cst_220 = arith.constant 9.99999974E-6 : f32
    %363 = vector.broadcast %cst_220 : f32 to vector<10x1xf32>
    %364 = arith.addf %360, %363 : vector<10x1xf32>
    %365 = math.rsqrt %364 : vector<10x1xf32>
    %366 = vector.broadcast %365 : vector<10x1xf32> to vector<10x32xf32>
    %367 = arith.mulf %362, %366 : vector<10x32xf32>
    %368 = vector.broadcast %348 : vector<1x32xf32> to vector<10x32xf32>
    %369 = arith.mulf %367, %368 : vector<10x32xf32>
    %370 = vector.broadcast %349 : vector<1x32xf32> to vector<10x32xf32>
    %371 = arith.addf %369, %370 : vector<10x32xf32>
    %c0_221 = arith.constant 0 : index
    %c0_222 = arith.constant 0 : index
    %372 = vector.load %arg18[%c0_221, %c0_222] : memref<32x128xf32, #tpu.memory_space<vmem>>, vector<32x128xf32>
    %cst_223 = arith.constant dense<0.000000e+00> : vector<10x128xf32>
    %373 = tpu.matmul %371, %372, %cst_223 {dimension_numbers = #tpu.dot_dimension_numbers<[1], [0], [0], [1], [0, 0, 1, 1], [], []>} : vector<10x32xf32>, vector<32x128xf32>, vector<10x128xf32> -> vector<10x128xf32>
    %c0_224 = arith.constant 0 : index
    %c0_225 = arith.constant 0 : index
    %374 = vector.load %arg19[%c0_224, %c0_225] : memref<1x128xf32, #tpu.memory_space<vmem>>, vector<1x128xf32>
    %375 = vector.broadcast %374 : vector<1x128xf32> to vector<10x128xf32>
    %376 = arith.addf %373, %375 : vector<10x128xf32>
    %c0_226 = arith.constant 0 : index
    %c0_227 = arith.constant 0 : index
    %377 = vector.load %arg20[%c0_226, %c0_227] : memref<10x128xf32, #tpu.memory_space<vmem>>, vector<10x128xf32>
    tpu.vector_store %arg20[%c0_226, %c0_227], %376 {strides = array<i32>} : memref<10x128xf32, #tpu.memory_space<vmem>>, vector<10x128xf32>,
    return
  }
}

</mosaic_0001>

<llo_original>
// kernel: tile.9
$region0: #{tile.9}
  %s0 = inlined_call_operand.vmem [shape: f32[2,5,32], index: 0, kind: input, shape index: {}]
  %s1 = inlined_call_operand.vmem [shape: f32[10,32], index: 1, kind: output, shape index: {}]
  %v2 = vld [vmem:[%s0] sm:$0x1f]
  %vm3 = vcmask 261120
  %4 = vst.msk [vmem:[%s1] sm:$0x1f] %vm3, %v2
  %s5 = scalar_lea.vmem %s0, 8
  %v6 = vld [vmem:[%s5] sm:$0x1f]
  %vm7 = vcmask 261120
  %s8 = scalar_lea.vmem %s1, 5
  %9 = vst.msk [vmem:[%s8] sm:$0x1f] %vm7, %v6

// kernel: vit_forward.1
$region0: #{vit_forward.1}
  #allocation0 [shape = 'u32[]', space=smem, size = 0x4, offset = 0x4, fixed_abs, tag = 'smem constant byte address 0x4 - core index']
  #allocation1 [shape = 'u32[144,128]{1,0:T(1,128)}', space=vmem, size = 0x12000, scoped, tag = 'internal scratch']
  %s0 = inlined_call_operand.vmem [shape: f32[10,192], index: 0, kind: input, shape index: {}]
  %s1 = inlined_call_operand.vmem [shape: f32[192,32], index: 1, kind: input, shape index: {}]
  %s2 = inlined_call_operand.vmem [shape: f32[10,32], index: 2, kind: input, shape index: {}]
  %s3 = inlined_call_operand.vmem [shape: f32[10,10], index: 3, kind: input, shape index: {}]
  %s4 = inlined_call_operand.vmem [shape: f32[2,1,32], index: 4, kind: input, shape index: {}]
  %s5 = inlined_call_operand.vmem [shape: f32[2,1,32], index: 5, kind: input, shape index: {}]
  %s6 = inlined_call_operand.vmem [shape: f32[8,32,8], index: 6, kind: input, shape index: {}]
  %s7 = inlined_call_operand.vmem [shape: f32[8,32,8], index: 7, kind: input, shape index: {}]
  %s8 = inlined_call_operand.vmem [shape: f32[8,32,32], index: 8, kind: input, shape index: {}]
  %s9 = inlined_call_operand.vmem [shape: f32[2,1,32], index: 9, kind: input, shape index: {}]
  %s10 = inlined_call_operand.vmem [shape: f32[2,1,32], index: 10, kind: input, shape index: {}]
  %s11 = inlined_call_operand.vmem [shape: f32[2,1,32], index: 11, kind: input, shape index: {}]
  %s12 = inlined_call_operand.vmem [shape: f32[2,32,128], index: 12, kind: input, shape index: {}]
  %s13 = inlined_call_operand.vmem [shape: f32[2,1,128], index: 13, kind: input, shape index: {}]
  %s14 = inlined_call_operand.vmem [shape: f32[2,128,32], index: 14, kind: input, shape index: {}]
  %s15 = inlined_call_operand.vmem [shape: f32[2,1,32], index: 15, kind: input, shape index: {}]
  %s16 = inlined_call_operand.vmem [shape: f32[1,32], index: 16, kind: input, shape index: {}]
  %s17 = inlined_call_operand.vmem [shape: f32[1,32], index: 17, kind: input, shape index: {}]
  %s18 = inlined_call_operand.vmem [shape: f32[32,128], index: 18, kind: input, shape index: {}]
  %s19 = inlined_call_operand.vmem [shape: f32[1,128], index: 19, kind: input, shape index: {}]
  %s20 = inlined_call_operand.vmem [shape: f32[10,128], index: 20, kind: output, shape index: {}]
  %s21 = sld [smem:[#allocation0]]
  $region90: #{vit_forward.1} parent=0
    _
  %s23 = ssub.s32 1, %s21
  %s24 = scalar_select 0, %s23, %s21
  // Predicated region
  $region2: #{vit_forward.1} parent=0 // pred_check
    _
  $region3: #{vit_forward.1} parent=0 // pred_check_branch
    %26 = sbr.rel (0) target = $region5
  $region4: #{vit_forward.1} parent=0 // pred_region
    _
  $region5: #{vit_forward.1} parent=0 // pred_fallthru
    _
  // Predicated region
  $region6: #{vit_forward.1} parent=0 // pred_check
    _
  $region7: #{vit_forward.1} parent=0 // pred_check_branch
    %28 = sbr.rel (0) target = $region9
  $region8: #{vit_forward.1} parent=0 // pred_region
    _
  $region9: #{vit_forward.1} parent=0 // pred_fallthru
    _
  // Predicated region
  $region10: #{vit_forward.1} parent=0 // pred_check
    _
  $region11: #{vit_forward.1} parent=0 // pred_check_branch
    %30 = sbr.rel (0) target = $region13
  $region12: #{vit_forward.1} parent=0 // pred_region
    _
  $region13: #{vit_forward.1} parent=0 // pred_fallthru
    _
  // Predicated region
  $region14: #{vit_forward.1} parent=0 // pred_check
    _
  $region15: #{vit_forward.1} parent=0 // pred_check_branch
    %32 = sbr.rel (0) target = $region17
  $region16: #{vit_forward.1} parent=0 // pred_region
    _
  $region17: #{vit_forward.1} parent=0 // pred_fallthru
    _
  // Predicated region
  $region18: #{vit_forward.1} parent=0 // pred_check
    _
  $region19: #{vit_forward.1} parent=0 // pred_check_branch
    %34 = sbr.rel (0) target = $region21
  $region20: #{vit_forward.1} parent=0 // pred_region
    _
  $region21: #{vit_forward.1} parent=0 // pred_fallthru
    _
  // Predicated region
  $region22: #{vit_forward.1} parent=0 // pred_check
    _
  $region23: #{vit_forward.1} parent=0 // pred_check_branch
    %36 = sbr.rel (0) target = $region25
  $region24: #{vit_forward.1} parent=0 // pred_region
    _
  $region25: #{vit_forward.1} parent=0 // pred_fallthru
    _
  // Predicated region
  $region26: #{vit_forward.1} parent=0 // pred_check
    _
  $region27: #{vit_forward.1} parent=0 // pred_check_branch
    %38 = sbr.rel (0) target = $region29
  $region28: #{vit_forward.1} parent=0 // pred_region
    _
  $region29: #{vit_forward.1} parent=0 // pred_fallthru
    _
  // Predicated region
  $region30: #{vit_forward.1} parent=0 // pred_check
    _
  $region31: #{vit_forward.1} parent=0 // pred_check_branch
    %40 = sbr.rel (0) target = $region33
  $region32: #{vit_forward.1} parent=0 // pred_region
    _
  $region33: #{vit_forward.1} parent=0 // pred_fallthru
    _
  // Predicated region
  $region34: #{vit_forward.1} parent=0 // pred_check
    _
  $region35: #{vit_forward.1} parent=0 // pred_check_branch
    %42 = sbr.rel (0) target = $region37
  $region36: #{vit_forward.1} parent=0 // pred_region
    _
  $region37: #{vit_forward.1} parent=0 // pred_fallthru
    _
  // Predicated region
  $region38: #{vit_forward.1} parent=0 // pred_check
    _
  $region39: #{vit_forward.1} parent=0 // pred_check_branch
    %44 = sbr.rel (0) target = $region41
  $region40: #{vit_forward.1} parent=0 // pred_region
    _
  $region41: #{vit_forward.1} parent=0 // pred_fallthru
    _
  // Predicated region
  $region42: #{vit_forward.1} parent=0 // pred_check
    _
  $region43: #{vit_forward.1} parent=0 // pred_check_branch
    %46 = sbr.rel (0) target = $region45
  $region44: #{vit_forward.1} parent=0 // pred_region
    _
  $region45: #{vit_forward.1} parent=0 // pred_fallthru
    _
  // Predicated region
  $region46: #{vit_forward.1} parent=0 // pred_check
    _
  $region47: #{vit_forward.1} parent=0 // pred_check_branch
    %48 = sbr.rel (0) target = $region49
  $region48: #{vit_forward.1} parent=0 // pred_region
    _
  $region49: #{vit_forward.1} parent=0 // pred_fallthru
    _
  // Predicated region
  $region50: #{vit_forward.1} parent=0 // pred_check
    _
  $region51: #{vit_forward.1} parent=0 // pred_check_branch
    %50 = sbr.rel (0) target = $region53
  $region52: #{vit_forward.1} parent=0 // pred_region
    _
  $region53: #{vit_forward.1} parent=0 // pred_fallthru
    _
  // Predicated region
  $region54: #{vit_forward.1} parent=0 // pred_check
    _
  $region55: #{vit_forward.1} parent=0 // pred_check_branch
    %52 = sbr.rel (0) target = $region57
  $region56: #{vit_forward.1} parent=0 // pred_region
    _
  $region57: #{vit_forward.1} parent=0 // pred_fallthru
    _
  // Predicated region
  $region58: #{vit_forward.1} parent=0 // pred_check
    _
  $region59: #{vit_forward.1} parent=0 // pred_check_branch
    %54 = sbr.rel (0) target = $region61
  $region60: #{vit_forward.1} parent=0 // pred_region
    _
  $region61: #{vit_forward.1} parent=0 // pred_fallthru
    _
  // Predicated region
  $region62: #{vit_forward.1} parent=0 // pred_check
    _
  $region63: #{vit_forward.1} parent=0 // pred_check_branch
    %56 = sbr.rel (0) target = $region65
  $region64: #{vit_forward.1} parent=0 // pred_region
    _
  $region65: #{vit_forward.1} parent=0 // pred_fallthru
    _
  // Predicated region
  $region66: #{vit_forward.1} parent=0 // pred_check
    _
  $region67: #{vit_forward.1} parent=0 // pred_check_branch
    %58 = sbr.rel (0) target = $region69
  $region68: #{vit_forward.1} parent=0 // pred_region
    _
  $region69: #{vit_forward.1} parent=0 // pred_fallthru
    _
  // Predicated region
  $region70: #{vit_forward.1} parent=0 // pred_check
    _
  $region71: #{vit_forward.1} parent=0 // pred_check_branch
    %60 = sbr.rel (0) target = $region73
  $region72: #{vit_forward.1} parent=0 // pred_region
    _
  $region73: #{vit_forward.1} parent=0 // pred_fallthru
    _
  // Predicated region
  $region74: #{vit_forward.1} parent=0 // pred_check
    _
  $region75: #{vit_forward.1} parent=0 // pred_check_branch
    %62 = sbr.rel (0) target = $region77
  $region76: #{vit_forward.1} parent=0 // pred_region
    _
  $region77: #{vit_forward.1} parent=0 // pred_fallthru
    _
  // Predicated region
  $region78: #{vit_forward.1} parent=0 // pred_check
    _
  $region79: #{vit_forward.1} parent=0 // pred_check_branch
    %64 = sbr.rel (0) target = $region81
  $region80: #{vit_forward.1} parent=0 // pred_region
    _
  $region81: #{vit_forward.1} parent=0 // pred_fallthru
    _
  %v65 = vld [vmem:[%s0] sm:$0xff]
  %v66 = vld [vmem:[%s0 + $0x8] sm:$0xff]
  %v67 = vld [vmem:[%s0 + $0x10] sm:$0x3]
  %v68 = vld [vmem:[%s0 + $0x18] sm:$0x3]
  %v69 = vld [vmem:[%s1] sm:$0xff]
  %v70 = vld [vmem:[%s1 + $0x8] sm:$0xff]
  %v71 = vld [vmem:[%s1 + $0x10] sm:$0xff]
  %v72 = vld [vmem:[%s1 + $0x18] sm:$0xff]
  %v73 = vld [vmem:[%s1 + $0x20] sm:$0xff]
  %v74 = vld [vmem:[%s1 + $0x28] sm:$0xff]
  %v75 = vld [vmem:[%s1 + $0x30] sm:$0xff]
  %v76 = vld [vmem:[%s1 + $0x38] sm:$0xff]
  %v77 = vld [vmem:[%s1 + $0x40] sm:$0xff]
  %v78 = vld [vmem:[%s1 + $0x48] sm:$0xff]
  %v79 = vld [vmem:[%s1 + $0x50] sm:$0xff]
  %v80 = vld [vmem:[%s1 + $0x58] sm:$0xff]
  %v81 = vld [vmem:[%s1 + $0x60] sm:$0xff]
  %v82 = vld [vmem:[%s1 + $0x68] sm:$0xff]
  %v83 = vld [vmem:[%s1 + $0x70] sm:$0xff]
  %v84 = vld [vmem:[%s1 + $0x78] sm:$0xff]
  %v85 = vld [vmem:[%s1 + $0x80] sm:$0xff]
  %v86 = vld [vmem:[%s1 + $0x88] sm:$0xff]
  %v87 = vld [vmem:[%s1 + $0x90] sm:$0xff]
  %v88 = vld [vmem:[%s1 + $0x98] sm:$0xff]
  %v89 = vld [vmem:[%s1 + $0xa0] sm:$0xff]
  %v90 = vld [vmem:[%s1 + $0xa8] sm:$0xff]
  %v91 = vld [vmem:[%s1 + $0xb0] sm:$0xff]
  %v92 = vld [vmem:[%s1 + $0xb8] sm:$0xff]
  %v93 = vld [vmem:[%s2] sm:$0xff]
  %v94 = vld [vmem:[%s2 + $0x8] sm:$0x3]
  %vm95 = vcmask 523264
  %v97 = vsel %vm95, %v66, 0
  %v100 = vsel %vm95, %v68, 0
  %102 = vmatprep.subr.mxu0 0.0
  %103 = vmatpush1.msra.mxu0 %v84
  %104 = vmatprep.subr.mxu0 0.0
  %105 = vmatpush1.msra.mxu0 %v83
  %106 = vmatprep.subr.mxu0 0.0
  %107 = vmatpush1.msra.mxu0 %v82
  %108 = vmatprep.subr.mxu0 0.0
  %109 = vmatpush1.msra.mxu0 %v81
  %110 = vmatprep.subr.mxu0 0.0
  %111 = vmatpush1.msra.mxu0 %v80
  %112 = vmatprep.subr.mxu0 0.0
  %113 = vmatpush1.msra.mxu0 %v79
  %114 = vmatprep.subr.mxu0 0.0
  %115 = vmatpush1.msra.mxu0 %v78
  %116 = vmatprep.subr.mxu0 0.0
  %117 = vmatpush1.msra.mxu0 %v77
  %118 = vmatprep.subr.mxu0 0.0
  %119 = vmatpush1.msra.mxu0 %v76
  %120 = vmatprep.subr.mxu0 0.0
  %121 = vmatpush1.msra.mxu0 %v75
  %122 = vmatprep.subr.mxu0 0.0
  %123 = vmatpush1.msra.mxu0 %v74
  %124 = vmatprep.subr.mxu0 0.0
  %125 = vmatpush1.msra.mxu0 %v73
  %126 = vmatprep.subr.mxu0 0.0
  %127 = vmatpush1.msra.mxu0 %v72
  %128 = vmatprep.subr.mxu0 0.0
  %129 = vmatpush1.msra.mxu0 %v71
  %130 = vmatprep.subr.mxu0 0.0
  %131 = vmatpush1.msra.mxu0 %v70
  %132 = vmatprep.subr.mxu0 0.0
  %133 = vmatpush1.msra.mxu0 %v69
  %134 = vmatprep.subr.mxu0 0.0
  %135 = vmatpush2.msra.mxu0 0.0
  %136 = vmatprep.subr.mxu0 0.0
  %137 = vmatpush2.msra.mxu0 0.0
  %138 = vmatprep.subr.mxu0 0.0
  %139 = vmatpush2.msra.mxu0 0.0
  %140 = vmatprep.subr.mxu0 0.0
  %141 = vmatpush2.msra.mxu0 0.0
  %142 = vmatprep.subr.mxu0 0.0
  %143 = vmatpush2.msra.mxu0 0.0
  %144 = vmatprep.subr.mxu0 0.0
  %145 = vmatpush2.msra.mxu0 0.0
  %146 = vmatprep.subr.mxu0 0.0
  %147 = vmatpush2.msra.mxu0 0.0
  %148 = vmatprep.subr.mxu0 0.0
  %149 = vmatpush2.msra.mxu0 0.0
  %150 = vmatprep.subr.mxu0 0.0
  %151 = vmatpush2.msra.mxu0 %v92
  %152 = vmatprep.subr.mxu0 0.0
  %153 = vmatpush2.msra.mxu0 %v91
  %154 = vmatprep.subr.mxu0 0.0
  %155 = vmatpush2.msra.mxu0 %v90
  %156 = vmatprep.subr.mxu0 0.0
  %157 = vmatpush2.msra.mxu0 %v89
  %158 = vmatprep.subr.mxu0 0.0
  %159 = vmatpush2.msra.mxu0 %v88
  %160 = vmatprep.subr.mxu0 0.0
  %161 = vmatpush2.msra.mxu0 %v87
  %162 = vmatprep.subr.mxu0 0.0
  %163 = vmatpush2.msra.mxu0 %v86
  %164 = vmatprep.subr.mxu0 0.0
  %165 = vmatpush2.msra.mxu0 %v85
  %166 = vmatprep.mubr.f32.mxu0 %v97
  %167 = vmatmul.mubr.f32.gmra.mxu0 %v65
  %v168 = vpop.f32.mrf.mxu0
  %v169 = vadd.f32 %v93, %v168
  %v170 = vpop.f32.mrf.mxu0
  %171 = vmatprep.mubr.f32.mxu0 %v100
  %172 = vmatmul.mubr.f32.gmra.mxu0 %v67
  %v173 = vpop.f32.mrf.mxu0
  %v174 = vadd.f32 %v94, %v173
  %v175 = vpop.f32.mrf.mxu0
  %176 = vdwg.mxu0
  %v177 = vld [vmem:[%s3] sm:$0xff]
  %v178 = vld [vmem:[%s3 + $0x8] sm:$0x3]
  %v179 = vld [vmem:[%s4] sm:$0x1]
  %v180 = vld [vmem:[%s5] sm:$0x1]
  %vm181 = vcmask 261120
  %v182 = vsel %vm181, %v169, 0.0
  %183 = vadd.xlane.f32.xlu0 %v182
  %v184 = vpop.xlane.xlu0 %183
  %vm185 = vcmask 254976
  %v186 = vsel %vm185, %v174, 0.0
  %187 = vadd.xlane.f32.xlu0 %v186
  %v188 = vpop.xlane.xlu0 %187
  %v189 = vrcp.pop 32.0
  %v190 = vmul.f32 %v184, %v189
  %v191 = vmul.f32 %v188, %v189
  %v192 = vsub.f32 %v169, %v190
  %v193 = vsub.f32 %v174, %v191
  %v194 = vmul.f32 %v192, %v192
  %v195 = vmul.f32 %v193, %v193
  %v196 = vsel %vm181, %v194, 0.0
  %197 = vadd.xlane.f32.xlu0 %v196
  %v198 = vpop.xlane.xlu0 %197
  %v199 = vsel %vm185, %v195, 0.0
  %200 = vadd.xlane.f32.xlu0 %v199
  %v201 = vpop.xlane.xlu0 %200
  %v202 = vmul.f32 %v198, %v189
  %v203 = vmul.f32 %v201, %v189
  %v204 = vadd.f32 %v202, 1e-05
  %v205 = vadd.f32 %v203, 1e-05
  %v206 = vrsqrt.pop %v204
  %v207 = vrsqrt.pop %v205
  %v208 = vmul.f32 %v192, %v206
  %v209 = vmul.f32 %v193, %v207
  %v211 = vlaneseq
  %v212 = vshrl.u32 %v211, 7
  %v213 = vsub.s32 0, %v212
  %v214 = vrot.slane %v179, %v213
  %v216 = vmul.f32 %v208, %v214
  %v217 = vmul.f32 %v209, %v214
  %v219 = vlaneseq
  %v220 = vshrl.u32 %v219, 7
  %v221 = vsub.s32 0, %v220
  %v222 = vrot.slane %v180, %v221
  %v224 = vadd.f32 %v216, %v222
  %v225 = vadd.f32 %v217, %v222
  %v226 = vld [vmem:[%s6] sm:$0xff]
  %v227 = vld [vmem:[%s6 + $0x8] sm:$0xff]
  %v228 = vld [vmem:[%s6 + $0x10] sm:$0xff]
  %v229 = vld [vmem:[%s6 + $0x18] sm:$0xff]
  %v231 = vsel %vm181, %v224, 0
  %v234 = vsel %vm181, %v225, 0
  %236 = vmatprep.subr.mxu0 0.0
  %237 = vmatpush1.msra.mxu0 0.0
  %238 = vmatprep.subr.mxu0 0.0
  %239 = vmatpush1.msra.mxu0 0.0
  %240 = vmatprep.subr.mxu0 0.0
  %241 = vmatpush1.msra.mxu0 0.0
  %242 = vmatprep.subr.mxu0 0.0
  %243 = vmatpush1.msra.mxu0 0.0
  %244 = vmatprep.subr.mxu0 0.0
  %245 = vmatpush1.msra.mxu0 0.0
  %246 = vmatprep.subr.mxu0 0.0
  %247 = vmatpush1.msra.mxu0 0.0
  %248 = vmatprep.subr.mxu0 0.0
  %249 = vmatpush1.msra.mxu0 0.0
  %250 = vmatprep.subr.mxu0 0.0
  %251 = vmatpush1.msra.mxu0 0.0
  %252 = vmatprep.subr.mxu0 0.0
  %253 = vmatpush1.msra.mxu0 0.0
  %254 = vmatprep.subr.mxu0 0.0
  %255 = vmatpush1.msra.mxu0 0.0
  %256 = vmatprep.subr.mxu0 0.0
  %257 = vmatpush1.msra.mxu0 0.0
  %258 = vmatprep.subr.mxu0 0.0
  %259 = vmatpush1.msra.mxu0 0.0
  %260 = vmatprep.subr.mxu0 0.0
  %261 = vmatpush1.msra.mxu0 %v229
  %262 = vmatprep.subr.mxu0 0.0
  %263 = vmatpush1.msra.mxu0 %v228
  %264 = vmatprep.subr.mxu0 0.0
  %265 = vmatpush1.msra.mxu0 %v227
  %266 = vmatprep.subr.mxu0 0.0
  %267 = vmatpush1.msra.mxu0 %v226
  %268 = vmatprep.subr.mxu0 0.0
  %269 = vmatpush2.msra.mxu0 0.0
  %270 = vmatprep.subr.mxu0 0.0
  %271 = vmatpush2.msra.mxu0 0.0
  %272 = vmatprep.subr.mxu0 0.0
  %273 = vmatpush2.msra.mxu0 0.0
  %274 = vmatprep.subr.mxu0 0.0
  %275 = vmatpush2.msra.mxu0 0.0
  %276 = vmatprep.subr.mxu0 0.0
  %277 = vmatpush2.msra.mxu0 0.0
  %278 = vmatprep.subr.mxu0 0.0
  %279 = vmatpush2.msra.mxu0 0.0
  %280 = vmatprep.subr.mxu0 0.0
  %281 = vmatpush2.msra.mxu0 0.0
  %282 = vmatprep.subr.mxu0 0.0
  %283 = vmatpush2.msra.mxu0 0.0
  %284 = vmatprep.subr.mxu0 0.0
  %285 = vmatpush2.msra.mxu0 0.0
  %286 = vmatprep.subr.mxu0 0.0
  %287 = vmatpush2.msra.mxu0 0.0
  %288 = vmatprep.subr.mxu0 0.0
  %289 = vmatpush2.msra.mxu0 0.0
  %290 = vmatprep.subr.mxu0 0.0
  %291 = vmatpush2.msra.mxu0 0.0
  %292 = vmatprep.subr.mxu0 0.0
  %293 = vmatpush2.msra.mxu0 0.0
  %294 = vmatprep.subr.mxu0 0.0
  %295 = vmatpush2.msra.mxu0 0.0
  %296 = vmatprep.subr.mxu0 0.0
  %297 = vmatpush2.msra.mxu0 0.0
  %298 = vmatprep.subr.mxu0 0.0
  %299 = vmatpush2.msra.mxu0 0.0
  %300 = vmatprep.mubr.f32.mxu0 0.0
  %301 = vmatmul.mubr.f32.gmra.mxu0 %v231
  %v302 = vpop.f32.mrf.mxu0
  %v303 = vadd.f32 0.0, %v302
  %v304 = vpop.f32.mrf.mxu0
  %305 = vmatprep.mubr.f32.mxu0 0.0
  %306 = vmatmul.mubr.f32.gmra.mxu0 %v234
  %v307 = vpop.f32.mrf.mxu0
  %v308 = vadd.f32 0.0, %v307
  %v309 = vpop.f32.mrf.mxu0
  %310 = vdwg.mxu0
  %v311 = vld [vmem:[%s7] sm:$0xff]
  %v312 = vld [vmem:[%s7 + $0x8] sm:$0xff]
  %v313 = vld [vmem:[%s7 + $0x10] sm:$0xff]
  %v314 = vld [vmem:[%s7 + $0x18] sm:$0xff]
  %315 = vmatprep.subr.mxu0 0.0
  %316 = vmatpush1.msra.mxu0 0.0
  %317 = vmatprep.subr.mxu0 0.0
  %318 = vmatpush1.msra.mxu0 0.0
  %319 = vmatprep.subr.mxu0 0.0
  %320 = vmatpush1.msra.mxu0 0.0
  %321 = vmatprep.subr.mxu0 0.0
  %322 = vmatpush1.msra.mxu0 0.0
  %323 = vmatprep.subr.mxu0 0.0
  %324 = vmatpush1.msra.mxu0 0.0
  %325 = vmatprep.subr.mxu0 0.0
  %326 = vmatpush1.msra.mxu0 0.0
  %327 = vmatprep.subr.mxu0 0.0
  %328 = vmatpush1.msra.mxu0 0.0
  %329 = vmatprep.subr.mxu0 0.0
  %330 = vmatpush1.msra.mxu0 0.0
  %331 = vmatprep.subr.mxu0 0.0
  %332 = vmatpush1.msra.mxu0 0.0
  %333 = vmatprep.subr.mxu0 0.0
  %334 = vmatpush1.msra.mxu0 0.0
  %335 = vmatprep.subr.mxu0 0.0
  %336 = vmatpush1.msra.mxu0 0.0
  %337 = vmatprep.subr.mxu0 0.0
  %338 = vmatpush1.msra.mxu0 0.0
  %339 = vmatprep.subr.mxu0 0.0
  %340 = vmatpush1.msra.mxu0 %v314
  %341 = vmatprep.subr.mxu0 0.0
  %342 = vmatpush1.msra.mxu0 %v313
  %343 = vmatprep.subr.mxu0 0.0
  %344 = vmatpush1.msra.mxu0 %v312
  %345 = vmatprep.subr.mxu0 0.0
  %346 = vmatpush1.msra.mxu0 %v311
  %347 = vmatprep.subr.mxu0 0.0
  %348 = vmatpush2.msra.mxu0 0.0
  %349 = vmatprep.subr.mxu0 0.0
  %350 = vmatpush2.msra.mxu0 0.0
  %351 = vmatprep.subr.mxu0 0.0
  %352 = vmatpush2.msra.mxu0 0.0
  %353 = vmatprep.subr.mxu0 0.0
  %354 = vmatpush2.msra.mxu0 0.0
  %355 = vmatprep.subr.mxu0 0.0
  %356 = vmatpush2.msra.mxu0 0.0
  %357 = vmatprep.subr.mxu0 0.0
  %358 = vmatpush2.msra.mxu0 0.0
  %359 = vmatprep.subr.mxu0 0.0
  %360 = vmatpush2.msra.mxu0 0.0
  %361 = vmatprep.subr.mxu0 0.0
  %362 = vmatpush2.msra.mxu0 0.0
  %363 = vmatprep.subr.mxu0 0.0
  %364 = vmatpush2.msra.mxu0 0.0
  %365 = vmatprep.subr.mxu0 0.0
  %366 = vmatpush2.msra.mxu0 0.0
  %367 = vmatprep.subr.mxu0 0.0
  %368 = vmatpush2.msra.mxu0 0.0
  %369 = vmatprep.subr.mxu0 0.0
  %370 = vmatpush2.msra.mxu0 0.0
  %371 = vmatprep.subr.mxu0 0.0
  %372 = vmatpush2.msra.mxu0 0.0
  %373 = vmatprep.subr.mxu0 0.0
  %374 = vmatpush2.msra.mxu0 0.0
  %375 = vmatprep.subr.mxu0 0.0
  %376 = vmatpush2.msra.mxu0 0.0
  %377 = vmatprep.subr.mxu0 0.0
  %378 = vmatpush2.msra.mxu0 0.0
  %379 = vmatprep.mubr.f32.mxu0 0.0
  %380 = vmatmul.mubr.f32.gmra.mxu0 %v231
  %v381 = vpop.f32.mrf.mxu0
  %v382 = vadd.f32 0.0, %v381
  %v383 = vpop.f32.mrf.mxu0
  %384 = vmatprep.mubr.f32.mxu0 0.0
  %385 = vmatmul.mubr.f32.gmra.mxu0 %v234
  %v386 = vpop.f32.mrf.mxu0
  %v387 = vadd.f32 0.0, %v386
  %v388 = vpop.f32.mrf.mxu0
  %389 = vdwg.mxu0
  %v390 = vld [vmem:[%s8] sm:$0xff]
  %v391 = vld [vmem:[%s8 + $0x8] sm:$0xff]
  %v392 = vld [vmem:[%s8 + $0x10] sm:$0xff]
  %v393 = vld [vmem:[%s8 + $0x18] sm:$0xff]
  %394 = vmatprep.subr.mxu0 0.0
  %395 = vmatpush1.msra.mxu0 0.0
  %396 = vmatprep.subr.mxu0 0.0
  %397 = vmatpush1.msra.mxu0 0.0
  %398 = vmatprep.subr.mxu0 0.0
  %399 = vmatpush1.msra.mxu0 0.0
  %400 = vmatprep.subr.mxu0 0.0
  %401 = vmatpush1.msra.mxu0 0.0
  %402 = vmatprep.subr.mxu0 0.0
  %403 = vmatpush1.msra.mxu0 0.0
  %404 = vmatprep.subr.mxu0 0.0
  %405 = vmatpush1.msra.mxu0 0.0
  %406 = vmatprep.subr.mxu0 0.0
  %407 = vmatpush1.msra.mxu0 0.0
  %408 = vmatprep.subr.mxu0 0.0
  %409 = vmatpush1.msra.mxu0 0.0
  %410 = vmatprep.subr.mxu0 0.0
  %411 = vmatpush1.msra.mxu0 0.0
  %412 = vmatprep.subr.mxu0 0.0
  %413 = vmatpush1.msra.mxu0 0.0
  %414 = vmatprep.subr.mxu0 0.0
  %415 = vmatpush1.msra.mxu0 0.0
  %416 = vmatprep.subr.mxu0 0.0
  %417 = vmatpush1.msra.mxu0 0.0
  %418 = vmatprep.subr.mxu0 0.0
  %419 = vmatpush1.msra.mxu0 %v393
  %420 = vmatprep.subr.mxu0 0.0
  %421 = vmatpush1.msra.mxu0 %v392
  %422 = vmatprep.subr.mxu0 0.0
  %423 = vmatpush1.msra.mxu0 %v391
  %424 = vmatprep.subr.mxu0 0.0
  %425 = vmatpush1.msra.mxu0 %v390
  %426 = vmatprep.subr.mxu0 0.0
  %427 = vmatpush2.msra.mxu0 0.0
  %428 = vmatprep.subr.mxu0 0.0
  %429 = vmatpush2.msra.mxu0 0.0
  %430 = vmatprep.subr.mxu0 0.0
  %431 = vmatpush2.msra.mxu0 0.0
  %432 = vmatprep.subr.mxu0 0.0
  %433 = vmatpush2.msra.mxu0 0.0
  %434 = vmatprep.subr.mxu0 0.0
  %435 = vmatpush2.msra.mxu0 0.0
  %436 = vmatprep.subr.mxu0 0.0
  %437 = vmatpush2.msra.mxu0 0.0
  %438 = vmatprep.subr.mxu0 0.0
  %439 = vmatpush2.msra.mxu0 0.0
  %440 = vmatprep.subr.mxu0 0.0
  %441 = vmatpush2.msra.mxu0 0.0
  %442 = vmatprep.subr.mxu0 0.0
  %443 = vmatpush2.msra.mxu0 0.0
  %444 = vmatprep.subr.mxu0 0.0
  %445 = vmatpush2.msra.mxu0 0.0
  %446 = vmatprep.subr.mxu0 0.0
  %447 = vmatpush2.msra.mxu0 0.0
  %448 = vmatprep.subr.mxu0 0.0
  %449 = vmatpush2.msra.mxu0 0.0
  %450 = vmatprep.subr.mxu0 0.0
  %451 = vmatpush2.msra.mxu0 0.0
  %452 = vmatprep.subr.mxu0 0.0
  %453 = vmatpush2.msra.mxu0 0.0
  %454 = vmatprep.subr.mxu0 0.0
  %455 = vmatpush2.msra.mxu0 0.0
  %456 = vmatprep.subr.mxu0 0.0
  %457 = vmatpush2.msra.mxu0 0.0
  %458 = vmatprep.mubr.f32.mxu0 0.0
  %459 = vmatmul.mubr.f32.gmra.mxu0 %v231
  %v460 = vpop.f32.mrf.mxu0
  %v461 = vadd.f32 0.0, %v460
  %v462 = vpop.f32.mrf.mxu0
  %463 = vmatprep.mubr.f32.mxu0 0.0
  %464 = vmatmul.mubr.f32.gmra.mxu0 %v234
  %v465 = vpop.f32.mrf.mxu0
  %v466 = vadd.f32 0.0, %v465
  %v467 = vpop.f32.mrf.mxu0
  %468 = vdwg.mxu0
  %vm469 = vcmask 64512
  %v471 = vsel %vm469, %v303, 0
  %v474 = vsel %vm469, %v308, 0
  %v477 = vsel %vm469, %v382, 0
  %v480 = vsel %vm469, %v387, 0
  %482 = vmatprep.subr.mxu0 0.0
  %483 = vmatpush1.xpose.msra.mxu0 0.0
  %484 = vmatprep.subr.mxu0 0.0
  %485 = vmatpush1.xpose.msra.mxu0 0.0
  %486 = vmatprep.subr.mxu0 0.0
  %487 = vmatpush1.xpose.msra.mxu0 0.0
  %488 = vmatprep.subr.mxu0 0.0
  %489 = vmatpush1.xpose.msra.mxu0 0.0
  %490 = vmatprep.subr.mxu0 0.0
  %491 = vmatpush1.xpose.msra.mxu0 0.0
  %492 = vmatprep.subr.mxu0 0.0
  %493 = vmatpush1.xpose.msra.mxu0 0.0
  %494 = vmatprep.subr.mxu0 0.0
  %495 = vmatpush1.xpose.msra.mxu0 0.0
  %496 = vmatprep.subr.mxu0 0.0
  %497 = vmatpush1.xpose.msra.mxu0 0.0
  %498 = vmatprep.subr.mxu0 0.0
  %499 = vmatpush1.xpose.msra.mxu0 0.0
  %500 = vmatprep.subr.mxu0 0.0
  %501 = vmatpush1.xpose.msra.mxu0 0.0
  %502 = vmatprep.subr.mxu0 0.0
  %503 = vmatpush1.xpose.msra.mxu0 0.0
  %504 = vmatprep.subr.mxu0 0.0
  %505 = vmatpush1.xpose.msra.mxu0 0.0
  %506 = vmatprep.subr.mxu0 0.0
  %507 = vmatpush1.xpose.msra.mxu0 0.0
  %508 = vmatprep.subr.mxu0 0.0
  %509 = vmatpush1.xpose.msra.mxu0 0.0
  %510 = vmatprep.subr.mxu0 0.0
  %511 = vmatpush1.xpose.msra.mxu0 %v480
  %512 = vmatprep.subr.mxu0 0.0
  %513 = vmatpush1.xpose.msra.mxu0 %v477
  %514 = vmatprep.subr.mxu0 0.0
  %515 = vmatpush2.xpose.msra.mxu0 0.0
  %516 = vmatprep.subr.mxu0 0.0
  %517 = vmatpush2.xpose.msra.mxu0 0.0
  %518 = vmatprep.subr.mxu0 0.0
  %519 = vmatpush2.xpose.msra.mxu0 0.0
  %520 = vmatprep.subr.mxu0 0.0
  %521 = vmatpush2.xpose.msra.mxu0 0.0
  %522 = vmatprep.subr.mxu0 0.0
  %523 = vmatpush2.xpose.msra.mxu0 0.0
  %524 = vmatprep.subr.mxu0 0.0
  %525 = vmatpush2.xpose.msra.mxu0 0.0
  %526 = vmatprep.subr.mxu0 0.0
  %527 = vmatpush2.xpose.msra.mxu0 0.0
  %528 = vmatprep.subr.mxu0 0.0
  %529 = vmatpush2.xpose.msra.mxu0 0.0
  %530 = vmatprep.subr.mxu0 0.0
  %531 = vmatpush2.xpose.msra.mxu0 0.0
  %532 = vmatprep.subr.mxu0 0.0
  %533 = vmatpush2.xpose.msra.mxu0 0.0
  %534 = vmatprep.subr.mxu0 0.0
  %535 = vmatpush2.xpose.msra.mxu0 0.0
  %536 = vmatprep.subr.mxu0 0.0
  %537 = vmatpush2.xpose.msra.mxu0 0.0
  %538 = vmatprep.subr.mxu0 0.0
  %539 = vmatpush2.xpose.msra.mxu0 0.0
  %540 = vmatprep.subr.mxu0 0.0
  %541 = vmatpush2.xpose.msra.mxu0 0.0
  %542 = vmatprep.subr.mxu0 0.0
  %543 = vmatpush2.xpose.msra.mxu0 0.0
  %544 = vmatprep.subr.mxu0 0.0
  %545 = vmatpush2.xpose.msra.mxu0 0.0
  %546 = vmatprep.mubr.f32.mxu0 0.0
  %547 = vmatmul.mubr.f32.gmra.mxu0 %v471
  %v548 = vpop.f32.mrf.mxu0
  %v549 = vadd.f32 %v177, %v548
  %v550 = vpop.f32.mrf.mxu0
  %551 = vmatprep.mubr.f32.mxu0 0.0
  %552 = vmatmul.mubr.f32.gmra.mxu0 %v474
  %v553 = vpop.f32.mrf.mxu0
  %v554 = vadd.f32 %v178, %v553
  %v555 = vpop.f32.mrf.mxu0
  %556 = vdwg.mxu0
  %vm557 = vcmask 80896
  %v558 = vsel %vm557, %v549, -inf
  %559 = vmax.xlane.f32.xlu0 %v558
  %v560 = vpop.xlane.xlu0 %559
  %vm561 = vcmask 74752
  %v562 = vsel %vm561, %v554, -inf
  %563 = vmax.xlane.f32.xlu0 %v562
  %v564 = vpop.xlane.xlu0 %563
  %v565 = vsub.f32 %v549, %v560
  %v566 = vsub.f32 %v554, %v564
  %v567 = vmul.f32 %v565, 1.442695
  %v568 = vpow.pop %v567
  %v569 = vmul.f32 %v566, 1.442695
  %v570 = vpow.pop %v569
  %v571 = vsel %vm557, %v568, 0.0
  %572 = vadd.xlane.f32.xlu0 %v571
  %v573 = vpop.xlane.xlu0 %572
  %v574 = vsel %vm561, %v570, 0.0
  %575 = vadd.xlane.f32.xlu0 %v574
  %v576 = vpop.xlane.xlu0 %575
  %v577 = vrcp.pop %v573
  %v578 = vrcp.pop %v576
  %v579 = vmul.f32 %v568, %v577
  %v580 = vmul.f32 %v570, %v578
  %s581 = scalar_lea.vmem %s6, 32
  %v582 = vld [vmem:[%s581] sm:$0xff]
  %v583 = vld [vmem:[%s581 + $0x8] sm:$0xff]
  %v584 = vld [vmem:[%s581 + $0x10] sm:$0xff]
  %v585 = vld [vmem:[%s581 + $0x18] sm:$0xff]
  %586 = vmatprep.subr.mxu0 0.0
  %587 = vmatpush1.msra.mxu0 0.0
  %588 = vmatprep.subr.mxu0 0.0
  %589 = vmatpush1.msra.mxu0 0.0
  %590 = vmatprep.subr.mxu0 0.0
  %591 = vmatpush1.msra.mxu0 0.0
  %592 = vmatprep.subr.mxu0 0.0
  %593 = vmatpush1.msra.mxu0 0.0
  %594 = vmatprep.subr.mxu0 0.0
  %595 = vmatpush1.msra.mxu0 0.0
  %596 = vmatprep.subr.mxu0 0.0
  %597 = vmatpush1.msra.mxu0 0.0
  %598 = vmatprep.subr.mxu0 0.0
  %599 = vmatpush1.msra.mxu0 0.0
  %600 = vmatprep.subr.mxu0 0.0
  %601 = vmatpush1.msra.mxu0 0.0
  %602 = vmatprep.subr.mxu0 0.0
  %603 = vmatpush1.msra.mxu0 0.0
  %604 = vmatprep.subr.mxu0 0.0
  %605 = vmatpush1.msra.mxu0 0.0
  %606 = vmatprep.subr.mxu0 0.0
  %607 = vmatpush1.msra.mxu0 0.0
  %608 = vmatprep.subr.mxu0 0.0
  %609 = vmatpush1.msra.mxu0 0.0
  %610 = vmatprep.subr.mxu0 0.0
  %611 = vmatpush1.msra.mxu0 %v585
  %612 = vmatprep.subr.mxu0 0.0
  %613 = vmatpush1.msra.mxu0 %v584
  %614 = vmatprep.subr.mxu0 0.0
  %615 = vmatpush1.msra.mxu0 %v583
  %616 = vmatprep.subr.mxu0 0.0
  %617 = vmatpush1.msra.mxu0 %v582
  %618 = vmatprep.subr.mxu0 0.0
  %619 = vmatpush2.msra.mxu0 0.0
  %620 = vmatprep.subr.mxu0 0.0
  %621 = vmatpush2.msra.mxu0 0.0
  %622 = vmatprep.subr.mxu0 0.0
  %623 = vmatpush2.msra.mxu0 0.0
  %624 = vmatprep.subr.mxu0 0.0
  %625 = vmatpush2.msra.mxu0 0.0
  %626 = vmatprep.subr.mxu0 0.0
  %627 = vmatpush2.msra.mxu0 0.0
  %628 = vmatprep.subr.mxu0 0.0
  %629 = vmatpush2.msra.mxu0 0.0
  %630 = vmatprep.subr.mxu0 0.0
  %631 = vmatpush2.msra.mxu0 0.0
  %632 = vmatprep.subr.mxu0 0.0
  %633 = vmatpush2.msra.mxu0 0.0
  %634 = vmatprep.subr.mxu0 0.0
  %635 = vmatpush2.msra.mxu0 0.0
  %636 = vmatprep.subr.mxu0 0.0
  %637 = vmatpush2.msra.mxu0 0.0
  %638 = vmatprep.subr.mxu0 0.0
  %639 = vmatpush2.msra.mxu0 0.0
  %640 = vmatprep.subr.mxu0 0.0
  %641 = vmatpush2.msra.mxu0 0.0
  %642 = vmatprep.subr.mxu0 0.0
  %643 = vmatpush2.msra.mxu0 0.0
  %644 = vmatprep.subr.mxu0 0.0
  %645 = vmatpush2.msra.mxu0 0.0
  %646 = vmatprep.subr.mxu0 0.0
  %647 = vmatpush2.msra.mxu0 0.0
  %648 = vmatprep.subr.mxu0 0.0
  %649 = vmatpush2.msra.mxu0 0.0
  %650 = vmatprep.mubr.f32.mxu0 0.0
  %651 = vmatmul.mubr.f32.gmra.mxu0 %v231
  %v652 = vpop.f32.mrf.mxu0
  %v653 = vadd.f32 0.0, %v652
  %v654 = vpop.f32.mrf.mxu0
  %655 = vmatprep.mubr.f32.mxu0 0.0
  %656 = vmatmul.mubr.f32.gmra.mxu0 %v234
  %v657 = vpop.f32.mrf.mxu0
  %v658 = vadd.f32 0.0, %v657
  %v659 = vpop.f32.mrf.mxu0
  %660 = vdwg.mxu0
  %s661 = scalar_lea.vmem %s7, 32
  %v662 = vld [vmem:[%s661] sm:$0xff]
  %v663 = vld [vmem:[%s661 + $0x8] sm:$0xff]
  %v664 = vld [vmem:[%s661 + $0x10] sm:$0xff]
  %v665 = vld [vmem:[%s661 + $0x18] sm:$0xff]
  %666 = vmatprep.subr.mxu0 0.0
  %667 = vmatpush1.msra.mxu0 0.0
  %668 = vmatprep.subr.mxu0 0.0
  %669 = vmatpush1.msra.mxu0 0.0
  %670 = vmatprep.subr.mxu0 0.0
  %671 = vmatpush1.msra.mxu0 0.0
  %672 = vmatprep.subr.mxu0 0.0
  %673 = vmatpush1.msra.mxu0 0.0
  %674 = vmatprep.subr.mxu0 0.0
  %675 = vmatpush1.msra.mxu0 0.0
  %676 = vmatprep.subr.mxu0 0.0
  %677 = vmatpush1.msra.mxu0 0.0
  %678 = vmatprep.subr.mxu0 0.0
  %679 = vmatpush1.msra.mxu0 0.0
  %680 = vmatprep.subr.mxu0 0.0
  %681 = vmatpush1.msra.mxu0 0.0
  %682 = vmatprep.subr.mxu0 0.0
  %683 = vmatpush1.msra.mxu0 0.0
  %684 = vmatprep.subr.mxu0 0.0
  %685 = vmatpush1.msra.mxu0 0.0
  %686 = vmatprep.subr.mxu0 0.0
  %687 = vmatpush1.msra.mxu0 0.0
  %688 = vmatprep.subr.mxu0 0.0
  %689 = vmatpush1.msra.mxu0 0.0
  %690 = vmatprep.subr.mxu0 0.0
  %691 = vmatpush1.msra.mxu0 %v665
  %692 = vmatprep.subr.mxu0 0.0
  %693 = vmatpush1.msra.mxu0 %v664
  %694 = vmatprep.subr.mxu0 0.0
  %695 = vmatpush1.msra.mxu0 %v663
  %696 = vmatprep.subr.mxu0 0.0
  %697 = vmatpush1.msra.mxu0 %v662
  %698 = vmatprep.subr.mxu0 0.0
  %699 = vmatpush2.msra.mxu0 0.0
  %700 = vmatprep.subr.mxu0 0.0
  %701 = vmatpush2.msra.mxu0 0.0
  %702 = vmatprep.subr.mxu0 0.0
  %703 = vmatpush2.msra.mxu0 0.0
  %704 = vmatprep.subr.mxu0 0.0
  %705 = vmatpush2.msra.mxu0 0.0
  %706 = vmatprep.subr.mxu0 0.0
  %707 = vmatpush2.msra.mxu0 0.0
  %708 = vmatprep.subr.mxu0 0.0
  %709 = vmatpush2.msra.mxu0 0.0
  %710 = vmatprep.subr.mxu0 0.0
  %711 = vmatpush2.msra.mxu0 0.0
  %712 = vmatprep.subr.mxu0 0.0
  %713 = vmatpush2.msra.mxu0 0.0
  %714 = vmatprep.subr.mxu0 0.0
  %715 = vmatpush2.msra.mxu0 0.0
  %716 = vmatprep.subr.mxu0 0.0
  %717 = vmatpush2.msra.mxu0 0.0
  %718 = vmatprep.subr.mxu0 0.0
  %719 = vmatpush2.msra.mxu0 0.0
  %720 = vmatprep.subr.mxu0 0.0
  %721 = vmatpush2.msra.mxu0 0.0
  %722 = vmatprep.subr.mxu0 0.0
  %723 = vmatpush2.msra.mxu0 0.0
  %724 = vmatprep.subr.mxu0 0.0
  %725 = vmatpush2.msra.mxu0 0.0
  %726 = vmatprep.subr.mxu0 0.0
  %727 = vmatpush2.msra.mxu0 0.0
  %728 = vmatprep.subr.mxu0 0.0
  %729 = vmatpush2.msra.mxu0 0.0
  %730 = vmatprep.mubr.f32.mxu0 0.0
  %731 = vmatmul.mubr.f32.gmra.mxu0 %v231
  %v732 = vpop.f32.mrf.mxu0
  %v733 = vadd.f32 0.0, %v732
  %v734 = vpop.f32.mrf.mxu0
  %735 = vmatprep.mubr.f32.mxu0 0.0
  %736 = vmatmul.mubr.f32.gmra.mxu0 %v234
  %v737 = vpop.f32.mrf.mxu0
  %v738 = vadd.f32 0.0, %v737
  %v739 = vpop.f32.mrf.mxu0
  %740 = vdwg.mxu0
  %s741 = scalar_lea.vmem %s8, 32
  %v742 = vld [vmem:[%s741] sm:$0xff]
  %v743 = vld [vmem:[%s741 + $0x8] sm:$0xff]
  %v744 = vld [vmem:[%s741 + $0x10] sm:$0xff]
  %v745 = vld [vmem:[%s741 + $0x18] sm:$0xff]
  %746 = vmatprep.subr.mxu0 0.0
  %747 = vmatpush1.msra.mxu0 0.0
  %748 = vmatprep.subr.mxu0 0.0
  %749 = vmatpush1.msra.mxu0 0.0
  %750 = vmatprep.subr.mxu0 0.0
  %751 = vmatpush1.msra.mxu0 0.0
  %752 = vmatprep.subr.mxu0 0.0
  %753 = vmatpush1.msra.mxu0 0.0
  %754 = vmatprep.subr.mxu0 0.0
  %755 = vmatpush1.msra.mxu0 0.0
  %756 = vmatprep.subr.mxu0 0.0
  %757 = vmatpush1.msra.mxu0 0.0
  %758 = vmatprep.subr.mxu0 0.0
  %759 = vmatpush1.msra.mxu0 0.0
  %760 = vmatprep.subr.mxu0 0.0
  %761 = vmatpush1.msra.mxu0 0.0
  %762 = vmatprep.subr.mxu0 0.0
  %763 = vmatpush1.msra.mxu0 0.0
  %764 = vmatprep.subr.mxu0 0.0
  %765 = vmatpush1.msra.mxu0 0.0
  %766 = vmatprep.subr.mxu0 0.0
  %767 = vmatpush1.msra.mxu0 0.0
  %768 = vmatprep.subr.mxu0 0.0
  %769 = vmatpush1.msra.mxu0 0.0
  %770 = vmatprep.subr.mxu0 0.0
  %771 = vmatpush1.msra.mxu0 %v745
  %772 = vmatprep.subr.mxu0 0.0
  %773 = vmatpush1.msra.mxu0 %v744
  %774 = vmatprep.subr.mxu0 0.0
  %775 = vmatpush1.msra.mxu0 %v743
  %776 = vmatprep.subr.mxu0 0.0
  %777 = vmatpush1.msra.mxu0 %v742
  %778 = vmatprep.subr.mxu0 0.0
  %779 = vmatpush2.msra.mxu0 0.0
  %780 = vmatprep.subr.mxu0 0.0
  %781 = vmatpush2.msra.mxu0 0.0
  %782 = vmatprep.subr.mxu0 0.0
  %783 = vmatpush2.msra.mxu0 0.0
  %784 = vmatprep.subr.mxu0 0.0
  %785 = vmatpush2.msra.mxu0 0.0
  %786 = vmatprep.subr.mxu0 0.0
  %787 = vmatpush2.msra.mxu0 0.0
  %788 = vmatprep.subr.mxu0 0.0
  %789 = vmatpush2.msra.mxu0 0.0
  %790 = vmatprep.subr.mxu0 0.0
  %791 = vmatpush2.msra.mxu0 0.0
  %792 = vmatprep.subr.mxu0 0.0
  %793 = vmatpush2.msra.mxu0 0.0
  %794 = vmatprep.subr.mxu0 0.0
  %795 = vmatpush2.msra.mxu0 0.0
  %796 = vmatprep.subr.mxu0 0.0
  %797 = vmatpush2.msra.mxu0 0.0
  %798 = vmatprep.subr.mxu0 0.0
  %799 = vmatpush2.msra.mxu0 0.0
  %800 = vmatprep.subr.mxu0 0.0
  %801 = vmatpush2.msra.mxu0 0.0
  %802 = vmatprep.subr.mxu0 0.0
  %803 = vmatpush2.msra.mxu0 0.0
  %804 = vmatprep.subr.mxu0 0.0
  %805 = vmatpush2.msra.mxu0 0.0
  %806 = vmatprep.subr.mxu0 0.0
  %807 = vmatpush2.msra.mxu0 0.0
  %808 = vmatprep.subr.mxu0 0.0
  %809 = vmatpush2.msra.mxu0 0.0
  %810 = vmatprep.mubr.f32.mxu0 0.0
  %811 = vmatmul.mubr.f32.gmra.mxu0 %v231
  %v812 = vpop.f32.mrf.mxu0
  %v813 = vadd.f32 0.0, %v812
  %v814 = vpop.f32.mrf.mxu0
  %815 = vmatprep.mubr.f32.mxu0 0.0
  %816 = vmatmul.mubr.f32.gmra.mxu0 %v234
  %v817 = vpop.f32.mrf.mxu0
  %v818 = vadd.f32 0.0, %v817
  %v819 = vpop.f32.mrf.mxu0
  %820 = vdwg.mxu0
  %v822 = vsel %vm469, %v653, 0
  %v825 = vsel %vm469, %v658, 0
  %v828 = vsel %vm469, %v733, 0
  %v831 = vsel %vm469, %v738, 0
  %833 = vmatprep.subr.mxu0 0.0
  %834 = vmatpush1.xpose.msra.mxu0 0.0
  %835 = vmatprep.subr.mxu0 0.0
  %836 = vmatpush1.xpose.msra.mxu0 0.0
  %837 = vmatprep.subr.mxu0 0.0
  %838 = vmatpush1.xpose.msra.mxu0 0.0
  %839 = vmatprep.subr.mxu0 0.0
  %840 = vmatpush1.xpose.msra.mxu0 0.0
  %841 = vmatprep.subr.mxu0 0.0
  %842 = vmatpush1.xpose.msra.mxu0 0.0
  %843 = vmatprep.subr.mxu0 0.0
  %844 = vmatpush1.xpose.msra.mxu0 0.0
  %845 = vmatprep.subr.mxu0 0.0
  %846 = vmatpush1.xpose.msra.mxu0 0.0
  %847 = vmatprep.subr.mxu0 0.0
  %848 = vmatpush1.xpose.msra.mxu0 0.0
  %849 = vmatprep.subr.mxu0 0.0
  %850 = vmatpush1.xpose.msra.mxu0 0.0
  %851 = vmatprep.subr.mxu0 0.0
  %852 = vmatpush1.xpose.msra.mxu0 0.0
  %853 = vmatprep.subr.mxu0 0.0
  %854 = vmatpush1.xpose.msra.mxu0 0.0
  %855 = vmatprep.subr.mxu0 0.0
  %856 = vmatpush1.xpose.msra.mxu0 0.0
  %857 = vmatprep.subr.mxu0 0.0
  %858 = vmatpush1.xpose.msra.mxu0 0.0
  %859 = vmatprep.subr.mxu0 0.0
  %860 = vmatpush1.xpose.msra.mxu0 0.0
  %861 = vmatprep.subr.mxu0 0.0
  %862 = vmatpush1.xpose.msra.mxu0 %v831
  %863 = vmatprep.subr.mxu0 0.0
  %864 = vmatpush1.xpose.msra.mxu0 %v828
  %865 = vmatprep.subr.mxu0 0.0
  %866 = vmatpush2.xpose.msra.mxu0 0.0
  %867 = vmatprep.subr.mxu0 0.0
  %868 = vmatpush2.xpose.msra.mxu0 0.0
  %869 = vmatprep.subr.mxu0 0.0
  %870 = vmatpush2.xpose.msra.mxu0 0.0
  %871 = vmatprep.subr.mxu0 0.0
  %872 = vmatpush2.xpose.msra.mxu0 0.0
  %873 = vmatprep.subr.mxu0 0.0
  %874 = vmatpush2.xpose.msra.mxu0 0.0
  %875 = vmatprep.subr.mxu0 0.0
  %876 = vmatpush2.xpose.msra.mxu0 0.0
  %877 = vmatprep.subr.mxu0 0.0
  %878 = vmatpush2.xpose.msra.mxu0 0.0
  %879 = vmatprep.subr.mxu0 0.0
  %880 = vmatpush2.xpose.msra.mxu0 0.0
  %881 = vmatprep.subr.mxu0 0.0
  %882 = vmatpush2.xpose.msra.mxu0 0.0
  %883 = vmatprep.subr.mxu0 0.0
  %884 = vmatpush2.xpose.msra.mxu0 0.0
  %885 = vmatprep.subr.mxu0 0.0
  %886 = vmatpush2.xpose.msra.mxu0 0.0
  %887 = vmatprep.subr.mxu0 0.0
  %888 = vmatpush2.xpose.msra.mxu0 0.0
  %889 = vmatprep.subr.mxu0 0.0
  %890 = vmatpush2.xpose.msra.mxu0 0.0
  %891 = vmatprep.subr.mxu0 0.0
  %892 = vmatpush2.xpose.msra.mxu0 0.0
  %893 = vmatprep.subr.mxu0 0.0
  %894 = vmatpush2.xpose.msra.mxu0 0.0
  %895 = vmatprep.subr.mxu0 0.0
  %896 = vmatpush2.xpose.msra.mxu0 0.0
  %897 = vmatprep.mubr.f32.mxu0 0.0
  %898 = vmatmul.mubr.f32.gmra.mxu0 %v822
  %v899 = vpop.f32.mrf.mxu0
  %v900 = vadd.f32 %v177, %v899
  %v901 = vpop.f32.mrf.mxu0
  %902 = vmatprep.mubr.f32.mxu0 0.0
  %903 = vmatmul.mubr.f32.gmra.mxu0 %v825
  %v904 = vpop.f32.mrf.mxu0
  %v905 = vadd.f32 %v178, %v904
  %v906 = vpop.f32.mrf.mxu0
  %907 = vdwg.mxu0
  %v908 = vsel %vm557, %v900, -inf
  %909 = vmax.xlane.f32.xlu0 %v908
  %v910 = vpop.xlane.xlu0 %909
  %v911 = vsel %vm561, %v905, -inf
  %912 = vmax.xlane.f32.xlu0 %v911
  %v913 = vpop.xlane.xlu0 %912
  %v914 = vsub.f32 %v900, %v910
  %v915 = vsub.f32 %v905, %v913
  %v916 = vmul.f32 %v914, 1.442695
  %v917 = vpow.pop %v916
  %v918 = vmul.f32 %v915, 1.442695
  %v919 = vpow.pop %v918
  %v920 = vsel %vm557, %v917, 0.0
  %921 = vadd.xlane.f32.xlu0 %v920
  %v922 = vpop.xlane.xlu0 %921
  %v923 = vsel %vm561, %v919, 0.0
  %924 = vadd.xlane.f32.xlu0 %v923
  %v925 = vpop.xlane.xlu0 %924
  %v926 = vrcp.pop %v922
  %v927 = vrcp.pop %v925
  %v928 = vmul.f32 %v917, %v926
  %v929 = vmul.f32 %v919, %v927
  %v931 = vsel %vm557, %v928, 0
  %v934 = vsel %vm557, %v929, 0
  %vm936 = vcmask 1041408
  %v938 = vsel %vm936, %v818, 0
  %940 = vmatprep.subr.mxu0 0.0
  %941 = vmatpush1.msra.mxu0 0.0
  %942 = vmatprep.subr.mxu0 0.0
  %943 = vmatpush1.msra.mxu0 0.0
  %944 = vmatprep.subr.mxu0 0.0
  %945 = vmatpush1.msra.mxu0 0.0
  %946 = vmatprep.subr.mxu0 0.0
  %947 = vmatpush1.msra.mxu0 0.0
  %948 = vmatprep.subr.mxu0 0.0
  %949 = vmatpush1.msra.mxu0 0.0
  %950 = vmatprep.subr.mxu0 0.0
  %951 = vmatpush1.msra.mxu0 0.0
  %952 = vmatprep.subr.mxu0 0.0
  %953 = vmatpush1.msra.mxu0 0.0
  %954 = vmatprep.subr.mxu0 0.0
  %955 = vmatpush1.msra.mxu0 0.0
  %956 = vmatprep.subr.mxu0 0.0
  %957 = vmatpush1.msra.mxu0 0.0
  %958 = vmatprep.subr.mxu0 0.0
  %959 = vmatpush1.msra.mxu0 0.0
  %960 = vmatprep.subr.mxu0 0.0
  %961 = vmatpush1.msra.mxu0 0.0
  %962 = vmatprep.subr.mxu0 0.0
  %963 = vmatpush1.msra.mxu0 0.0
  %964 = vmatprep.subr.mxu0 0.0
  %965 = vmatpush1.msra.mxu0 0.0
  %966 = vmatprep.subr.mxu0 0.0
  %967 = vmatpush1.msra.mxu0 0.0
  %968 = vmatprep.subr.mxu0 0.0
  %969 = vmatpush1.msra.mxu0 %v938
  %970 = vmatprep.subr.mxu0 0.0
  %971 = vmatpush1.msra.mxu0 %v813
  %972 = vmatprep.subr.mxu0 0.0
  %973 = vmatpush2.msra.mxu0 0.0
  %974 = vmatprep.subr.mxu0 0.0
  %975 = vmatpush2.msra.mxu0 0.0
  %976 = vmatprep.subr.mxu0 0.0
  %977 = vmatpush2.msra.mxu0 0.0
  %978 = vmatprep.subr.mxu0 0.0
  %979 = vmatpush2.msra.mxu0 0.0
  %980 = vmatprep.subr.mxu0 0.0
  %981 = vmatpush2.msra.mxu0 0.0
  %982 = vmatprep.subr.mxu0 0.0
  %983 = vmatpush2.msra.mxu0 0.0
  %984 = vmatprep.subr.mxu0 0.0
  %985 = vmatpush2.msra.mxu0 0.0
  %986 = vmatprep.subr.mxu0 0.0
  %987 = vmatpush2.msra.mxu0 0.0
  %988 = vmatprep.subr.mxu0 0.0
  %989 = vmatpush2.msra.mxu0 0.0
  %990 = vmatprep.subr.mxu0 0.0
  %991 = vmatpush2.msra.mxu0 0.0
  %992 = vmatprep.subr.mxu0 0.0
  %993 = vmatpush2.msra.mxu0 0.0
  %994 = vmatprep.subr.mxu0 0.0
  %995 = vmatpush2.msra.mxu0 0.0
  %996 = vmatprep.subr.mxu0 0.0
  %997 = vmatpush2.msra.mxu0 0.0
  %998 = vmatprep.subr.mxu0 0.0
  %999 = vmatpush2.msra.mxu0 0.0
  %1000 = vmatprep.subr.mxu0 0.0
  %1001 = vmatpush2.msra.mxu0 0.0
  %1002 = vmatprep.subr.mxu0 0.0
  %1003 = vmatpush2.msra.mxu0 0.0
  %1004 = vmatprep.mubr.f32.mxu0 0.0
  %1005 = vmatmul.mubr.f32.gmra.mxu0 %v931
  %v1006 = vpop.f32.mrf.mxu0
  %v1007 = vadd.f32 0.0, %v1006
  %v1008 = vpop.f32.mrf.mxu0
  %1009 = vmatprep.mubr.f32.mxu0 0.0
  %1010 = vmatmul.mubr.f32.gmra.mxu0 %v934
  %v1011 = vpop.f32.mrf.mxu0
  %v1012 = vadd.f32 0.0, %v1011
  %v1013 = vpop.f32.mrf.mxu0
  %1014 = vdwg.mxu0
  %v1016 = vsel %vm557, %v579, 0
  %v1019 = vsel %vm557, %v580, 0
  %v1022 = vsel %vm936, %v466, 0
  %1024 = vmatprep.subr.mxu0 0.0
  %1025 = vmatpush1.msra.mxu0 0.0
  %1026 = vmatprep.subr.mxu0 0.0
  %1027 = vmatpush1.msra.mxu0 0.0
  %1028 = vmatprep.subr.mxu0 0.0
  %1029 = vmatpush1.msra.mxu0 0.0
  %1030 = vmatprep.subr.mxu0 0.0
  %1031 = vmatpush1.msra.mxu0 0.0
  %1032 = vmatprep.subr.mxu0 0.0
  %1033 = vmatpush1.msra.mxu0 0.0
  %1034 = vmatprep.subr.mxu0 0.0
  %1035 = vmatpush1.msra.mxu0 0.0
  %1036 = vmatprep.subr.mxu0 0.0
  %1037 = vmatpush1.msra.mxu0 0.0
  %1038 = vmatprep.subr.mxu0 0.0
  %1039 = vmatpush1.msra.mxu0 0.0
  %1040 = vmatprep.subr.mxu0 0.0
  %1041 = vmatpush1.msra.mxu0 0.0
  %1042 = vmatprep.subr.mxu0 0.0
  %1043 = vmatpush1.msra.mxu0 0.0
  %1044 = vmatprep.subr.mxu0 0.0
  %1045 = vmatpush1.msra.mxu0 0.0
  %1046 = vmatprep.subr.mxu0 0.0
  %1047 = vmatpush1.msra.mxu0 0.0
  %1048 = vmatprep.subr.mxu0 0.0
  %1049 = vmatpush1.msra.mxu0 0.0
  %1050 = vmatprep.subr.mxu0 0.0
  %1051 = vmatpush1.msra.mxu0 0.0
  %1052 = vmatprep.subr.mxu0 0.0
  %1053 = vmatpush1.msra.mxu0 %v1022
  %1054 = vmatprep.subr.mxu0 0.0
  %1055 = vmatpush1.msra.mxu0 %v461
  %1056 = vmatprep.subr.mxu0 0.0
  %1057 = vmatpush2.msra.mxu0 0.0
  %1058 = vmatprep.subr.mxu0 0.0
  %1059 = vmatpush2.msra.mxu0 0.0
  %1060 = vmatprep.subr.mxu0 0.0
  %1061 = vmatpush2.msra.mxu0 0.0
  %1062 = vmatprep.subr.mxu0 0.0
  %1063 = vmatpush2.msra.mxu0 0.0
  %1064 = vmatprep.subr.mxu0 0.0
  %1065 = vmatpush2.msra.mxu0 0.0
  %1066 = vmatprep.subr.mxu0 0.0
  %1067 = vmatpush2.msra.mxu0 0.0
  %1068 = vmatprep.subr.mxu0 0.0
  %1069 = vmatpush2.msra.mxu0 0.0
  %1070 = vmatprep.subr.mxu0 0.0
  %1071 = vmatpush2.msra.mxu0 0.0
  %1072 = vmatprep.subr.mxu0 0.0
  %1073 = vmatpush2.msra.mxu0 0.0
  %1074 = vmatprep.subr.mxu0 0.0
  %1075 = vmatpush2.msra.mxu0 0.0
  %1076 = vmatprep.subr.mxu0 0.0
  %1077 = vmatpush2.msra.mxu0 0.0
  %1078 = vmatprep.subr.mxu0 0.0
  %1079 = vmatpush2.msra.mxu0 0.0
  %1080 = vmatprep.subr.mxu0 0.0
  %1081 = vmatpush2.msra.mxu0 0.0
  %1082 = vmatprep.subr.mxu0 0.0
  %1083 = vmatpush2.msra.mxu0 0.0
  %1084 = vmatprep.subr.mxu0 0.0
  %1085 = vmatpush2.msra.mxu0 0.0
  %1086 = vmatprep.subr.mxu0 0.0
  %1087 = vmatpush2.msra.mxu0 0.0
  %1088 = vmatprep.mubr.f32.mxu0 0.0
  %1089 = vmatmul.mubr.f32.gmra.mxu0 %v1016
  %v1090 = vpop.f32.mrf.mxu0
  %v1091 = vadd.f32 %v1007, %v1090
  %v1092 = vpop.f32.mrf.mxu0
  %1093 = vmatprep.mubr.f32.mxu0 0.0
  %1094 = vmatmul.mubr.f32.gmra.mxu0 %v1019
  %v1095 = vpop.f32.mrf.mxu0
  %v1096 = vadd.f32 %v1012, %v1095
  %v1097 = vpop.f32.mrf.mxu0
  %1098 = vdwg.mxu0
  %s1099 = scalar_lea.vmem %s6, 64
  %v1100 = vld [vmem:[%s1099] sm:$0xff]
  %v1101 = vld [vmem:[%s1099 + $0x8] sm:$0xff]
  %v1102 = vld [vmem:[%s1099 + $0x10] sm:$0xff]
  %v1103 = vld [vmem:[%s1099 + $0x18] sm:$0xff]
  %1104 = vmatprep.subr.mxu0 0.0
  %1105 = vmatpush1.msra.mxu0 0.0
  %1106 = vmatprep.subr.mxu0 0.0
  %1107 = vmatpush1.msra.mxu0 0.0
  %1108 = vmatprep.subr.mxu0 0.0
  %1109 = vmatpush1.msra.mxu0 0.0
  %1110 = vmatprep.subr.mxu0 0.0
  %1111 = vmatpush1.msra.mxu0 0.0
  %1112 = vmatprep.subr.mxu0 0.0
  %1113 = vmatpush1.msra.mxu0 0.0
  %1114 = vmatprep.subr.mxu0 0.0
  %1115 = vmatpush1.msra.mxu0 0.0
  %1116 = vmatprep.subr.mxu0 0.0
  %1117 = vmatpush1.msra.mxu0 0.0
  %1118 = vmatprep.subr.mxu0 0.0
  %1119 = vmatpush1.msra.mxu0 0.0
  %1120 = vmatprep.subr.mxu0 0.0
  %1121 = vmatpush1.msra.mxu0 0.0
  %1122 = vmatprep.subr.mxu0 0.0
  %1123 = vmatpush1.msra.mxu0 0.0
  %1124 = vmatprep.subr.mxu0 0.0
  %1125 = vmatpush1.msra.mxu0 0.0
  %1126 = vmatprep.subr.mxu0 0.0
  %1127 = vmatpush1.msra.mxu0 0.0
  %1128 = vmatprep.subr.mxu0 0.0
  %1129 = vmatpush1.msra.mxu0 %v1103
  %1130 = vmatprep.subr.mxu0 0.0
  %1131 = vmatpush1.msra.mxu0 %v1102
  %1132 = vmatprep.subr.mxu0 0.0
  %1133 = vmatpush1.msra.mxu0 %v1101
  %1134 = vmatprep.subr.mxu0 0.0
  %1135 = vmatpush1.msra.mxu0 %v1100
  %1136 = vmatprep.subr.mxu0 0.0
  %1137 = vmatpush2.msra.mxu0 0.0
  %1138 = vmatprep.subr.mxu0 0.0
  %1139 = vmatpush2.msra.mxu0 0.0
  %1140 = vmatprep.subr.mxu0 0.0
  %1141 = vmatpush2.msra.mxu0 0.0
  %1142 = vmatprep.subr.mxu0 0.0
  %1143 = vmatpush2.msra.mxu0 0.0
  %1144 = vmatprep.subr.mxu0 0.0
  %1145 = vmatpush2.msra.mxu0 0.0
  %1146 = vmatprep.subr.mxu0 0.0
  %1147 = vmatpush2.msra.mxu0 0.0
  %1148 = vmatprep.subr.mxu0 0.0
  %1149 = vmatpush2.msra.mxu0 0.0
  %1150 = vmatprep.subr.mxu0 0.0
  %1151 = vmatpush2.msra.mxu0 0.0
  %1152 = vmatprep.subr.mxu0 0.0
  %1153 = vmatpush2.msra.mxu0 0.0
  %1154 = vmatprep.subr.mxu0 0.0
  %1155 = vmatpush2.msra.mxu0 0.0
  %1156 = vmatprep.subr.mxu0 0.0
  %1157 = vmatpush2.msra.mxu0 0.0
  %1158 = vmatprep.subr.mxu0 0.0
  %1159 = vmatpush2.msra.mxu0 0.0
  %1160 = vmatprep.subr.mxu0 0.0
  %1161 = vmatpush2.msra.mxu0 0.0
  %1162 = vmatprep.subr.mxu0 0.0
  %1163 = vmatpush2.msra.mxu0 0.0
  %1164 = vmatprep.subr.mxu0 0.0
  %1165 = vmatpush2.msra.mxu0 0.0
  %1166 = vmatprep.subr.mxu0 0.0
  %1167 = vmatpush2.msra.mxu0 0.0
  %1168 = vmatprep.mubr.f32.mxu0 0.0
  %1169 = vmatmul.mubr.f32.gmra.mxu0 %v231
  %v1170 = vpop.f32.mrf.mxu0
  %v1171 = vadd.f32 0.0, %v1170
  %v1172 = vpop.f32.mrf.mxu0
  %1173 = vmatprep.mubr.f32.mxu0 0.0
  %1174 = vmatmul.mubr.f32.gmra.mxu0 %v234
  %v1175 = vpop.f32.mrf.mxu0
  %v1176 = vadd.f32 0.0, %v1175
  %v1177 = vpop.f32.mrf.mxu0
  %1178 = vdwg.mxu0
  %s1179 = scalar_lea.vmem %s7, 64
  %v1180 = vld [vmem:[%s1179] sm:$0xff]
  %v1181 = vld [vmem:[%s1179 + $0x8] sm:$0xff]
  %v1182 = vld [vmem:[%s1179 + $0x10] sm:$0xff]
  %v1183 = vld [vmem:[%s1179 + $0x18] sm:$0xff]
  %1184 = vmatprep.subr.mxu0 0.0
  %1185 = vmatpush1.msra.mxu0 0.0
  %1186 = vmatprep.subr.mxu0 0.0
  %1187 = vmatpush1.msra.mxu0 0.0
  %1188 = vmatprep.subr.mxu0 0.0
  %1189 = vmatpush1.msra.mxu0 0.0
  %1190 = vmatprep.subr.mxu0 0.0
  %1191 = vmatpush1.msra.mxu0 0.0
  %1192 = vmatprep.subr.mxu0 0.0
  %1193 = vmatpush1.msra.mxu0 0.0
  %1194 = vmatprep.subr.mxu0 0.0
  %1195 = vmatpush1.msra.mxu0 0.0
  %1196 = vmatprep.subr.mxu0 0.0
  %1197 = vmatpush1.msra.mxu0 0.0
  %1198 = vmatprep.subr.mxu0 0.0
  %1199 = vmatpush1.msra.mxu0 0.0
  %1200 = vmatprep.subr.mxu0 0.0
  %1201 = vmatpush1.msra.mxu0 0.0
  %1202 = vmatprep.subr.mxu0 0.0
  %1203 = vmatpush1.msra.mxu0 0.0
  %1204 = vmatprep.subr.mxu0 0.0
  %1205 = vmatpush1.msra.mxu0 0.0
  %1206 = vmatprep.subr.mxu0 0.0
  %1207 = vmatpush1.msra.mxu0 0.0
  %1208 = vmatprep.subr.mxu0 0.0
  %1209 = vmatpush1.msra.mxu0 %v1183
  %1210 = vmatprep.subr.mxu0 0.0
  %1211 = vmatpush1.msra.mxu0 %v1182
  %1212 = vmatprep.subr.mxu0 0.0
  %1213 = vmatpush1.msra.mxu0 %v1181
  %1214 = vmatprep.subr.mxu0 0.0
  %1215 = vmatpush1.msra.mxu0 %v1180
  %1216 = vmatprep.subr.mxu0 0.0
  %1217 = vmatpush2.msra.mxu0 0.0
  %1218 = vmatprep.subr.mxu0 0.0
  %1219 = vmatpush2.msra.mxu0 0.0
  %1220 = vmatprep.subr.mxu0 0.0
  %1221 = vmatpush2.msra.mxu0 0.0
  %1222 = vmatprep.subr.mxu0 0.0
  %1223 = vmatpush2.msra.mxu0 0.0
  %1224 = vmatprep.subr.mxu0 0.0
  %1225 = vmatpush2.msra.mxu0 0.0
  %1226 = vmatprep.subr.mxu0 0.0
  %1227 = vmatpush2.msra.mxu0 0.0
  %1228 = vmatprep.subr.mxu0 0.0
  %1229 = vmatpush2.msra.mxu0 0.0
  %1230 = vmatprep.subr.mxu0 0.0
  %1231 = vmatpush2.msra.mxu0 0.0
  %1232 = vmatprep.subr.mxu0 0.0
  %1233 = vmatpush2.msra.mxu0 0.0
  %1234 = vmatprep.subr.mxu0 0.0
  %1235 = vmatpush2.msra.mxu0 0.0
  %1236 = vmatprep.subr.mxu0 0.0
  %1237 = vmatpush2.msra.mxu0 0.0
  %1238 = vmatprep.subr.mxu0 0.0
  %1239 = vmatpush2.msra.mxu0 0.0
  %1240 = vmatprep.subr.mxu0 0.0
  %1241 = vmatpush2.msra.mxu0 0.0
  %1242 = vmatprep.subr.mxu0 0.0
  %1243 = vmatpush2.msra.mxu0 0.0
  %1244 = vmatprep.subr.mxu0 0.0
  %1245 = vmatpush2.msra.mxu0 0.0
  %1246 = vmatprep.subr.mxu0 0.0
  %1247 = vmatpush2.msra.mxu0 0.0
  %1248 = vmatprep.mubr.f32.mxu0 0.0
  %1249 = vmatmul.mubr.f32.gmra.mxu0 %v231
  %v1250 = vpop.f32.mrf.mxu0
  %v1251 = vadd.f32 0.0, %v1250
  %v1252 = vpop.f32.mrf.mxu0
  %1253 = vmatprep.mubr.f32.mxu0 0.0
  %1254 = vmatmul.mubr.f32.gmra.mxu0 %v234
  %v1255 = vpop.f32.mrf.mxu0
  %v1256 = vadd.f32 0.0, %v1255
  %v1257 = vpop.f32.mrf.mxu0
  %1258 = vdwg.mxu0
  %s1259 = scalar_lea.vmem %s8, 64
  %v1260 = vld [vmem:[%s1259] sm:$0xff]
  %v1261 = vld [vmem:[%s1259 + $0x8] sm:$0xff]
  %v1262 = vld [vmem:[%s1259 + $0x10] sm:$0xff]
  %v1263 = vld [vmem:[%s1259 + $0x18] sm:$0xff]
  %1264 = vmatprep.subr.mxu0 0.0
  %1265 = vmatpush1.msra.mxu0 0.0
  %1266 = vmatprep.subr.mxu0 0.0
  %1267 = vmatpush1.msra.mxu0 0.0
  %1268 = vmatprep.subr.mxu0 0.0
  %1269 = vmatpush1.msra.mxu0 0.0
  %1270 = vmatprep.subr.mxu0 0.0
  %1271 = vmatpush1.msra.mxu0 0.0
  %1272 = vmatprep.subr.mxu0 0.0
  %1273 = vmatpush1.msra.mxu0 0.0
  %1274 = vmatprep.subr.mxu0 0.0
  %1275 = vmatpush1.msra.mxu0 0.0
  %1276 = vmatprep.subr.mxu0 0.0
  %1277 = vmatpush1.msra.mxu0 0.0
  %1278 = vmatprep.subr.mxu0 0.0
  %1279 = vmatpush1.msra.mxu0 0.0
  %1280 = vmatprep.subr.mxu0 0.0
  %1281 = vmatpush1.msra.mxu0 0.0
  %1282 = vmatprep.subr.mxu0 0.0
  %1283 = vmatpush1.msra.mxu0 0.0
  %1284 = vmatprep.subr.mxu0 0.0
  %1285 = vmatpush1.msra.mxu0 0.0
  %1286 = vmatprep.subr.mxu0 0.0
  %1287 = vmatpush1.msra.mxu0 0.0
  %1288 = vmatprep.subr.mxu0 0.0
  %1289 = vmatpush1.msra.mxu0 %v1263
  %1290 = vmatprep.subr.mxu0 0.0
  %1291 = vmatpush1.msra.mxu0 %v1262
  %1292 = vmatprep.subr.mxu0 0.0
  %1293 = vmatpush1.msra.mxu0 %v1261
  %1294 = vmatprep.subr.mxu0 0.0
  %1295 = vmatpush1.msra.mxu0 %v1260
  %1296 = vmatprep.subr.mxu0 0.0
  %1297 = vmatpush2.msra.mxu0 0.0
  %1298 = vmatprep.subr.mxu0 0.0
  %1299 = vmatpush2.msra.mxu0 0.0
  %1300 = vmatprep.subr.mxu0 0.0
  %1301 = vmatpush2.msra.mxu0 0.0
  %1302 = vmatprep.subr.mxu0 0.0
  %1303 = vmatpush2.msra.mxu0 0.0
  %1304 = vmatprep.subr.mxu0 0.0
  %1305 = vmatpush2.msra.mxu0 0.0
  %1306 = vmatprep.subr.mxu0 0.0
  %1307 = vmatpush2.msra.mxu0 0.0
  %1308 = vmatprep.subr.mxu0 0.0
  %1309 = vmatpush2.msra.mxu0 0.0
  %1310 = vmatprep.subr.mxu0 0.0
  %1311 = vmatpush2.msra.mxu0 0.0
  %1312 = vmatprep.subr.mxu0 0.0
  %1313 = vmatpush2.msra.mxu0 0.0
  %1314 = vmatprep.subr.mxu0 0.0
  %1315 = vmatpush2.msra.mxu0 0.0
  %1316 = vmatprep.subr.mxu0 0.0
  %1317 = vmatpush2.msra.mxu0 0.0
  %1318 = vmatprep.subr.mxu0 0.0
  %1319 = vmatpush2.msra.mxu0 0.0
  %1320 = vmatprep.subr.mxu0 0.0
  %1321 = vmatpush2.msra.mxu0 0.0
  %1322 = vmatprep.subr.mxu0 0.0
  %1323 = vmatpush2.msra.mxu0 0.0
  %1324 = vmatprep.subr.mxu0 0.0
  %1325 = vmatpush2.msra.mxu0 0.0
  %1326 = vmatprep.subr.mxu0 0.0
  %1327 = vmatpush2.msra.mxu0 0.0
  %1328 = vmatprep.mubr.f32.mxu0 0.0
  %1329 = vmatmul.mubr.f32.gmra.mxu0 %v231
  %v1330 = vpop.f32.mrf.mxu0
  %v1331 = vadd.f32 0.0, %v1330
  %v1332 = vpop.f32.mrf.mxu0
  %1333 = vmatprep.mubr.f32.mxu0 0.0
  %1334 = vmatmul.mubr.f32.gmra.mxu0 %v234
  %v1335 = vpop.f32.mrf.mxu0
  %v1336 = vadd.f32 0.0, %v1335
  %v1337 = vpop.f32.mrf.mxu0
  %1338 = vdwg.mxu0
  %v1340 = vsel %vm469, %v1171, 0
  %v1343 = vsel %vm469, %v1176, 0
  %v1346 = vsel %vm469, %v1251, 0
  %v1349 = vsel %vm469, %v1256, 0
  %1351 = vmatprep.subr.mxu0 0.0
  %1352 = vmatpush1.xpose.msra.mxu0 0.0
  %1353 = vmatprep.subr.mxu0 0.0
  %1354 = vmatpush1.xpose.msra.mxu0 0.0
  %1355 = vmatprep.subr.mxu0 0.0
  %1356 = vmatpush1.xpose.msra.mxu0 0.0
  %1357 = vmatprep.subr.mxu0 0.0
  %1358 = vmatpush1.xpose.msra.mxu0 0.0
  %1359 = vmatprep.subr.mxu0 0.0
  %1360 = vmatpush1.xpose.msra.mxu0 0.0
  %1361 = vmatprep.subr.mxu0 0.0
  %1362 = vmatpush1.xpose.msra.mxu0 0.0
  %1363 = vmatprep.subr.mxu0 0.0
  %1364 = vmatpush1.xpose.msra.mxu0 0.0
  %1365 = vmatprep.subr.mxu0 0.0
  %1366 = vmatpush1.xpose.msra.mxu0 0.0
  %1367 = vmatprep.subr.mxu0 0.0
  %1368 = vmatpush1.xpose.msra.mxu0 0.0
  %1369 = vmatprep.subr.mxu0 0.0
  %1370 = vmatpush1.xpose.msra.mxu0 0.0
  %1371 = vmatprep.subr.mxu0 0.0
  %1372 = vmatpush1.xpose.msra.mxu0 0.0
  %1373 = vmatprep.subr.mxu0 0.0
  %1374 = vmatpush1.xpose.msra.mxu0 0.0
  %1375 = vmatprep.subr.mxu0 0.0
  %1376 = vmatpush1.xpose.msra.mxu0 0.0
  %1377 = vmatprep.subr.mxu0 0.0
  %1378 = vmatpush1.xpose.msra.mxu0 0.0
  %1379 = vmatprep.subr.mxu0 0.0
  %1380 = vmatpush1.xpose.msra.mxu0 %v1349
  %1381 = vmatprep.subr.mxu0 0.0
  %1382 = vmatpush1.xpose.msra.mxu0 %v1346
  %1383 = vmatprep.subr.mxu0 0.0
  %1384 = vmatpush2.xpose.msra.mxu0 0.0
  %1385 = vmatprep.subr.mxu0 0.0
  %1386 = vmatpush2.xpose.msra.mxu0 0.0
  %1387 = vmatprep.subr.mxu0 0.0
  %1388 = vmatpush2.xpose.msra.mxu0 0.0
  %1389 = vmatprep.subr.mxu0 0.0
  %1390 = vmatpush2.xpose.msra.mxu0 0.0
  %1391 = vmatprep.subr.mxu0 0.0
  %1392 = vmatpush2.xpose.msra.mxu0 0.0
  %1393 = vmatprep.subr.mxu0 0.0
  %1394 = vmatpush2.xpose.msra.mxu0 0.0
  %1395 = vmatprep.subr.mxu0 0.0
  %1396 = vmatpush2.xpose.msra.mxu0 0.0
  %1397 = vmatprep.subr.mxu0 0.0
  %1398 = vmatpush2.xpose.msra.mxu0 0.0
  %1399 = vmatprep.subr.mxu0 0.0
  %1400 = vmatpush2.xpose.msra.mxu0 0.0
  %1401 = vmatprep.subr.mxu0 0.0
  %1402 = vmatpush2.xpose.msra.mxu0 0.0
  %1403 = vmatprep.subr.mxu0 0.0
  %1404 = vmatpush2.xpose.msra.mxu0 0.0
  %1405 = vmatprep.subr.mxu0 0.0
  %1406 = vmatpush2.xpose.msra.mxu0 0.0
  %1407 = vmatprep.subr.mxu0 0.0
  %1408 = vmatpush2.xpose.msra.mxu0 0.0
  %1409 = vmatprep.subr.mxu0 0.0
  %1410 = vmatpush2.xpose.msra.mxu0 0.0
  %1411 = vmatprep.subr.mxu0 0.0
  %1412 = vmatpush2.xpose.msra.mxu0 0.0
  %1413 = vmatprep.subr.mxu0 0.0
  %1414 = vmatpush2.xpose.msra.mxu0 0.0
  %1415 = vmatprep.mubr.f32.mxu0 0.0
  %1416 = vmatmul.mubr.f32.gmra.mxu0 %v1340
  %v1417 = vpop.f32.mrf.mxu0
  %v1418 = vadd.f32 %v177, %v1417
  %v1419 = vpop.f32.mrf.mxu0
  %1420 = vmatprep.mubr.f32.mxu0 0.0
  %1421 = vmatmul.mubr.f32.gmra.mxu0 %v1343
  %v1422 = vpop.f32.mrf.mxu0
  %v1423 = vadd.f32 %v178, %v1422
  %v1424 = vpop.f32.mrf.mxu0
  %1425 = vdwg.mxu0
  %v1426 = vsel %vm557, %v1418, -inf
  %1427 = vmax.xlane.f32.xlu0 %v1426
  %v1428 = vpop.xlane.xlu0 %1427
  %v1429 = vsel %vm561, %v1423, -inf
  %1430 = vmax.xlane.f32.xlu0 %v1429
  %v1431 = vpop.xlane.xlu0 %1430
  %v1432 = vsub.f32 %v1418, %v1428
  %v1433 = vsub.f32 %v1423, %v1431
  %v1434 = vmul.f32 %v1432, 1.442695
  %v1435 = vpow.pop %v1434
  %v1436 = vmul.f32 %v1433, 1.442695
  %v1437 = vpow.pop %v1436
  %v1438 = vsel %vm557, %v1435, 0.0
  %1439 = vadd.xlane.f32.xlu0 %v1438
  %v1440 = vpop.xlane.xlu0 %1439
  %v1441 = vsel %vm561, %v1437, 0.0
  %1442 = vadd.xlane.f32.xlu0 %v1441
  %v1443 = vpop.xlane.xlu0 %1442
  %v1444 = vrcp.pop %v1440
  %v1445 = vrcp.pop %v1443
  %v1446 = vmul.f32 %v1435, %v1444
  %v1447 = vmul.f32 %v1437, %v1445
  %v1449 = vsel %vm557, %v1446, 0
  %v1452 = vsel %vm557, %v1447, 0
  %v1455 = vsel %vm936, %v1336, 0
  %1457 = vmatprep.subr.mxu0 0.0
  %1458 = vmatpush1.msra.mxu0 0.0
  %1459 = vmatprep.subr.mxu0 0.0
  %1460 = vmatpush1.msra.mxu0 0.0
  %1461 = vmatprep.subr.mxu0 0.0
  %1462 = vmatpush1.msra.mxu0 0.0
  %1463 = vmatprep.subr.mxu0 0.0
  %1464 = vmatpush1.msra.mxu0 0.0
  %1465 = vmatprep.subr.mxu0 0.0
  %1466 = vmatpush1.msra.mxu0 0.0
  %1467 = vmatprep.subr.mxu0 0.0
  %1468 = vmatpush1.msra.mxu0 0.0
  %1469 = vmatprep.subr.mxu0 0.0
  %1470 = vmatpush1.msra.mxu0 0.0
  %1471 = vmatprep.subr.mxu0 0.0
  %1472 = vmatpush1.msra.mxu0 0.0
  %1473 = vmatprep.subr.mxu0 0.0
  %1474 = vmatpush1.msra.mxu0 0.0
  %1475 = vmatprep.subr.mxu0 0.0
  %1476 = vmatpush1.msra.mxu0 0.0
  %1477 = vmatprep.subr.mxu0 0.0
  %1478 = vmatpush1.msra.mxu0 0.0
  %1479 = vmatprep.subr.mxu0 0.0
  %1480 = vmatpush1.msra.mxu0 0.0
  %1481 = vmatprep.subr.mxu0 0.0
  %1482 = vmatpush1.msra.mxu0 0.0
  %1483 = vmatprep.subr.mxu0 0.0
  %1484 = vmatpush1.msra.mxu0 0.0
  %1485 = vmatprep.subr.mxu0 0.0
  %1486 = vmatpush1.msra.mxu0 %v1455
  %1487 = vmatprep.subr.mxu0 0.0
  %1488 = vmatpush1.msra.mxu0 %v1331
  %1489 = vmatprep.subr.mxu0 0.0
  %1490 = vmatpush2.msra.mxu0 0.0
  %1491 = vmatprep.subr.mxu0 0.0
  %1492 = vmatpush2.msra.mxu0 0.0
  %1493 = vmatprep.subr.mxu0 0.0
  %1494 = vmatpush2.msra.mxu0 0.0
  %1495 = vmatprep.subr.mxu0 0.0
  %1496 = vmatpush2.msra.mxu0 0.0
  %1497 = vmatprep.subr.mxu0 0.0
  %1498 = vmatpush2.msra.mxu0 0.0
  %1499 = vmatprep.subr.mxu0 0.0
  %1500 = vmatpush2.msra.mxu0 0.0
  %1501 = vmatprep.subr.mxu0 0.0
  %1502 = vmatpush2.msra.mxu0 0.0
  %1503 = vmatprep.subr.mxu0 0.0
  %1504 = vmatpush2.msra.mxu0 0.0
  %1505 = vmatprep.subr.mxu0 0.0
  %1506 = vmatpush2.msra.mxu0 0.0
  %1507 = vmatprep.subr.mxu0 0.0
  %1508 = vmatpush2.msra.mxu0 0.0
  %1509 = vmatprep.subr.mxu0 0.0
  %1510 = vmatpush2.msra.mxu0 0.0
  %1511 = vmatprep.subr.mxu0 0.0
  %1512 = vmatpush2.msra.mxu0 0.0
  %1513 = vmatprep.subr.mxu0 0.0
  %1514 = vmatpush2.msra.mxu0 0.0
  %1515 = vmatprep.subr.mxu0 0.0
  %1516 = vmatpush2.msra.mxu0 0.0
  %1517 = vmatprep.subr.mxu0 0.0
  %1518 = vmatpush2.msra.mxu0 0.0
  %1519 = vmatprep.subr.mxu0 0.0
  %1520 = vmatpush2.msra.mxu0 0.0
  %1521 = vmatprep.mubr.f32.mxu0 0.0
  %1522 = vmatmul.mubr.f32.gmra.mxu0 %v1449
  %v1523 = vpop.f32.mrf.mxu0
  %v1524 = vadd.f32 0.0, %v1523
  %v1525 = vpop.f32.mrf.mxu0
  %1526 = vmatprep.mubr.f32.mxu0 0.0
  %1527 = vmatmul.mubr.f32.gmra.mxu0 %v1452
  %v1528 = vpop.f32.mrf.mxu0
  %v1529 = vadd.f32 0.0, %v1528
  %v1530 = vpop.f32.mrf.mxu0
  %1531 = vdwg.mxu0
  %v1532 = vadd.f32 %v1091, %v1524
  %v1533 = vadd.f32 %v1096, %v1529
  %s1534 = scalar_lea.vmem %s6, 96
  %v1535 = vld [vmem:[%s1534] sm:$0xff]
  %v1536 = vld [vmem:[%s1534 + $0x8] sm:$0xff]
  %v1537 = vld [vmem:[%s1534 + $0x10] sm:$0xff]
  %v1538 = vld [vmem:[%s1534 + $0x18] sm:$0xff]
  %1539 = vmatprep.subr.mxu0 0.0
  %1540 = vmatpush1.msra.mxu0 0.0
  %1541 = vmatprep.subr.mxu0 0.0
  %1542 = vmatpush1.msra.mxu0 0.0
  %1543 = vmatprep.subr.mxu0 0.0
  %1544 = vmatpush1.msra.mxu0 0.0
  %1545 = vmatprep.subr.mxu0 0.0
  %1546 = vmatpush1.msra.mxu0 0.0
  %1547 = vmatprep.subr.mxu0 0.0
  %1548 = vmatpush1.msra.mxu0 0.0
  %1549 = vmatprep.subr.mxu0 0.0
  %1550 = vmatpush1.msra.mxu0 0.0
  %1551 = vmatprep.subr.mxu0 0.0
  %1552 = vmatpush1.msra.mxu0 0.0
  %1553 = vmatprep.subr.mxu0 0.0
  %1554 = vmatpush1.msra.mxu0 0.0
  %1555 = vmatprep.subr.mxu0 0.0
  %1556 = vmatpush1.msra.mxu0 0.0
  %1557 = vmatprep.subr.mxu0 0.0
  %1558 = vmatpush1.msra.mxu0 0.0
  %1559 = vmatprep.subr.mxu0 0.0
  %1560 = vmatpush1.msra.mxu0 0.0
  %1561 = vmatprep.subr.mxu0 0.0
  %1562 = vmatpush1.msra.mxu0 0.0
  %1563 = vmatprep.subr.mxu0 0.0
  %1564 = vmatpush1.msra.mxu0 %v1538
  %1565 = vmatprep.subr.mxu0 0.0
  %1566 = vmatpush1.msra.mxu0 %v1537
  %1567 = vmatprep.subr.mxu0 0.0
  %1568 = vmatpush1.msra.mxu0 %v1536
  %1569 = vmatprep.subr.mxu0 0.0
  %1570 = vmatpush1.msra.mxu0 %v1535
  %1571 = vmatprep.subr.mxu0 0.0
  %1572 = vmatpush2.msra.mxu0 0.0
  %1573 = vmatprep.subr.mxu0 0.0
  %1574 = vmatpush2.msra.mxu0 0.0
  %1575 = vmatprep.subr.mxu0 0.0
  %1576 = vmatpush2.msra.mxu0 0.0
  %1577 = vmatprep.subr.mxu0 0.0
  %1578 = vmatpush2.msra.mxu0 0.0
  %1579 = vmatprep.subr.mxu0 0.0
  %1580 = vmatpush2.msra.mxu0 0.0
  %1581 = vmatprep.subr.mxu0 0.0
  %1582 = vmatpush2.msra.mxu0 0.0
  %1583 = vmatprep.subr.mxu0 0.0
  %1584 = vmatpush2.msra.mxu0 0.0
  %1585 = vmatprep.subr.mxu0 0.0
  %1586 = vmatpush2.msra.mxu0 0.0
  %1587 = vmatprep.subr.mxu0 0.0
  %1588 = vmatpush2.msra.mxu0 0.0
  %1589 = vmatprep.subr.mxu0 0.0
  %1590 = vmatpush2.msra.mxu0 0.0
  %1591 = vmatprep.subr.mxu0 0.0
  %1592 = vmatpush2.msra.mxu0 0.0
  %1593 = vmatprep.subr.mxu0 0.0
  %1594 = vmatpush2.msra.mxu0 0.0
  %1595 = vmatprep.subr.mxu0 0.0
  %1596 = vmatpush2.msra.mxu0 0.0
  %1597 = vmatprep.subr.mxu0 0.0
  %1598 = vmatpush2.msra.mxu0 0.0
  %1599 = vmatprep.subr.mxu0 0.0
  %1600 = vmatpush2.msra.mxu0 0.0
  %1601 = vmatprep.subr.mxu0 0.0
  %1602 = vmatpush2.msra.mxu0 0.0
  %1603 = vmatprep.mubr.f32.mxu0 0.0
  %1604 = vmatmul.mubr.f32.gmra.mxu0 %v231
  %v1605 = vpop.f32.mrf.mxu0
  %v1606 = vadd.f32 0.0, %v1605
  %v1607 = vpop.f32.mrf.mxu0
  %1608 = vmatprep.mubr.f32.mxu0 0.0
  %1609 = vmatmul.mubr.f32.gmra.mxu0 %v234
  %v1610 = vpop.f32.mrf.mxu0
  %v1611 = vadd.f32 0.0, %v1610
  %v1612 = vpop.f32.mrf.mxu0
  %1613 = vdwg.mxu0
  %s1614 = scalar_lea.vmem %s7, 96
  %v1615 = vld [vmem:[%s1614] sm:$0xff]
  %v1616 = vld [vmem:[%s1614 + $0x8] sm:$0xff]
  %v1617 = vld [vmem:[%s1614 + $0x10] sm:$0xff]
  %v1618 = vld [vmem:[%s1614 + $0x18] sm:$0xff]
  %1619 = vmatprep.subr.mxu0 0.0
  %1620 = vmatpush1.msra.mxu0 0.0
  %1621 = vmatprep.subr.mxu0 0.0
  %1622 = vmatpush1.msra.mxu0 0.0
  %1623 = vmatprep.subr.mxu0 0.0
  %1624 = vmatpush1.msra.mxu0 0.0
  %1625 = vmatprep.subr.mxu0 0.0
  %1626 = vmatpush1.msra.mxu0 0.0
  %1627 = vmatprep.subr.mxu0 0.0
  %1628 = vmatpush1.msra.mxu0 0.0
  %1629 = vmatprep.subr.mxu0 0.0
  %1630 = vmatpush1.msra.mxu0 0.0
  %1631 = vmatprep.subr.mxu0 0.0
  %1632 = vmatpush1.msra.mxu0 0.0
  %1633 = vmatprep.subr.mxu0 0.0
  %1634 = vmatpush1.msra.mxu0 0.0
  %1635 = vmatprep.subr.mxu0 0.0
  %1636 = vmatpush1.msra.mxu0 0.0
  %1637 = vmatprep.subr.mxu0 0.0
  %1638 = vmatpush1.msra.mxu0 0.0
  %1639 = vmatprep.subr.mxu0 0.0
  %1640 = vmatpush1.msra.mxu0 0.0
  %1641 = vmatprep.subr.mxu0 0.0
  %1642 = vmatpush1.msra.mxu0 0.0
  %1643 = vmatprep.subr.mxu0 0.0
  %1644 = vmatpush1.msra.mxu0 %v1618
  %1645 = vmatprep.subr.mxu0 0.0
  %1646 = vmatpush1.msra.mxu0 %v1617
  %1647 = vmatprep.subr.mxu0 0.0
  %1648 = vmatpush1.msra.mxu0 %v1616
  %1649 = vmatprep.subr.mxu0 0.0
  %1650 = vmatpush1.msra.mxu0 %v1615
  %1651 = vmatprep.subr.mxu0 0.0
  %1652 = vmatpush2.msra.mxu0 0.0
  %1653 = vmatprep.subr.mxu0 0.0
  %1654 = vmatpush2.msra.mxu0 0.0
  %1655 = vmatprep.subr.mxu0 0.0
  %1656 = vmatpush2.msra.mxu0 0.0
  %1657 = vmatprep.subr.mxu0 0.0
  %1658 = vmatpush2.msra.mxu0 0.0
  %1659 = vmatprep.subr.mxu0 0.0
  %1660 = vmatpush2.msra.mxu0 0.0
  %1661 = vmatprep.subr.mxu0 0.0
  %1662 = vmatpush2.msra.mxu0 0.0
  %1663 = vmatprep.subr.mxu0 0.0
  %1664 = vmatpush2.msra.mxu0 0.0
  %1665 = vmatprep.subr.mxu0 0.0
  %1666 = vmatpush2.msra.mxu0 0.0
  %1667 = vmatprep.subr.mxu0 0.0
  %1668 = vmatpush2.msra.mxu0 0.0
  %1669 = vmatprep.subr.mxu0 0.0
  %1670 = vmatpush2.msra.mxu0 0.0
  %1671 = vmatprep.subr.mxu0 0.0
  %1672 = vmatpush2.msra.mxu0 0.0
  %1673 = vmatprep.subr.mxu0 0.0
  %1674 = vmatpush2.msra.mxu0 0.0
  %1675 = vmatprep.subr.mxu0 0.0
  %1676 = vmatpush2.msra.mxu0 0.0
  %1677 = vmatprep.subr.mxu0 0.0
  %1678 = vmatpush2.msra.mxu0 0.0
  %1679 = vmatprep.subr.mxu0 0.0
  %1680 = vmatpush2.msra.mxu0 0.0
  %1681 = vmatprep.subr.mxu0 0.0
  %1682 = vmatpush2.msra.mxu0 0.0
  %1683 = vmatprep.mubr.f32.mxu0 0.0
  %1684 = vmatmul.mubr.f32.gmra.mxu0 %v231
  %v1685 = vpop.f32.mrf.mxu0
  %v1686 = vadd.f32 0.0, %v1685
  %v1687 = vpop.f32.mrf.mxu0
  %1688 = vmatprep.mubr.f32.mxu0 0.0
  %1689 = vmatmul.mubr.f32.gmra.mxu0 %v234
  %v1690 = vpop.f32.mrf.mxu0
  %v1691 = vadd.f32 0.0, %v1690
  %v1692 = vpop.f32.mrf.mxu0
  %1693 = vdwg.mxu0
  %s1694 = scalar_lea.vmem %s8, 96
  %v1695 = vld [vmem:[%s1694] sm:$0xff]
  %v1696 = vld [vmem:[%s1694 + $0x8] sm:$0xff]
  %v1697 = vld [vmem:[%s1694 + $0x10] sm:$0xff]
  %v1698 = vld [vmem:[%s1694 + $0x18] sm:$0xff]
  %1699 = vmatprep.subr.mxu0 0.0
  %1700 = vmatpush1.msra.mxu0 0.0
  %1701 = vmatprep.subr.mxu0 0.0
  %1702 = vmatpush1.msra.mxu0 0.0
  %1703 = vmatprep.subr.mxu0 0.0
  %1704 = vmatpush1.msra.mxu0 0.0
  %1705 = vmatprep.subr.mxu0 0.0
  %1706 = vmatpush1.msra.mxu0 0.0
  %1707 = vmatprep.subr.mxu0 0.0
  %1708 = vmatpush1.msra.mxu0 0.0
  %1709 = vmatprep.subr.mxu0 0.0
  %1710 = vmatpush1.msra.mxu0 0.0
  %1711 = vmatprep.subr.mxu0 0.0
  %1712 = vmatpush1.msra.mxu0 0.0
  %1713 = vmatprep.subr.mxu0 0.0
  %1714 = vmatpush1.msra.mxu0 0.0
  %1715 = vmatprep.subr.mxu0 0.0
  %1716 = vmatpush1.msra.mxu0 0.0
  %1717 = vmatprep.subr.mxu0 0.0
  %1718 = vmatpush1.msra.mxu0 0.0
  %1719 = vmatprep.subr.mxu0 0.0
  %1720 = vmatpush1.msra.mxu0 0.0
  %1721 = vmatprep.subr.mxu0 0.0
  %1722 = vmatpush1.msra.mxu0 0.0
  %1723 = vmatprep.subr.mxu0 0.0
  %1724 = vmatpush1.msra.mxu0 %v1698
  %1725 = vmatprep.subr.mxu0 0.0
  %1726 = vmatpush1.msra.mxu0 %v1697
  %1727 = vmatprep.subr.mxu0 0.0
  %1728 = vmatpush1.msra.mxu0 %v1696
  %1729 = vmatprep.subr.mxu0 0.0
  %1730 = vmatpush1.msra.mxu0 %v1695
  %1731 = vmatprep.subr.mxu0 0.0
  %1732 = vmatpush2.msra.mxu0 0.0
  %1733 = vmatprep.subr.mxu0 0.0
  %1734 = vmatpush2.msra.mxu0 0.0
  %1735 = vmatprep.subr.mxu0 0.0
  %1736 = vmatpush2.msra.mxu0 0.0
  %1737 = vmatprep.subr.mxu0 0.0
  %1738 = vmatpush2.msra.mxu0 0.0
  %1739 = vmatprep.subr.mxu0 0.0
  %1740 = vmatpush2.msra.mxu0 0.0
  %1741 = vmatprep.subr.mxu0 0.0
  %1742 = vmatpush2.msra.mxu0 0.0
  %1743 = vmatprep.subr.mxu0 0.0
  %1744 = vmatpush2.msra.mxu0 0.0
  %1745 = vmatprep.subr.mxu0 0.0
  %1746 = vmatpush2.msra.mxu0 0.0
  %1747 = vmatprep.subr.mxu0 0.0
  %1748 = vmatpush2.msra.mxu0 0.0
  %1749 = vmatprep.subr.mxu0 0.0
  %1750 = vmatpush2.msra.mxu0 0.0
  %1751 = vmatprep.subr.mxu0 0.0
  %1752 = vmatpush2.msra.mxu0 0.0
  %1753 = vmatprep.subr.mxu0 0.0
  %1754 = vmatpush2.msra.mxu0 0.0
  %1755 = vmatprep.subr.mxu0 0.0
  %1756 = vmatpush2.msra.mxu0 0.0
  %1757 = vmatprep.subr.mxu0 0.0
  %1758 = vmatpush2.msra.mxu0 0.0
  %1759 = vmatprep.subr.mxu0 0.0
  %1760 = vmatpush2.msra.mxu0 0.0
  %1761 = vmatprep.subr.mxu0 0.0
  %1762 = vmatpush2.msra.mxu0 0.0
  %1763 = vmatprep.mubr.f32.mxu0 0.0
  %1764 = vmatmul.mubr.f32.gmra.mxu0 %v231
  %v1765 = vpop.f32.mrf.mxu0
  %v1766 = vadd.f32 0.0, %v1765
  %v1767 = vpop.f32.mrf.mxu0
  %1768 = vmatprep.mubr.f32.mxu0 0.0
  %1769 = vmatmul.mubr.f32.gmra.mxu0 %v234
  %v1770 = vpop.f32.mrf.mxu0
  %v1771 = vadd.f32 0.0, %v1770
  %v1772 = vpop.f32.mrf.mxu0
  %1773 = vdwg.mxu0
  %v1775 = vsel %vm469, %v1606, 0
  %v1778 = vsel %vm469, %v1611, 0
  %v1781 = vsel %vm469, %v1686, 0
  %v1784 = vsel %vm469, %v1691, 0
  %1786 = vmatprep.subr.mxu0 0.0
  %1787 = vmatpush1.xpose.msra.mxu0 0.0
  %1788 = vmatprep.subr.mxu0 0.0
  %1789 = vmatpush1.xpose.msra.mxu0 0.0
  %1790 = vmatprep.subr.mxu0 0.0
  %1791 = vmatpush1.xpose.msra.mxu0 0.0
  %1792 = vmatprep.subr.mxu0 0.0
  %1793 = vmatpush1.xpose.msra.mxu0 0.0
  %1794 = vmatprep.subr.mxu0 0.0
  %1795 = vmatpush1.xpose.msra.mxu0 0.0
  %1796 = vmatprep.subr.mxu0 0.0
  %1797 = vmatpush1.xpose.msra.mxu0 0.0
  %1798 = vmatprep.subr.mxu0 0.0
  %1799 = vmatpush1.xpose.msra.mxu0 0.0
  %1800 = vmatprep.subr.mxu0 0.0
  %1801 = vmatpush1.xpose.msra.mxu0 0.0
  %1802 = vmatprep.subr.mxu0 0.0
  %1803 = vmatpush1.xpose.msra.mxu0 0.0
  %1804 = vmatprep.subr.mxu0 0.0
  %1805 = vmatpush1.xpose.msra.mxu0 0.0
  %1806 = vmatprep.subr.mxu0 0.0
  %1807 = vmatpush1.xpose.msra.mxu0 0.0
  %1808 = vmatprep.subr.mxu0 0.0
  %1809 = vmatpush1.xpose.msra.mxu0 0.0
  %1810 = vmatprep.subr.mxu0 0.0
  %1811 = vmatpush1.xpose.msra.mxu0 0.0
  %1812 = vmatprep.subr.mxu0 0.0
  %1813 = vmatpush1.xpose.msra.mxu0 0.0
  %1814 = vmatprep.subr.mxu0 0.0
  %1815 = vmatpush1.xpose.msra.mxu0 %v1784
  %1816 = vmatprep.subr.mxu0 0.0
  %1817 = vmatpush1.xpose.msra.mxu0 %v1781
  %1818 = vmatprep.subr.mxu0 0.0
  %1819 = vmatpush2.xpose.msra.mxu0 0.0
  %1820 = vmatprep.subr.mxu0 0.0
  %1821 = vmatpush2.xpose.msra.mxu0 0.0
  %1822 = vmatprep.subr.mxu0 0.0
  %1823 = vmatpush2.xpose.msra.mxu0 0.0
  %1824 = vmatprep.subr.mxu0 0.0
  %1825 = vmatpush2.xpose.msra.mxu0 0.0
  %1826 = vmatprep.subr.mxu0 0.0
  %1827 = vmatpush2.xpose.msra.mxu0 0.0
  %1828 = vmatprep.subr.mxu0 0.0
  %1829 = vmatpush2.xpose.msra.mxu0 0.0
  %1830 = vmatprep.subr.mxu0 0.0
  %1831 = vmatpush2.xpose.msra.mxu0 0.0
  %1832 = vmatprep.subr.mxu0 0.0
  %1833 = vmatpush2.xpose.msra.mxu0 0.0
  %1834 = vmatprep.subr.mxu0 0.0
  %1835 = vmatpush2.xpose.msra.mxu0 0.0
  %1836 = vmatprep.subr.mxu0 0.0
  %1837 = vmatpush2.xpose.msra.mxu0 0.0
  %1838 = vmatprep.subr.mxu0 0.0
  %1839 = vmatpush2.xpose.msra.mxu0 0.0
  %1840 = vmatprep.subr.mxu0 0.0
  %1841 = vmatpush2.xpose.msra.mxu0 0.0
  %1842 = vmatprep.subr.mxu0 0.0
  %1843 = vmatpush2.xpose.msra.mxu0 0.0
  %1844 = vmatprep.subr.mxu0 0.0
  %1845 = vmatpush2.xpose.msra.mxu0 0.0
  %1846 = vmatprep.subr.mxu0 0.0
  %1847 = vmatpush2.xpose.msra.mxu0 0.0
  %1848 = vmatprep.subr.mxu0 0.0
  %1849 = vmatpush2.xpose.msra.mxu0 0.0
  %1850 = vmatprep.mubr.f32.mxu0 0.0
  %1851 = vmatmul.mubr.f32.gmra.mxu0 %v1775
  %v1852 = vpop.f32.mrf.mxu0
  %v1853 = vadd.f32 %v177, %v1852
  %v1854 = vpop.f32.mrf.mxu0
  %1855 = vmatprep.mubr.f32.mxu0 0.0
  %1856 = vmatmul.mubr.f32.gmra.mxu0 %v1778
  %v1857 = vpop.f32.mrf.mxu0
  %v1858 = vadd.f32 %v178, %v1857
  %v1859 = vpop.f32.mrf.mxu0
  %1860 = vdwg.mxu0
  %v1861 = vsel %vm557, %v1853, -inf
  %1862 = vmax.xlane.f32.xlu0 %v1861
  %v1863 = vpop.xlane.xlu0 %1862
  %v1864 = vsel %vm561, %v1858, -inf
  %1865 = vmax.xlane.f32.xlu0 %v1864
  %v1866 = vpop.xlane.xlu0 %1865
  %v1867 = vsub.f32 %v1853, %v1863
  %v1868 = vsub.f32 %v1858, %v1866
  %v1869 = vmul.f32 %v1867, 1.442695
  %v1870 = vpow.pop %v1869
  %v1871 = vmul.f32 %v1868, 1.442695
  %v1872 = vpow.pop %v1871
  %v1873 = vsel %vm557, %v1870, 0.0
  %1874 = vadd.xlane.f32.xlu0 %v1873
  %v1875 = vpop.xlane.xlu0 %1874
  %v1876 = vsel %vm561, %v1872, 0.0
  %1877 = vadd.xlane.f32.xlu0 %v1876
  %v1878 = vpop.xlane.xlu0 %1877
  %v1879 = vrcp.pop %v1875
  %v1880 = vrcp.pop %v1878
  %v1881 = vmul.f32 %v1870, %v1879
  %v1882 = vmul.f32 %v1872, %v1880
  %v1884 = vsel %vm557, %v1881, 0
  %v1887 = vsel %vm557, %v1882, 0
  %v1890 = vsel %vm936, %v1771, 0
  %1892 = vmatprep.subr.mxu0 0.0
  %1893 = vmatpush1.msra.mxu0 0.0
  %1894 = vmatprep.subr.mxu0 0.0
  %1895 = vmatpush1.msra.mxu0 0.0
  %1896 = vmatprep.subr.mxu0 0.0
  %1897 = vmatpush1.msra.mxu0 0.0
  %1898 = vmatprep.subr.mxu0 0.0
  %1899 = vmatpush1.msra.mxu0 0.0
  %1900 = vmatprep.subr.mxu0 0.0
  %1901 = vmatpush1.msra.mxu0 0.0
  %1902 = vmatprep.subr.mxu0 0.0
  %1903 = vmatpush1.msra.mxu0 0.0
  %1904 = vmatprep.subr.mxu0 0.0
  %1905 = vmatpush1.msra.mxu0 0.0
  %1906 = vmatprep.subr.mxu0 0.0
  %1907 = vmatpush1.msra.mxu0 0.0
  %1908 = vmatprep.subr.mxu0 0.0
  %1909 = vmatpush1.msra.mxu0 0.0
  %1910 = vmatprep.subr.mxu0 0.0
  %1911 = vmatpush1.msra.mxu0 0.0
  %1912 = vmatprep.subr.mxu0 0.0
  %1913 = vmatpush1.msra.mxu0 0.0
  %1914 = vmatprep.subr.mxu0 0.0
  %1915 = vmatpush1.msra.mxu0 0.0
  %1916 = vmatprep.subr.mxu0 0.0
  %1917 = vmatpush1.msra.mxu0 0.0
  %1918 = vmatprep.subr.mxu0 0.0
  %1919 = vmatpush1.msra.mxu0 0.0
  %1920 = vmatprep.subr.mxu0 0.0
  %1921 = vmatpush1.msra.mxu0 %v1890
  %1922 = vmatprep.subr.mxu0 0.0
  %1923 = vmatpush1.msra.mxu0 %v1766
  %1924 = vmatprep.subr.mxu0 0.0
  %1925 = vmatpush2.msra.mxu0 0.0
  %1926 = vmatprep.subr.mxu0 0.0
  %1927 = vmatpush2.msra.mxu0 0.0
  %1928 = vmatprep.subr.mxu0 0.0
  %1929 = vmatpush2.msra.mxu0 0.0
  %1930 = vmatprep.subr.mxu0 0.0
  %1931 = vmatpush2.msra.mxu0 0.0
  %1932 = vmatprep.subr.mxu0 0.0
  %1933 = vmatpush2.msra.mxu0 0.0
  %1934 = vmatprep.subr.mxu0 0.0
  %1935 = vmatpush2.msra.mxu0 0.0
  %1936 = vmatprep.subr.mxu0 0.0
  %1937 = vmatpush2.msra.mxu0 0.0
  %1938 = vmatprep.subr.mxu0 0.0
  %1939 = vmatpush2.msra.mxu0 0.0
  %1940 = vmatprep.subr.mxu0 0.0
  %1941 = vmatpush2.msra.mxu0 0.0
  %1942 = vmatprep.subr.mxu0 0.0
  %1943 = vmatpush2.msra.mxu0 0.0
  %1944 = vmatprep.subr.mxu0 0.0
  %1945 = vmatpush2.msra.mxu0 0.0
  %1946 = vmatprep.subr.mxu0 0.0
  %1947 = vmatpush2.msra.mxu0 0.0
  %1948 = vmatprep.subr.mxu0 0.0
  %1949 = vmatpush2.msra.mxu0 0.0
  %1950 = vmatprep.subr.mxu0 0.0
  %1951 = vmatpush2.msra.mxu0 0.0
  %1952 = vmatprep.subr.mxu0 0.0
  %1953 = vmatpush2.msra.mxu0 0.0
  %1954 = vmatprep.subr.mxu0 0.0
  %1955 = vmatpush2.msra.mxu0 0.0
  %1956 = vmatprep.mubr.f32.mxu0 0.0
  %1957 = vmatmul.mubr.f32.gmra.mxu0 %v1884
  %v1958 = vpop.f32.mrf.mxu0
  %v1959 = vadd.f32 0.0, %v1958
  %v1960 = vpop.f32.mrf.mxu0
  %1961 = vmatprep.mubr.f32.mxu0 0.0
  %1962 = vmatmul.mubr.f32.gmra.mxu0 %v1887
  %v1963 = vpop.f32.mrf.mxu0
  %v1964 = vadd.f32 0.0, %v1963
  %v1965 = vpop.f32.mrf.mxu0
  %1966 = vdwg.mxu0
  %v1967 = vadd.f32 %v1532, %v1959
  %v1968 = vadd.f32 %v1533, %v1964
  %v1969 = vadd.f32 %v169, %v1967
  %v1970 = vadd.f32 %v174, %v1968
  %v1971 = vld [vmem:[%s9] sm:$0x1]
  %v1973 = vlaneseq
  %v1974 = vshrl.u32 %v1973, 7
  %v1975 = vsub.s32 0, %v1974
  %v1976 = vrot.slane %v1971, %v1975
  %v1978 = vadd.f32 %v1969, %v1976
  %v1979 = vadd.f32 %v1970, %v1976
  %v1980 = vld [vmem:[%s10] sm:$0x1]
  %v1981 = vld [vmem:[%s11] sm:$0x1]
  %v1982 = vsel %vm181, %v1978, 0.0
  %1983 = vadd.xlane.f32.xlu0 %v1982
  %v1984 = vpop.xlane.xlu0 %1983
  %v1985 = vsel %vm185, %v1979, 0.0
  %1986 = vadd.xlane.f32.xlu0 %v1985
  %v1987 = vpop.xlane.xlu0 %1986
  %v1988 = vmul.f32 %v1984, %v189
  %v1989 = vmul.f32 %v1987, %v189
  %v1990 = vsub.f32 %v1978, %v1988
  %v1991 = vsub.f32 %v1979, %v1989
  %v1992 = vmul.f32 %v1990, %v1990
  %v1993 = vmul.f32 %v1991, %v1991
  %v1994 = vsel %vm181, %v1992, 0.0
  %1995 = vadd.xlane.f32.xlu0 %v1994
  %v1996 = vpop.xlane.xlu0 %1995
  %v1997 = vsel %vm185, %v1993, 0.0
  %1998 = vadd.xlane.f32.xlu0 %v1997
  %v1999 = vpop.xlane.xlu0 %1998
  %v2000 = vmul.f32 %v1996, %v189
  %v2001 = vmul.f32 %v1999, %v189
  %v2002 = vadd.f32 %v2000, 1e-05
  %v2003 = vadd.f32 %v2001, 1e-05
  %v2004 = vrsqrt.pop %v2002
  %v2005 = vrsqrt.pop %v2003
  %v2006 = vmul.f32 %v1990, %v2004
  %v2007 = vmul.f32 %v1991, %v2005
  %v2009 = vlaneseq
  %v2010 = vshrl.u32 %v2009, 7
  %v2011 = vsub.s32 0, %v2010
  %v2012 = vrot.slane %v1980, %v2011
  %v2014 = vmul.f32 %v2006, %v2012
  %v2015 = vmul.f32 %v2007, %v2012
  %v2017 = vlaneseq
  %v2018 = vshrl.u32 %v2017, 7
  %v2019 = vsub.s32 0, %v2018
  %v2020 = vrot.slane %v1981, %v2019
  %v2022 = vadd.f32 %v2014, %v2020
  %v2023 = vadd.f32 %v2015, %v2020
  %v2024 = vld [vmem:[%s12] sm:$0xff]
  %v2025 = vld [vmem:[%s12 + $0x8] sm:$0xff]
  %v2026 = vld [vmem:[%s12 + $0x10] sm:$0xff]
  %v2027 = vld [vmem:[%s12 + $0x18] sm:$0xff]
  %v2028 = vld [vmem:[%s13] sm:$0x1]
  %v2030 = vlaneseq
  %v2031 = vshrl.u32 %v2030, 7
  %v2032 = vsub.s32 0, %v2031
  %v2033 = vrot.slane %v2028, %v2032
  %v2036 = vsel %vm181, %v2022, 0
  %v2039 = vsel %vm181, %v2023, 0
  %2041 = vmatprep.subr.mxu0 0.0
  %2042 = vmatpush1.msra.mxu0 0.0
  %2043 = vmatprep.subr.mxu0 0.0
  %2044 = vmatpush1.msra.mxu0 0.0
  %2045 = vmatprep.subr.mxu0 0.0
  %2046 = vmatpush1.msra.mxu0 0.0
  %2047 = vmatprep.subr.mxu0 0.0
  %2048 = vmatpush1.msra.mxu0 0.0
  %2049 = vmatprep.subr.mxu0 0.0
  %2050 = vmatpush1.msra.mxu0 0.0
  %2051 = vmatprep.subr.mxu0 0.0
  %2052 = vmatpush1.msra.mxu0 0.0
  %2053 = vmatprep.subr.mxu0 0.0
  %2054 = vmatpush1.msra.mxu0 0.0
  %2055 = vmatprep.subr.mxu0 0.0
  %2056 = vmatpush1.msra.mxu0 0.0
  %2057 = vmatprep.subr.mxu0 0.0
  %2058 = vmatpush1.msra.mxu0 0.0
  %2059 = vmatprep.subr.mxu0 0.0
  %2060 = vmatpush1.msra.mxu0 0.0
  %2061 = vmatprep.subr.mxu0 0.0
  %2062 = vmatpush1.msra.mxu0 0.0
  %2063 = vmatprep.subr.mxu0 0.0
  %2064 = vmatpush1.msra.mxu0 0.0
  %2065 = vmatprep.subr.mxu0 0.0
  %2066 = vmatpush1.msra.mxu0 %v2027
  %2067 = vmatprep.subr.mxu0 0.0
  %2068 = vmatpush1.msra.mxu0 %v2026
  %2069 = vmatprep.subr.mxu0 0.0
  %2070 = vmatpush1.msra.mxu0 %v2025
  %2071 = vmatprep.subr.mxu0 0.0
  %2072 = vmatpush1.msra.mxu0 %v2024
  %2073 = vmatprep.subr.mxu0 0.0
  %2074 = vmatpush2.msra.mxu0 0.0
  %2075 = vmatprep.subr.mxu0 0.0
  %2076 = vmatpush2.msra.mxu0 0.0
  %2077 = vmatprep.subr.mxu0 0.0
  %2078 = vmatpush2.msra.mxu0 0.0
  %2079 = vmatprep.subr.mxu0 0.0
  %2080 = vmatpush2.msra.mxu0 0.0
  %2081 = vmatprep.subr.mxu0 0.0
  %2082 = vmatpush2.msra.mxu0 0.0
  %2083 = vmatprep.subr.mxu0 0.0
  %2084 = vmatpush2.msra.mxu0 0.0
  %2085 = vmatprep.subr.mxu0 0.0
  %2086 = vmatpush2.msra.mxu0 0.0
  %2087 = vmatprep.subr.mxu0 0.0
  %2088 = vmatpush2.msra.mxu0 0.0
  %2089 = vmatprep.subr.mxu0 0.0
  %2090 = vmatpush2.msra.mxu0 0.0
  %2091 = vmatprep.subr.mxu0 0.0
  %2092 = vmatpush2.msra.mxu0 0.0
  %2093 = vmatprep.subr.mxu0 0.0
  %2094 = vmatpush2.msra.mxu0 0.0
  %2095 = vmatprep.subr.mxu0 0.0
  %2096 = vmatpush2.msra.mxu0 0.0
  %2097 = vmatprep.subr.mxu0 0.0
  %2098 = vmatpush2.msra.mxu0 0.0
  %2099 = vmatprep.subr.mxu0 0.0
  %2100 = vmatpush2.msra.mxu0 0.0
  %2101 = vmatprep.subr.mxu0 0.0
  %2102 = vmatpush2.msra.mxu0 0.0
  %2103 = vmatprep.subr.mxu0 0.0
  %2104 = vmatpush2.msra.mxu0 0.0
  %2105 = vmatprep.mubr.f32.mxu0 0.0
  %2106 = vmatmul.mubr.f32.gmra.mxu0 %v2036
  %v2107 = vpop.f32.mrf.mxu0
  %v2108 = vadd.f32 %v2033, %v2107
  %v2109 = vpop.f32.mrf.mxu0
  %2110 = vmatprep.mubr.f32.mxu0 0.0
  %2111 = vmatmul.mubr.f32.gmra.mxu0 %v2039
  %v2112 = vpop.f32.mrf.mxu0
  %v2113 = vadd.f32 %v2033, %v2112
  %v2114 = vpop.f32.mrf.mxu0
  %2115 = vdwg.mxu0
  %v2116 = vmul.f32 %v2108, 0.5
  %v2117 = vmul.f32 %v2113, 0.5
  %v2118 = vmul.f32 %v2108, 0.70710677
  %v2119 = vmul.f32 %v2113, 0.70710677
  %v2120 = verf.f32.pop %v2118
  %v2121 = verf.f32.pop %v2119
  %v2122 = vadd.f32 %v2120, 1.0
  %v2123 = vadd.f32 %v2121, 1.0
  %v2124 = vmul.f32 %v2116, %v2122
  %v2125 = vmul.f32 %v2117, %v2123
  %v2126 = vld [vmem:[%s14] sm:$0xff]
  %v2127 = vld [vmem:[%s14 + $0x8] sm:$0xff]
  %v2128 = vld [vmem:[%s14 + $0x10] sm:$0xff]
  %v2129 = vld [vmem:[%s14 + $0x18] sm:$0xff]
  %v2130 = vld [vmem:[%s14 + $0x20] sm:$0xff]
  %v2131 = vld [vmem:[%s14 + $0x28] sm:$0xff]
  %v2132 = vld [vmem:[%s14 + $0x30] sm:$0xff]
  %v2133 = vld [vmem:[%s14 + $0x38] sm:$0xff]
  %v2134 = vld [vmem:[%s14 + $0x40] sm:$0xff]
  %v2135 = vld [vmem:[%s14 + $0x48] sm:$0xff]
  %v2136 = vld [vmem:[%s14 + $0x50] sm:$0xff]
  %v2137 = vld [vmem:[%s14 + $0x58] sm:$0xff]
  %v2138 = vld [vmem:[%s14 + $0x60] sm:$0xff]
  %v2139 = vld [vmem:[%s14 + $0x68] sm:$0xff]
  %v2140 = vld [vmem:[%s14 + $0x70] sm:$0xff]
  %v2141 = vld [vmem:[%s14 + $0x78] sm:$0xff]
  %v2142 = vld [vmem:[%s15] sm:$0x1]
  %v2144 = vlaneseq
  %v2145 = vshrl.u32 %v2144, 7
  %v2146 = vsub.s32 0, %v2145
  %v2147 = vrot.slane %v2142, %v2146
  %2149 = vmatprep.subr.mxu0 0.0
  %2150 = vmatpush1.msra.mxu0 %v2141
  %2151 = vmatprep.subr.mxu0 0.0
  %2152 = vmatpush1.msra.mxu0 %v2140
  %2153 = vmatprep.subr.mxu0 0.0
  %2154 = vmatpush1.msra.mxu0 %v2139
  %2155 = vmatprep.subr.mxu0 0.0
  %2156 = vmatpush1.msra.mxu0 %v2138
  %2157 = vmatprep.subr.mxu0 0.0
  %2158 = vmatpush1.msra.mxu0 %v2137
  %2159 = vmatprep.subr.mxu0 0.0
  %2160 = vmatpush1.msra.mxu0 %v2136
  %2161 = vmatprep.subr.mxu0 0.0
  %2162 = vmatpush1.msra.mxu0 %v2135
  %2163 = vmatprep.subr.mxu0 0.0
  %2164 = vmatpush1.msra.mxu0 %v2134
  %2165 = vmatprep.subr.mxu0 0.0
  %2166 = vmatpush1.msra.mxu0 %v2133
  %2167 = vmatprep.subr.mxu0 0.0
  %2168 = vmatpush1.msra.mxu0 %v2132
  %2169 = vmatprep.subr.mxu0 0.0
  %2170 = vmatpush1.msra.mxu0 %v2131
  %2171 = vmatprep.subr.mxu0 0.0
  %2172 = vmatpush1.msra.mxu0 %v2130
  %2173 = vmatprep.subr.mxu0 0.0
  %2174 = vmatpush1.msra.mxu0 %v2129
  %2175 = vmatprep.subr.mxu0 0.0
  %2176 = vmatpush1.msra.mxu0 %v2128
  %2177 = vmatprep.subr.mxu0 0.0
  %2178 = vmatpush1.msra.mxu0 %v2127
  %2179 = vmatprep.subr.mxu0 0.0
  %2180 = vmatpush1.msra.mxu0 %v2126
  %2181 = vmatprep.subr.mxu0 0.0
  %2182 = vmatpush2.msra.mxu0 0.0
  %2183 = vmatprep.subr.mxu0 0.0
  %2184 = vmatpush2.msra.mxu0 0.0
  %2185 = vmatprep.subr.mxu0 0.0
  %2186 = vmatpush2.msra.mxu0 0.0
  %2187 = vmatprep.subr.mxu0 0.0
  %2188 = vmatpush2.msra.mxu0 0.0
  %2189 = vmatprep.subr.mxu0 0.0
  %2190 = vmatpush2.msra.mxu0 0.0
  %2191 = vmatprep.subr.mxu0 0.0
  %2192 = vmatpush2.msra.mxu0 0.0
  %2193 = vmatprep.subr.mxu0 0.0
  %2194 = vmatpush2.msra.mxu0 0.0
  %2195 = vmatprep.subr.mxu0 0.0
  %2196 = vmatpush2.msra.mxu0 0.0
  %2197 = vmatprep.subr.mxu0 0.0
  %2198 = vmatpush2.msra.mxu0 0.0
  %2199 = vmatprep.subr.mxu0 0.0
  %2200 = vmatpush2.msra.mxu0 0.0
  %2201 = vmatprep.subr.mxu0 0.0
  %2202 = vmatpush2.msra.mxu0 0.0
  %2203 = vmatprep.subr.mxu0 0.0
  %2204 = vmatpush2.msra.mxu0 0.0
  %2205 = vmatprep.subr.mxu0 0.0
  %2206 = vmatpush2.msra.mxu0 0.0
  %2207 = vmatprep.subr.mxu0 0.0
  %2208 = vmatpush2.msra.mxu0 0.0
  %2209 = vmatprep.subr.mxu0 0.0
  %2210 = vmatpush2.msra.mxu0 0.0
  %2211 = vmatprep.subr.mxu0 0.0
  %2212 = vmatpush2.msra.mxu0 0.0
  %2213 = vmatprep.mubr.f32.mxu0 0.0
  %2214 = vmatmul.mubr.f32.gmra.mxu0 %v2124
  %v2215 = vpop.f32.mrf.mxu0
  %v2216 = vadd.f32 %v2147, %v2215
  %v2217 = vpop.f32.mrf.mxu0
  %2218 = vmatprep.mubr.f32.mxu0 0.0
  %2219 = vmatmul.mubr.f32.gmra.mxu0 %v2125
  %v2220 = vpop.f32.mrf.mxu0
  %v2221 = vadd.f32 %v2147, %v2220
  %v2222 = vpop.f32.mrf.mxu0
  %2223 = vdwg.mxu0
  %v2224 = vadd.f32 %v1978, %v2216
  %v2225 = vadd.f32 %v1979, %v2221
  %s2226 = scalar_lea.vmem %s4, 1
  %v2227 = vld [vmem:[%s2226] sm:$0x1]
  %s2228 = scalar_lea.vmem %s5, 1
  %v2229 = vld [vmem:[%s2228] sm:$0x1]
  %v2230 = vsel %vm181, %v2224, 0.0
  %2231 = vadd.xlane.f32.xlu0 %v2230
  %v2232 = vpop.xlane.xlu0 %2231
  %v2233 = vsel %vm185, %v2225, 0.0
  %2234 = vadd.xlane.f32.xlu0 %v2233
  %v2235 = vpop.xlane.xlu0 %2234
  %v2236 = vmul.f32 %v2232, %v189
  %v2237 = vmul.f32 %v2235, %v189
  %v2238 = vsub.f32 %v2224, %v2236
  %v2239 = vsub.f32 %v2225, %v2237
  %v2240 = vmul.f32 %v2238, %v2238
  %v2241 = vmul.f32 %v2239, %v2239
  %v2242 = vsel %vm181, %v2240, 0.0
  %2243 = vadd.xlane.f32.xlu0 %v2242
  %v2244 = vpop.xlane.xlu0 %2243
  %v2245 = vsel %vm185, %v2241, 0.0
  %2246 = vadd.xlane.f32.xlu0 %v2245
  %v2247 = vpop.xlane.xlu0 %2246
  %v2248 = vmul.f32 %v2244, %v189
  %v2249 = vmul.f32 %v2247, %v189
  %v2250 = vadd.f32 %v2248, 1e-05
  %v2251 = vadd.f32 %v2249, 1e-05
  %v2252 = vrsqrt.pop %v2250
  %v2253 = vrsqrt.pop %v2251
  %v2254 = vmul.f32 %v2238, %v2252
  %v2255 = vmul.f32 %v2239, %v2253
  %v2257 = vlaneseq
  %v2258 = vshrl.u32 %v2257, 7
  %v2259 = vsub.s32 0, %v2258
  %v2260 = vrot.slane %v2227, %v2259
  %v2262 = vmul.f32 %v2254, %v2260
  %v2263 = vmul.f32 %v2255, %v2260
  %v2265 = vlaneseq
  %v2266 = vshrl.u32 %v2265, 7
  %v2267 = vsub.s32 0, %v2266
  %v2268 = vrot.slane %v2229, %v2267
  %v2270 = vadd.f32 %v2262, %v2268
  %v2271 = vadd.f32 %v2263, %v2268
  %s2272 = scalar_lea.vmem %s6, 128
  %v2273 = vld [vmem:[%s2272] sm:$0xff]
  %v2274 = vld [vmem:[%s2272 + $0x8] sm:$0xff]
  %v2275 = vld [vmem:[%s2272 + $0x10] sm:$0xff]
  %v2276 = vld [vmem:[%s2272 + $0x18] sm:$0xff]
  %v2278 = vsel %vm181, %v2270, 0
  %v2281 = vsel %vm181, %v2271, 0
  %2283 = vmatprep.subr.mxu0 0.0
  %2284 = vmatpush1.msra.mxu0 0.0
  %2285 = vmatprep.subr.mxu0 0.0
  %2286 = vmatpush1.msra.mxu0 0.0
  %2287 = vmatprep.subr.mxu0 0.0
  %2288 = vmatpush1.msra.mxu0 0.0
  %2289 = vmatprep.subr.mxu0 0.0
  %2290 = vmatpush1.msra.mxu0 0.0
  %2291 = vmatprep.subr.mxu0 0.0
  %2292 = vmatpush1.msra.mxu0 0.0
  %2293 = vmatprep.subr.mxu0 0.0
  %2294 = vmatpush1.msra.mxu0 0.0
  %2295 = vmatprep.subr.mxu0 0.0
  %2296 = vmatpush1.msra.mxu0 0.0
  %2297 = vmatprep.subr.mxu0 0.0
  %2298 = vmatpush1.msra.mxu0 0.0
  %2299 = vmatprep.subr.mxu0 0.0
  %2300 = vmatpush1.msra.mxu0 0.0
  %2301 = vmatprep.subr.mxu0 0.0
  %2302 = vmatpush1.msra.mxu0 0.0
  %2303 = vmatprep.subr.mxu0 0.0
  %2304 = vmatpush1.msra.mxu0 0.0
  %2305 = vmatprep.subr.mxu0 0.0
  %2306 = vmatpush1.msra.mxu0 0.0
  %2307 = vmatprep.subr.mxu0 0.0
  %2308 = vmatpush1.msra.mxu0 %v2276
  %2309 = vmatprep.subr.mxu0 0.0
  %2310 = vmatpush1.msra.mxu0 %v2275
  %2311 = vmatprep.subr.mxu0 0.0
  %2312 = vmatpush1.msra.mxu0 %v2274
  %2313 = vmatprep.subr.mxu0 0.0
  %2314 = vmatpush1.msra.mxu0 %v2273
  %2315 = vmatprep.subr.mxu0 0.0
  %2316 = vmatpush2.msra.mxu0 0.0
  %2317 = vmatprep.subr.mxu0 0.0
  %2318 = vmatpush2.msra.mxu0 0.0
  %2319 = vmatprep.subr.mxu0 0.0
  %2320 = vmatpush2.msra.mxu0 0.0
  %2321 = vmatprep.subr.mxu0 0.0
  %2322 = vmatpush2.msra.mxu0 0.0
  %2323 = vmatprep.subr.mxu0 0.0
  %2324 = vmatpush2.msra.mxu0 0.0
  %2325 = vmatprep.subr.mxu0 0.0
  %2326 = vmatpush2.msra.mxu0 0.0
  %2327 = vmatprep.subr.mxu0 0.0
  %2328 = vmatpush2.msra.mxu0 0.0
  %2329 = vmatprep.subr.mxu0 0.0
  %2330 = vmatpush2.msra.mxu0 0.0
  %2331 = vmatprep.subr.mxu0 0.0
  %2332 = vmatpush2.msra.mxu0 0.0
  %2333 = vmatprep.subr.mxu0 0.0
  %2334 = vmatpush2.msra.mxu0 0.0
  %2335 = vmatprep.subr.mxu0 0.0
  %2336 = vmatpush2.msra.mxu0 0.0
  %2337 = vmatprep.subr.mxu0 0.0
  %2338 = vmatpush2.msra.mxu0 0.0
  %2339 = vmatprep.subr.mxu0 0.0
  %2340 = vmatpush2.msra.mxu0 0.0
  %2341 = vmatprep.subr.mxu0 0.0
  %2342 = vmatpush2.msra.mxu0 0.0
  %2343 = vmatprep.subr.mxu0 0.0
  %2344 = vmatpush2.msra.mxu0 0.0
  %2345 = vmatprep.subr.mxu0 0.0
  %2346 = vmatpush2.msra.mxu0 0.0
  %2347 = vmatprep.mubr.f32.mxu0 0.0
  %2348 = vmatmul.mubr.f32.gmra.mxu0 %v2278
  %v2349 = vpop.f32.mrf.mxu0
  %v2350 = vadd.f32 0.0, %v2349
  %v2351 = vpop.f32.mrf.mxu0
  %2352 = vmatprep.mubr.f32.mxu0 0.0
  %2353 = vmatmul.mubr.f32.gmra.mxu0 %v2281
  %v2354 = vpop.f32.mrf.mxu0
  %v2355 = vadd.f32 0.0, %v2354
  %v2356 = vpop.f32.mrf.mxu0
  %2357 = vdwg.mxu0
  %s2358 = scalar_lea.vmem %s7, 128
  %v2359 = vld [vmem:[%s2358] sm:$0xff]
  %v2360 = vld [vmem:[%s2358 + $0x8] sm:$0xff]
  %v2361 = vld [vmem:[%s2358 + $0x10] sm:$0xff]
  %v2362 = vld [vmem:[%s2358 + $0x18] sm:$0xff]
  %2363 = vmatprep.subr.mxu0 0.0
  %2364 = vmatpush1.msra.mxu0 0.0
  %2365 = vmatprep.subr.mxu0 0.0
  %2366 = vmatpush1.msra.mxu0 0.0
  %2367 = vmatprep.subr.mxu0 0.0
  %2368 = vmatpush1.msra.mxu0 0.0
  %2369 = vmatprep.subr.mxu0 0.0
  %2370 = vmatpush1.msra.mxu0 0.0
  %2371 = vmatprep.subr.mxu0 0.0
  %2372 = vmatpush1.msra.mxu0 0.0
  %2373 = vmatprep.subr.mxu0 0.0
  %2374 = vmatpush1.msra.mxu0 0.0
  %2375 = vmatprep.subr.mxu0 0.0
  %2376 = vmatpush1.msra.mxu0 0.0
  %2377 = vmatprep.subr.mxu0 0.0
  %2378 = vmatpush1.msra.mxu0 0.0
  %2379 = vmatprep.subr.mxu0 0.0
  %2380 = vmatpush1.msra.mxu0 0.0
  %2381 = vmatprep.subr.mxu0 0.0
  %2382 = vmatpush1.msra.mxu0 0.0
  %2383 = vmatprep.subr.mxu0 0.0
  %2384 = vmatpush1.msra.mxu0 0.0
  %2385 = vmatprep.subr.mxu0 0.0
  %2386 = vmatpush1.msra.mxu0 0.0
  %2387 = vmatprep.subr.mxu0 0.0
  %2388 = vmatpush1.msra.mxu0 %v2362
  %2389 = vmatprep.subr.mxu0 0.0
  %2390 = vmatpush1.msra.mxu0 %v2361
  %2391 = vmatprep.subr.mxu0 0.0
  %2392 = vmatpush1.msra.mxu0 %v2360
  %2393 = vmatprep.subr.mxu0 0.0
  %2394 = vmatpush1.msra.mxu0 %v2359
  %2395 = vmatprep.subr.mxu0 0.0
  %2396 = vmatpush2.msra.mxu0 0.0
  %2397 = vmatprep.subr.mxu0 0.0
  %2398 = vmatpush2.msra.mxu0 0.0
  %2399 = vmatprep.subr.mxu0 0.0
  %2400 = vmatpush2.msra.mxu0 0.0
  %2401 = vmatprep.subr.mxu0 0.0
  %2402 = vmatpush2.msra.mxu0 0.0
  %2403 = vmatprep.subr.mxu0 0.0
  %2404 = vmatpush2.msra.mxu0 0.0
  %2405 = vmatprep.subr.mxu0 0.0
  %2406 = vmatpush2.msra.mxu0 0.0
  %2407 = vmatprep.subr.mxu0 0.0
  %2408 = vmatpush2.msra.mxu0 0.0
  %2409 = vmatprep.subr.mxu0 0.0
  %2410 = vmatpush2.msra.mxu0 0.0
  %2411 = vmatprep.subr.mxu0 0.0
  %2412 = vmatpush2.msra.mxu0 0.0
  %2413 = vmatprep.subr.mxu0 0.0
  %2414 = vmatpush2.msra.mxu0 0.0
  %2415 = vmatprep.subr.mxu0 0.0
  %2416 = vmatpush2.msra.mxu0 0.0
  %2417 = vmatprep.subr.mxu0 0.0
  %2418 = vmatpush2.msra.mxu0 0.0
  %2419 = vmatprep.subr.mxu0 0.0
  %2420 = vmatpush2.msra.mxu0 0.0
  %2421 = vmatprep.subr.mxu0 0.0
  %2422 = vmatpush2.msra.mxu0 0.0
  %2423 = vmatprep.subr.mxu0 0.0
  %2424 = vmatpush2.msra.mxu0 0.0
  %2425 = vmatprep.subr.mxu0 0.0
  %2426 = vmatpush2.msra.mxu0 0.0
  %2427 = vmatprep.mubr.f32.mxu0 0.0
  %2428 = vmatmul.mubr.f32.gmra.mxu0 %v2278
  %v2429 = vpop.f32.mrf.mxu0
  %v2430 = vadd.f32 0.0, %v2429
  %v2431 = vpop.f32.mrf.mxu0
  %2432 = vmatprep.mubr.f32.mxu0 0.0
  %2433 = vmatmul.mubr.f32.gmra.mxu0 %v2281
  %v2434 = vpop.f32.mrf.mxu0
  %v2435 = vadd.f32 0.0, %v2434
  %v2436 = vpop.f32.mrf.mxu0
  %2437 = vdwg.mxu0
  %s2438 = scalar_lea.vmem %s8, 128
  %v2439 = vld [vmem:[%s2438] sm:$0xff]
  %v2440 = vld [vmem:[%s2438 + $0x8] sm:$0xff]
  %v2441 = vld [vmem:[%s2438 + $0x10] sm:$0xff]
  %v2442 = vld [vmem:[%s2438 + $0x18] sm:$0xff]
  %2443 = vmatprep.subr.mxu0 0.0
  %2444 = vmatpush1.msra.mxu0 0.0
  %2445 = vmatprep.subr.mxu0 0.0
  %2446 = vmatpush1.msra.mxu0 0.0
  %2447 = vmatprep.subr.mxu0 0.0
  %2448 = vmatpush1.msra.mxu0 0.0
  %2449 = vmatprep.subr.mxu0 0.0
  %2450 = vmatpush1.msra.mxu0 0.0
  %2451 = vmatprep.subr.mxu0 0.0
  %2452 = vmatpush1.msra.mxu0 0.0
  %2453 = vmatprep.subr.mxu0 0.0
  %2454 = vmatpush1.msra.mxu0 0.0
  %2455 = vmatprep.subr.mxu0 0.0
  %2456 = vmatpush1.msra.mxu0 0.0
  %2457 = vmatprep.subr.mxu0 0.0
  %2458 = vmatpush1.msra.mxu0 0.0
  %2459 = vmatprep.subr.mxu0 0.0
  %2460 = vmatpush1.msra.mxu0 0.0
  %2461 = vmatprep.subr.mxu0 0.0
  %2462 = vmatpush1.msra.mxu0 0.0
  %2463 = vmatprep.subr.mxu0 0.0
  %2464 = vmatpush1.msra.mxu0 0.0
  %2465 = vmatprep.subr.mxu0 0.0
  %2466 = vmatpush1.msra.mxu0 0.0
  %2467 = vmatprep.subr.mxu0 0.0
  %2468 = vmatpush1.msra.mxu0 %v2442
  %2469 = vmatprep.subr.mxu0 0.0
  %2470 = vmatpush1.msra.mxu0 %v2441
  %2471 = vmatprep.subr.mxu0 0.0
  %2472 = vmatpush1.msra.mxu0 %v2440
  %2473 = vmatprep.subr.mxu0 0.0
  %2474 = vmatpush1.msra.mxu0 %v2439
  %2475 = vmatprep.subr.mxu0 0.0
  %2476 = vmatpush2.msra.mxu0 0.0
  %2477 = vmatprep.subr.mxu0 0.0
  %2478 = vmatpush2.msra.mxu0 0.0
  %2479 = vmatprep.subr.mxu0 0.0
  %2480 = vmatpush2.msra.mxu0 0.0
  %2481 = vmatprep.subr.mxu0 0.0
  %2482 = vmatpush2.msra.mxu0 0.0
  %2483 = vmatprep.subr.mxu0 0.0
  %2484 = vmatpush2.msra.mxu0 0.0
  %2485 = vmatprep.subr.mxu0 0.0
  %2486 = vmatpush2.msra.mxu0 0.0
  %2487 = vmatprep.subr.mxu0 0.0
  %2488 = vmatpush2.msra.mxu0 0.0
  %2489 = vmatprep.subr.mxu0 0.0
  %2490 = vmatpush2.msra.mxu0 0.0
  %2491 = vmatprep.subr.mxu0 0.0
  %2492 = vmatpush2.msra.mxu0 0.0
  %2493 = vmatprep.subr.mxu0 0.0
  %2494 = vmatpush2.msra.mxu0 0.0
  %2495 = vmatprep.subr.mxu0 0.0
  %2496 = vmatpush2.msra.mxu0 0.0
  %2497 = vmatprep.subr.mxu0 0.0
  %2498 = vmatpush2.msra.mxu0 0.0
  %2499 = vmatprep.subr.mxu0 0.0
  %2500 = vmatpush2.msra.mxu0 0.0
  %2501 = vmatprep.subr.mxu0 0.0
  %2502 = vmatpush2.msra.mxu0 0.0
  %2503 = vmatprep.subr.mxu0 0.0
  %2504 = vmatpush2.msra.mxu0 0.0
  %2505 = vmatprep.subr.mxu0 0.0
  %2506 = vmatpush2.msra.mxu0 0.0
  %2507 = vmatprep.mubr.f32.mxu0 0.0
  %2508 = vmatmul.mubr.f32.gmra.mxu0 %v2278
  %v2509 = vpop.f32.mrf.mxu0
  %v2510 = vadd.f32 0.0, %v2509
  %v2511 = vpop.f32.mrf.mxu0
  %2512 = vmatprep.mubr.f32.mxu0 0.0
  %2513 = vmatmul.mubr.f32.gmra.mxu0 %v2281
  %v2514 = vpop.f32.mrf.mxu0
  %v2515 = vadd.f32 0.0, %v2514
  %v2516 = vpop.f32.mrf.mxu0
  %2517 = vdwg.mxu0
  %v2519 = vsel %vm469, %v2350, 0
  %v2522 = vsel %vm469, %v2355, 0
  %v2525 = vsel %vm469, %v2430, 0
  %v2528 = vsel %vm469, %v2435, 0
  %2530 = vmatprep.subr.mxu0 0.0
  %2531 = vmatpush1.xpose.msra.mxu0 0.0
  %2532 = vmatprep.subr.mxu0 0.0
  %2533 = vmatpush1.xpose.msra.mxu0 0.0
  %2534 = vmatprep.subr.mxu0 0.0
  %2535 = vmatpush1.xpose.msra.mxu0 0.0
  %2536 = vmatprep.subr.mxu0 0.0
  %2537 = vmatpush1.xpose.msra.mxu0 0.0
  %2538 = vmatprep.subr.mxu0 0.0
  %2539 = vmatpush1.xpose.msra.mxu0 0.0
  %2540 = vmatprep.subr.mxu0 0.0
  %2541 = vmatpush1.xpose.msra.mxu0 0.0
  %2542 = vmatprep.subr.mxu0 0.0
  %2543 = vmatpush1.xpose.msra.mxu0 0.0
  %2544 = vmatprep.subr.mxu0 0.0
  %2545 = vmatpush1.xpose.msra.mxu0 0.0
  %2546 = vmatprep.subr.mxu0 0.0
  %2547 = vmatpush1.xpose.msra.mxu0 0.0
  %2548 = vmatprep.subr.mxu0 0.0
  %2549 = vmatpush1.xpose.msra.mxu0 0.0
  %2550 = vmatprep.subr.mxu0 0.0
  %2551 = vmatpush1.xpose.msra.mxu0 0.0
  %2552 = vmatprep.subr.mxu0 0.0
  %2553 = vmatpush1.xpose.msra.mxu0 0.0
  %2554 = vmatprep.subr.mxu0 0.0
  %2555 = vmatpush1.xpose.msra.mxu0 0.0
  %2556 = vmatprep.subr.mxu0 0.0
  %2557 = vmatpush1.xpose.msra.mxu0 0.0
  %2558 = vmatprep.subr.mxu0 0.0
  %2559 = vmatpush1.xpose.msra.mxu0 %v2528
  %2560 = vmatprep.subr.mxu0 0.0
  %2561 = vmatpush1.xpose.msra.mxu0 %v2525
  %2562 = vmatprep.subr.mxu0 0.0
  %2563 = vmatpush2.xpose.msra.mxu0 0.0
  %2564 = vmatprep.subr.mxu0 0.0
  %2565 = vmatpush2.xpose.msra.mxu0 0.0
  %2566 = vmatprep.subr.mxu0 0.0
  %2567 = vmatpush2.xpose.msra.mxu0 0.0
  %2568 = vmatprep.subr.mxu0 0.0
  %2569 = vmatpush2.xpose.msra.mxu0 0.0
  %2570 = vmatprep.subr.mxu0 0.0
  %2571 = vmatpush2.xpose.msra.mxu0 0.0
  %2572 = vmatprep.subr.mxu0 0.0
  %2573 = vmatpush2.xpose.msra.mxu0 0.0
  %2574 = vmatprep.subr.mxu0 0.0
  %2575 = vmatpush2.xpose.msra.mxu0 0.0
  %2576 = vmatprep.subr.mxu0 0.0
  %2577 = vmatpush2.xpose.msra.mxu0 0.0
  %2578 = vmatprep.subr.mxu0 0.0
  %2579 = vmatpush2.xpose.msra.mxu0 0.0
  %2580 = vmatprep.subr.mxu0 0.0
  %2581 = vmatpush2.xpose.msra.mxu0 0.0
  %2582 = vmatprep.subr.mxu0 0.0
  %2583 = vmatpush2.xpose.msra.mxu0 0.0
  %2584 = vmatprep.subr.mxu0 0.0
  %2585 = vmatpush2.xpose.msra.mxu0 0.0
  %2586 = vmatprep.subr.mxu0 0.0
  %2587 = vmatpush2.xpose.msra.mxu0 0.0
  %2588 = vmatprep.subr.mxu0 0.0
  %2589 = vmatpush2.xpose.msra.mxu0 0.0
  %2590 = vmatprep.subr.mxu0 0.0
  %2591 = vmatpush2.xpose.msra.mxu0 0.0
  %2592 = vmatprep.subr.mxu0 0.0
  %2593 = vmatpush2.xpose.msra.mxu0 0.0
  %2594 = vmatprep.mubr.f32.mxu0 0.0
  %2595 = vmatmul.mubr.f32.gmra.mxu0 %v2519
  %v2596 = vpop.f32.mrf.mxu0
  %v2597 = vadd.f32 %v177, %v2596
  %v2598 = vpop.f32.mrf.mxu0
  %2599 = vmatprep.mubr.f32.mxu0 0.0
  %2600 = vmatmul.mubr.f32.gmra.mxu0 %v2522
  %v2601 = vpop.f32.mrf.mxu0
  %v2602 = vadd.f32 %v178, %v2601
  %v2603 = vpop.f32.mrf.mxu0
  %2604 = vdwg.mxu0
  %v2605 = vsel %vm557, %v2597, -inf
  %2606 = vmax.xlane.f32.xlu0 %v2605
  %v2607 = vpop.xlane.xlu0 %2606
  %v2608 = vsel %vm561, %v2602, -inf
  %2609 = vmax.xlane.f32.xlu0 %v2608
  %v2610 = vpop.xlane.xlu0 %2609
  %v2611 = vsub.f32 %v2597, %v2607
  %v2612 = vsub.f32 %v2602, %v2610
  %v2613 = vmul.f32 %v2611, 1.442695
  %v2614 = vpow.pop %v2613
  %v2615 = vmul.f32 %v2612, 1.442695
  %v2616 = vpow.pop %v2615
  %v2617 = vsel %vm557, %v2614, 0.0
  %2618 = vadd.xlane.f32.xlu0 %v2617
  %v2619 = vpop.xlane.xlu0 %2618
  %v2620 = vsel %vm561, %v2616, 0.0
  %2621 = vadd.xlane.f32.xlu0 %v2620
  %v2622 = vpop.xlane.xlu0 %2621
  %v2623 = vrcp.pop %v2619
  %v2624 = vrcp.pop %v2622
  %v2625 = vmul.f32 %v2614, %v2623
  %v2626 = vmul.f32 %v2616, %v2624
  %s2627 = scalar_lea.vmem %s6, 160
  %v2628 = vld [vmem:[%s2627] sm:$0xff]
  %v2629 = vld [vmem:[%s2627 + $0x8] sm:$0xff]
  %v2630 = vld [vmem:[%s2627 + $0x10] sm:$0xff]
  %v2631 = vld [vmem:[%s2627 + $0x18] sm:$0xff]
  %2632 = vmatprep.subr.mxu0 0.0
  %2633 = vmatpush1.msra.mxu0 0.0
  %2634 = vmatprep.subr.mxu0 0.0
  %2635 = vmatpush1.msra.mxu0 0.0
  %2636 = vmatprep.subr.mxu0 0.0
  %2637 = vmatpush1.msra.mxu0 0.0
  %2638 = vmatprep.subr.mxu0 0.0
  %2639 = vmatpush1.msra.mxu0 0.0
  %2640 = vmatprep.subr.mxu0 0.0
  %2641 = vmatpush1.msra.mxu0 0.0
  %2642 = vmatprep.subr.mxu0 0.0
  %2643 = vmatpush1.msra.mxu0 0.0
  %2644 = vmatprep.subr.mxu0 0.0
  %2645 = vmatpush1.msra.mxu0 0.0
  %2646 = vmatprep.subr.mxu0 0.0
  %2647 = vmatpush1.msra.mxu0 0.0
  %2648 = vmatprep.subr.mxu0 0.0
  %2649 = vmatpush1.msra.mxu0 0.0
  %2650 = vmatprep.subr.mxu0 0.0
  %2651 = vmatpush1.msra.mxu0 0.0
  %2652 = vmatprep.subr.mxu0 0.0
  %2653 = vmatpush1.msra.mxu0 0.0
  %2654 = vmatprep.subr.mxu0 0.0
  %2655 = vmatpush1.msra.mxu0 0.0
  %2656 = vmatprep.subr.mxu0 0.0
  %2657 = vmatpush1.msra.mxu0 %v2631
  %2658 = vmatprep.subr.mxu0 0.0
  %2659 = vmatpush1.msra.mxu0 %v2630
  %2660 = vmatprep.subr.mxu0 0.0
  %2661 = vmatpush1.msra.mxu0 %v2629
  %2662 = vmatprep.subr.mxu0 0.0
  %2663 = vmatpush1.msra.mxu0 %v2628
  %2664 = vmatprep.subr.mxu0 0.0
  %2665 = vmatpush2.msra.mxu0 0.0
  %2666 = vmatprep.subr.mxu0 0.0
  %2667 = vmatpush2.msra.mxu0 0.0
  %2668 = vmatprep.subr.mxu0 0.0
  %2669 = vmatpush2.msra.mxu0 0.0
  %2670 = vmatprep.subr.mxu0 0.0
  %2671 = vmatpush2.msra.mxu0 0.0
  %2672 = vmatprep.subr.mxu0 0.0
  %2673 = vmatpush2.msra.mxu0 0.0
  %2674 = vmatprep.subr.mxu0 0.0
  %2675 = vmatpush2.msra.mxu0 0.0
  %2676 = vmatprep.subr.mxu0 0.0
  %2677 = vmatpush2.msra.mxu0 0.0
  %2678 = vmatprep.subr.mxu0 0.0
  %2679 = vmatpush2.msra.mxu0 0.0
  %2680 = vmatprep.subr.mxu0 0.0
  %2681 = vmatpush2.msra.mxu0 0.0
  %2682 = vmatprep.subr.mxu0 0.0
  %2683 = vmatpush2.msra.mxu0 0.0
  %2684 = vmatprep.subr.mxu0 0.0
  %2685 = vmatpush2.msra.mxu0 0.0
  %2686 = vmatprep.subr.mxu0 0.0
  %2687 = vmatpush2.msra.mxu0 0.0
  %2688 = vmatprep.subr.mxu0 0.0
  %2689 = vmatpush2.msra.mxu0 0.0
  %2690 = vmatprep.subr.mxu0 0.0
  %2691 = vmatpush2.msra.mxu0 0.0
  %2692 = vmatprep.subr.mxu0 0.0
  %2693 = vmatpush2.msra.mxu0 0.0
  %2694 = vmatprep.subr.mxu0 0.0
  %2695 = vmatpush2.msra.mxu0 0.0
  %2696 = vmatprep.mubr.f32.mxu0 0.0
  %2697 = vmatmul.mubr.f32.gmra.mxu0 %v2278
  %v2698 = vpop.f32.mrf.mxu0
  %v2699 = vadd.f32 0.0, %v2698
  %v2700 = vpop.f32.mrf.mxu0
  %2701 = vmatprep.mubr.f32.mxu0 0.0
  %2702 = vmatmul.mubr.f32.gmra.mxu0 %v2281
  %v2703 = vpop.f32.mrf.mxu0
  %v2704 = vadd.f32 0.0, %v2703
  %v2705 = vpop.f32.mrf.mxu0
  %2706 = vdwg.mxu0
  %s2707 = scalar_lea.vmem %s7, 160
  %v2708 = vld [vmem:[%s2707] sm:$0xff]
  %v2709 = vld [vmem:[%s2707 + $0x8] sm:$0xff]
  %v2710 = vld [vmem:[%s2707 + $0x10] sm:$0xff]
  %v2711 = vld [vmem:[%s2707 + $0x18] sm:$0xff]
  %2712 = vmatprep.subr.mxu0 0.0
  %2713 = vmatpush1.msra.mxu0 0.0
  %2714 = vmatprep.subr.mxu0 0.0
  %2715 = vmatpush1.msra.mxu0 0.0
  %2716 = vmatprep.subr.mxu0 0.0
  %2717 = vmatpush1.msra.mxu0 0.0
  %2718 = vmatprep.subr.mxu0 0.0
  %2719 = vmatpush1.msra.mxu0 0.0
  %2720 = vmatprep.subr.mxu0 0.0
  %2721 = vmatpush1.msra.mxu0 0.0
  %2722 = vmatprep.subr.mxu0 0.0
  %2723 = vmatpush1.msra.mxu0 0.0
  %2724 = vmatprep.subr.mxu0 0.0
  %2725 = vmatpush1.msra.mxu0 0.0
  %2726 = vmatprep.subr.mxu0 0.0
  %2727 = vmatpush1.msra.mxu0 0.0
  %2728 = vmatprep.subr.mxu0 0.0
  %2729 = vmatpush1.msra.mxu0 0.0
  %2730 = vmatprep.subr.mxu0 0.0
  %2731 = vmatpush1.msra.mxu0 0.0
  %2732 = vmatprep.subr.mxu0 0.0
  %2733 = vmatpush1.msra.mxu0 0.0
  %2734 = vmatprep.subr.mxu0 0.0
  %2735 = vmatpush1.msra.mxu0 0.0
  %2736 = vmatprep.subr.mxu0 0.0
  %2737 = vmatpush1.msra.mxu0 %v2711
  %2738 = vmatprep.subr.mxu0 0.0
  %2739 = vmatpush1.msra.mxu0 %v2710
  %2740 = vmatprep.subr.mxu0 0.0
  %2741 = vmatpush1.msra.mxu0 %v2709
  %2742 = vmatprep.subr.mxu0 0.0
  %2743 = vmatpush1.msra.mxu0 %v2708
  %2744 = vmatprep.subr.mxu0 0.0
  %2745 = vmatpush2.msra.mxu0 0.0
  %2746 = vmatprep.subr.mxu0 0.0
  %2747 = vmatpush2.msra.mxu0 0.0
  %2748 = vmatprep.subr.mxu0 0.0
  %2749 = vmatpush2.msra.mxu0 0.0
  %2750 = vmatprep.subr.mxu0 0.0
  %2751 = vmatpush2.msra.mxu0 0.0
  %2752 = vmatprep.subr.mxu0 0.0
  %2753 = vmatpush2.msra.mxu0 0.0
  %2754 = vmatprep.subr.mxu0 0.0
  %2755 = vmatpush2.msra.mxu0 0.0
  %2756 = vmatprep.subr.mxu0 0.0
  %2757 = vmatpush2.msra.mxu0 0.0
  %2758 = vmatprep.subr.mxu0 0.0
  %2759 = vmatpush2.msra.mxu0 0.0
  %2760 = vmatprep.subr.mxu0 0.0
  %2761 = vmatpush2.msra.mxu0 0.0
  %2762 = vmatprep.subr.mxu0 0.0
  %2763 = vmatpush2.msra.mxu0 0.0
  %2764 = vmatprep.subr.mxu0 0.0
  %2765 = vmatpush2.msra.mxu0 0.0
  %2766 = vmatprep.subr.mxu0 0.0
  %2767 = vmatpush2.msra.mxu0 0.0
  %2768 = vmatprep.subr.mxu0 0.0
  %2769 = vmatpush2.msra.mxu0 0.0
  %2770 = vmatprep.subr.mxu0 0.0
  %2771 = vmatpush2.msra.mxu0 0.0
  %2772 = vmatprep.subr.mxu0 0.0
  %2773 = vmatpush2.msra.mxu0 0.0
  %2774 = vmatprep.subr.mxu0 0.0
  %2775 = vmatpush2.msra.mxu0 0.0
  %2776 = vmatprep.mubr.f32.mxu0 0.0
  %2777 = vmatmul.mubr.f32.gmra.mxu0 %v2278
  %v2778 = vpop.f32.mrf.mxu0
  %v2779 = vadd.f32 0.0, %v2778
  %v2780 = vpop.f32.mrf.mxu0
  %2781 = vmatprep.mubr.f32.mxu0 0.0
  %2782 = vmatmul.mubr.f32.gmra.mxu0 %v2281
  %v2783 = vpop.f32.mrf.mxu0
  %v2784 = vadd.f32 0.0, %v2783
  %v2785 = vpop.f32.mrf.mxu0
  %2786 = vdwg.mxu0
  %s2787 = scalar_lea.vmem %s8, 160
  %v2788 = vld [vmem:[%s2787] sm:$0xff]
  %v2789 = vld [vmem:[%s2787 + $0x8] sm:$0xff]
  %v2790 = vld [vmem:[%s2787 + $0x10] sm:$0xff]
  %v2791 = vld [vmem:[%s2787 + $0x18] sm:$0xff]
  %2792 = vmatprep.subr.mxu0 0.0
  %2793 = vmatpush1.msra.mxu0 0.0
  %2794 = vmatprep.subr.mxu0 0.0
  %2795 = vmatpush1.msra.mxu0 0.0
  %2796 = vmatprep.subr.mxu0 0.0
  %2797 = vmatpush1.msra.mxu0 0.0
  %2798 = vmatprep.subr.mxu0 0.0
  %2799 = vmatpush1.msra.mxu0 0.0
  %2800 = vmatprep.subr.mxu0 0.0
  %2801 = vmatpush1.msra.mxu0 0.0
  %2802 = vmatprep.subr.mxu0 0.0
  %2803 = vmatpush1.msra.mxu0 0.0
  %2804 = vmatprep.subr.mxu0 0.0
  %2805 = vmatpush1.msra.mxu0 0.0
  %2806 = vmatprep.subr.mxu0 0.0
  %2807 = vmatpush1.msra.mxu0 0.0
  %2808 = vmatprep.subr.mxu0 0.0
  %2809 = vmatpush1.msra.mxu0 0.0
  %2810 = vmatprep.subr.mxu0 0.0
  %2811 = vmatpush1.msra.mxu0 0.0
  %2812 = vmatprep.subr.mxu0 0.0
  %2813 = vmatpush1.msra.mxu0 0.0
  %2814 = vmatprep.subr.mxu0 0.0
  %2815 = vmatpush1.msra.mxu0 0.0
  %2816 = vmatprep.subr.mxu0 0.0
  %2817 = vmatpush1.msra.mxu0 %v2791
  %2818 = vmatprep.subr.mxu0 0.0
  %2819 = vmatpush1.msra.mxu0 %v2790
  %2820 = vmatprep.subr.mxu0 0.0
  %2821 = vmatpush1.msra.mxu0 %v2789
  %2822 = vmatprep.subr.mxu0 0.0
  %2823 = vmatpush1.msra.mxu0 %v2788
  %2824 = vmatprep.subr.mxu0 0.0
  %2825 = vmatpush2.msra.mxu0 0.0
  %2826 = vmatprep.subr.mxu0 0.0
  %2827 = vmatpush2.msra.mxu0 0.0
  %2828 = vmatprep.subr.mxu0 0.0
  %2829 = vmatpush2.msra.mxu0 0.0
  %2830 = vmatprep.subr.mxu0 0.0
  %2831 = vmatpush2.msra.mxu0 0.0
  %2832 = vmatprep.subr.mxu0 0.0
  %2833 = vmatpush2.msra.mxu0 0.0
  %2834 = vmatprep.subr.mxu0 0.0
  %2835 = vmatpush2.msra.mxu0 0.0
  %2836 = vmatprep.subr.mxu0 0.0
  %2837 = vmatpush2.msra.mxu0 0.0
  %2838 = vmatprep.subr.mxu0 0.0
  %2839 = vmatpush2.msra.mxu0 0.0
  %2840 = vmatprep.subr.mxu0 0.0
  %2841 = vmatpush2.msra.mxu0 0.0
  %2842 = vmatprep.subr.mxu0 0.0
  %2843 = vmatpush2.msra.mxu0 0.0
  %2844 = vmatprep.subr.mxu0 0.0
  %2845 = vmatpush2.msra.mxu0 0.0
  %2846 = vmatprep.subr.mxu0 0.0
  %2847 = vmatpush2.msra.mxu0 0.0
  %2848 = vmatprep.subr.mxu0 0.0
  %2849 = vmatpush2.msra.mxu0 0.0
  %2850 = vmatprep.subr.mxu0 0.0
  %2851 = vmatpush2.msra.mxu0 0.0
  %2852 = vmatprep.subr.mxu0 0.0
  %2853 = vmatpush2.msra.mxu0 0.0
  %2854 = vmatprep.subr.mxu0 0.0
  %2855 = vmatpush2.msra.mxu0 0.0
  %2856 = vmatprep.mubr.f32.mxu0 0.0
  %2857 = vmatmul.mubr.f32.gmra.mxu0 %v2278
  %v2858 = vpop.f32.mrf.mxu0
  %v2859 = vadd.f32 0.0, %v2858
  %v2860 = vpop.f32.mrf.mxu0
  %2861 = vmatprep.mubr.f32.mxu0 0.0
  %2862 = vmatmul.mubr.f32.gmra.mxu0 %v2281
  %v2863 = vpop.f32.mrf.mxu0
  %v2864 = vadd.f32 0.0, %v2863
  %v2865 = vpop.f32.mrf.mxu0
  %2866 = vdwg.mxu0
  %v2868 = vsel %vm469, %v2699, 0
  %v2871 = vsel %vm469, %v2704, 0
  %v2874 = vsel %vm469, %v2779, 0
  %v2877 = vsel %vm469, %v2784, 0
  %2879 = vmatprep.subr.mxu0 0.0
  %2880 = vmatpush1.xpose.msra.mxu0 0.0
  %2881 = vmatprep.subr.mxu0 0.0
  %2882 = vmatpush1.xpose.msra.mxu0 0.0
  %2883 = vmatprep.subr.mxu0 0.0
  %2884 = vmatpush1.xpose.msra.mxu0 0.0
  %2885 = vmatprep.subr.mxu0 0.0
  %2886 = vmatpush1.xpose.msra.mxu0 0.0
  %2887 = vmatprep.subr.mxu0 0.0
  %2888 = vmatpush1.xpose.msra.mxu0 0.0
  %2889 = vmatprep.subr.mxu0 0.0
  %2890 = vmatpush1.xpose.msra.mxu0 0.0
  %2891 = vmatprep.subr.mxu0 0.0
  %2892 = vmatpush1.xpose.msra.mxu0 0.0
  %2893 = vmatprep.subr.mxu0 0.0
  %2894 = vmatpush1.xpose.msra.mxu0 0.0
  %2895 = vmatprep.subr.mxu0 0.0
  %2896 = vmatpush1.xpose.msra.mxu0 0.0
  %2897 = vmatprep.subr.mxu0 0.0
  %2898 = vmatpush1.xpose.msra.mxu0 0.0
  %2899 = vmatprep.subr.mxu0 0.0
  %2900 = vmatpush1.xpose.msra.mxu0 0.0
  %2901 = vmatprep.subr.mxu0 0.0
  %2902 = vmatpush1.xpose.msra.mxu0 0.0
  %2903 = vmatprep.subr.mxu0 0.0
  %2904 = vmatpush1.xpose.msra.mxu0 0.0
  %2905 = vmatprep.subr.mxu0 0.0
  %2906 = vmatpush1.xpose.msra.mxu0 0.0
  %2907 = vmatprep.subr.mxu0 0.0
  %2908 = vmatpush1.xpose.msra.mxu0 %v2877
  %2909 = vmatprep.subr.mxu0 0.0
  %2910 = vmatpush1.xpose.msra.mxu0 %v2874
  %2911 = vmatprep.subr.mxu0 0.0
  %2912 = vmatpush2.xpose.msra.mxu0 0.0
  %2913 = vmatprep.subr.mxu0 0.0
  %2914 = vmatpush2.xpose.msra.mxu0 0.0
  %2915 = vmatprep.subr.mxu0 0.0
  %2916 = vmatpush2.xpose.msra.mxu0 0.0
  %2917 = vmatprep.subr.mxu0 0.0
  %2918 = vmatpush2.xpose.msra.mxu0 0.0
  %2919 = vmatprep.subr.mxu0 0.0
  %2920 = vmatpush2.xpose.msra.mxu0 0.0
  %2921 = vmatprep.subr.mxu0 0.0
  %2922 = vmatpush2.xpose.msra.mxu0 0.0
  %2923 = vmatprep.subr.mxu0 0.0
  %2924 = vmatpush2.xpose.msra.mxu0 0.0
  %2925 = vmatprep.subr.mxu0 0.0
  %2926 = vmatpush2.xpose.msra.mxu0 0.0
  %2927 = vmatprep.subr.mxu0 0.0
  %2928 = vmatpush2.xpose.msra.mxu0 0.0
  %2929 = vmatprep.subr.mxu0 0.0
  %2930 = vmatpush2.xpose.msra.mxu0 0.0
  %2931 = vmatprep.subr.mxu0 0.0
  %2932 = vmatpush2.xpose.msra.mxu0 0.0
  %2933 = vmatprep.subr.mxu0 0.0
  %2934 = vmatpush2.xpose.msra.mxu0 0.0
  %2935 = vmatprep.subr.mxu0 0.0
  %2936 = vmatpush2.xpose.msra.mxu0 0.0
  %2937 = vmatprep.subr.mxu0 0.0
  %2938 = vmatpush2.xpose.msra.mxu0 0.0
  %2939 = vmatprep.subr.mxu0 0.0
  %2940 = vmatpush2.xpose.msra.mxu0 0.0
  %2941 = vmatprep.subr.mxu0 0.0
  %2942 = vmatpush2.xpose.msra.mxu0 0.0
  %2943 = vmatprep.mubr.f32.mxu0 0.0
  %2944 = vmatmul.mubr.f32.gmra.mxu0 %v2868
  %v2945 = vpop.f32.mrf.mxu0
  %v2946 = vadd.f32 %v177, %v2945
  %v2947 = vpop.f32.mrf.mxu0
  %2948 = vmatprep.mubr.f32.mxu0 0.0
  %2949 = vmatmul.mubr.f32.gmra.mxu0 %v2871
  %v2950 = vpop.f32.mrf.mxu0
  %v2951 = vadd.f32 %v178, %v2950
  %v2952 = vpop.f32.mrf.mxu0
  %2953 = vdwg.mxu0
  %v2954 = vsel %vm557, %v2946, -inf
  %2955 = vmax.xlane.f32.xlu0 %v2954
  %v2956 = vpop.xlane.xlu0 %2955
  %v2957 = vsel %vm561, %v2951, -inf
  %2958 = vmax.xlane.f32.xlu0 %v2957
  %v2959 = vpop.xlane.xlu0 %2958
  %v2960 = vsub.f32 %v2946, %v2956
  %v2961 = vsub.f32 %v2951, %v2959
  %v2962 = vmul.f32 %v2960, 1.442695
  %v2963 = vpow.pop %v2962
  %v2964 = vmul.f32 %v2961, 1.442695
  %v2965 = vpow.pop %v2964
  %v2966 = vsel %vm557, %v2963, 0.0
  %2967 = vadd.xlane.f32.xlu0 %v2966
  %v2968 = vpop.xlane.xlu0 %2967
  %v2969 = vsel %vm561, %v2965, 0.0
  %2970 = vadd.xlane.f32.xlu0 %v2969
  %v2971 = vpop.xlane.xlu0 %2970
  %v2972 = vrcp.pop %v2968
  %v2973 = vrcp.pop %v2971
  %v2974 = vmul.f32 %v2963, %v2972
  %v2975 = vmul.f32 %v2965, %v2973
  %v2977 = vsel %vm557, %v2974, 0
  %v2980 = vsel %vm557, %v2975, 0
  %v2983 = vsel %vm936, %v2864, 0
  %2985 = vmatprep.subr.mxu0 0.0
  %2986 = vmatpush1.msra.mxu0 0.0
  %2987 = vmatprep.subr.mxu0 0.0
  %2988 = vmatpush1.msra.mxu0 0.0
  %2989 = vmatprep.subr.mxu0 0.0
  %2990 = vmatpush1.msra.mxu0 0.0
  %2991 = vmatprep.subr.mxu0 0.0
  %2992 = vmatpush1.msra.mxu0 0.0
  %2993 = vmatprep.subr.mxu0 0.0
  %2994 = vmatpush1.msra.mxu0 0.0
  %2995 = vmatprep.subr.mxu0 0.0
  %2996 = vmatpush1.msra.mxu0 0.0
  %2997 = vmatprep.subr.mxu0 0.0
  %2998 = vmatpush1.msra.mxu0 0.0
  %2999 = vmatprep.subr.mxu0 0.0
  %3000 = vmatpush1.msra.mxu0 0.0
  %3001 = vmatprep.subr.mxu0 0.0
  %3002 = vmatpush1.msra.mxu0 0.0
  %3003 = vmatprep.subr.mxu0 0.0
  %3004 = vmatpush1.msra.mxu0 0.0
  %3005 = vmatprep.subr.mxu0 0.0
  %3006 = vmatpush1.msra.mxu0 0.0
  %3007 = vmatprep.subr.mxu0 0.0
  %3008 = vmatpush1.msra.mxu0 0.0
  %3009 = vmatprep.subr.mxu0 0.0
  %3010 = vmatpush1.msra.mxu0 0.0
  %3011 = vmatprep.subr.mxu0 0.0
  %3012 = vmatpush1.msra.mxu0 0.0
  %3013 = vmatprep.subr.mxu0 0.0
  %3014 = vmatpush1.msra.mxu0 %v2983
  %3015 = vmatprep.subr.mxu0 0.0
  %3016 = vmatpush1.msra.mxu0 %v2859
  %3017 = vmatprep.subr.mxu0 0.0
  %3018 = vmatpush2.msra.mxu0 0.0
  %3019 = vmatprep.subr.mxu0 0.0
  %3020 = vmatpush2.msra.mxu0 0.0
  %3021 = vmatprep.subr.mxu0 0.0
  %3022 = vmatpush2.msra.mxu0 0.0
  %3023 = vmatprep.subr.mxu0 0.0
  %3024 = vmatpush2.msra.mxu0 0.0
  %3025 = vmatprep.subr.mxu0 0.0
  %3026 = vmatpush2.msra.mxu0 0.0
  %3027 = vmatprep.subr.mxu0 0.0
  %3028 = vmatpush2.msra.mxu0 0.0
  %3029 = vmatprep.subr.mxu0 0.0
  %3030 = vmatpush2.msra.mxu0 0.0
  %3031 = vmatprep.subr.mxu0 0.0
  %3032 = vmatpush2.msra.mxu0 0.0
  %3033 = vmatprep.subr.mxu0 0.0
  %3034 = vmatpush2.msra.mxu0 0.0
  %3035 = vmatprep.subr.mxu0 0.0
  %3036 = vmatpush2.msra.mxu0 0.0
  %3037 = vmatprep.subr.mxu0 0.0
  %3038 = vmatpush2.msra.mxu0 0.0
  %3039 = vmatprep.subr.mxu0 0.0
  %3040 = vmatpush2.msra.mxu0 0.0
  %3041 = vmatprep.subr.mxu0 0.0
  %3042 = vmatpush2.msra.mxu0 0.0
  %3043 = vmatprep.subr.mxu0 0.0
  %3044 = vmatpush2.msra.mxu0 0.0
  %3045 = vmatprep.subr.mxu0 0.0
  %3046 = vmatpush2.msra.mxu0 0.0
  %3047 = vmatprep.subr.mxu0 0.0
  %3048 = vmatpush2.msra.mxu0 0.0
  %3049 = vmatprep.mubr.f32.mxu0 0.0
  %3050 = vmatmul.mubr.f32.gmra.mxu0 %v2977
  %v3051 = vpop.f32.mrf.mxu0
  %v3052 = vadd.f32 0.0, %v3051
  %v3053 = vpop.f32.mrf.mxu0
  %3054 = vmatprep.mubr.f32.mxu0 0.0
  %3055 = vmatmul.mubr.f32.gmra.mxu0 %v2980
  %v3056 = vpop.f32.mrf.mxu0
  %v3057 = vadd.f32 0.0, %v3056
  %v3058 = vpop.f32.mrf.mxu0
  %3059 = vdwg.mxu0
  %v3061 = vsel %vm557, %v2625, 0
  %v3064 = vsel %vm557, %v2626, 0
  %v3067 = vsel %vm936, %v2515, 0
  %3069 = vmatprep.subr.mxu0 0.0
  %3070 = vmatpush1.msra.mxu0 0.0
  %3071 = vmatprep.subr.mxu0 0.0
  %3072 = vmatpush1.msra.mxu0 0.0
  %3073 = vmatprep.subr.mxu0 0.0
  %3074 = vmatpush1.msra.mxu0 0.0
  %3075 = vmatprep.subr.mxu0 0.0
  %3076 = vmatpush1.msra.mxu0 0.0
  %3077 = vmatprep.subr.mxu0 0.0
  %3078 = vmatpush1.msra.mxu0 0.0
  %3079 = vmatprep.subr.mxu0 0.0
  %3080 = vmatpush1.msra.mxu0 0.0
  %3081 = vmatprep.subr.mxu0 0.0
  %3082 = vmatpush1.msra.mxu0 0.0
  %3083 = vmatprep.subr.mxu0 0.0
  %3084 = vmatpush1.msra.mxu0 0.0
  %3085 = vmatprep.subr.mxu0 0.0
  %3086 = vmatpush1.msra.mxu0 0.0
  %3087 = vmatprep.subr.mxu0 0.0
  %3088 = vmatpush1.msra.mxu0 0.0
  %3089 = vmatprep.subr.mxu0 0.0
  %3090 = vmatpush1.msra.mxu0 0.0
  %3091 = vmatprep.subr.mxu0 0.0
  %3092 = vmatpush1.msra.mxu0 0.0
  %3093 = vmatprep.subr.mxu0 0.0
  %3094 = vmatpush1.msra.mxu0 0.0
  %3095 = vmatprep.subr.mxu0 0.0
  %3096 = vmatpush1.msra.mxu0 0.0
  %3097 = vmatprep.subr.mxu0 0.0
  %3098 = vmatpush1.msra.mxu0 %v3067
  %3099 = vmatprep.subr.mxu0 0.0
  %3100 = vmatpush1.msra.mxu0 %v2510
  %3101 = vmatprep.subr.mxu0 0.0
  %3102 = vmatpush2.msra.mxu0 0.0
  %3103 = vmatprep.subr.mxu0 0.0
  %3104 = vmatpush2.msra.mxu0 0.0
  %3105 = vmatprep.subr.mxu0 0.0
  %3106 = vmatpush2.msra.mxu0 0.0
  %3107 = vmatprep.subr.mxu0 0.0
  %3108 = vmatpush2.msra.mxu0 0.0
  %3109 = vmatprep.subr.mxu0 0.0
  %3110 = vmatpush2.msra.mxu0 0.0
  %3111 = vmatprep.subr.mxu0 0.0
  %3112 = vmatpush2.msra.mxu0 0.0
  %3113 = vmatprep.subr.mxu0 0.0
  %3114 = vmatpush2.msra.mxu0 0.0
  %3115 = vmatprep.subr.mxu0 0.0
  %3116 = vmatpush2.msra.mxu0 0.0
  %3117 = vmatprep.subr.mxu0 0.0
  %3118 = vmatpush2.msra.mxu0 0.0
  %3119 = vmatprep.subr.mxu0 0.0
  %3120 = vmatpush2.msra.mxu0 0.0
  %3121 = vmatprep.subr.mxu0 0.0
  %3122 = vmatpush2.msra.mxu0 0.0
  %3123 = vmatprep.subr.mxu0 0.0
  %3124 = vmatpush2.msra.mxu0 0.0
  %3125 = vmatprep.subr.mxu0 0.0
  %3126 = vmatpush2.msra.mxu0 0.0
  %3127 = vmatprep.subr.mxu0 0.0
  %3128 = vmatpush2.msra.mxu0 0.0
  %3129 = vmatprep.subr.mxu0 0.0
  %3130 = vmatpush2.msra.mxu0 0.0
  %3131 = vmatprep.subr.mxu0 0.0
  %3132 = vmatpush2.msra.mxu0 0.0
  %3133 = vmatprep.mubr.f32.mxu0 0.0
  %3134 = vmatmul.mubr.f32.gmra.mxu0 %v3061
  %v3135 = vpop.f32.mrf.mxu0
  %v3136 = vadd.f32 %v3052, %v3135
  %v3137 = vpop.f32.mrf.mxu0
  %3138 = vmatprep.mubr.f32.mxu0 0.0
  %3139 = vmatmul.mubr.f32.gmra.mxu0 %v3064
  %v3140 = vpop.f32.mrf.mxu0
  %v3141 = vadd.f32 %v3057, %v3140
  %v3142 = vpop.f32.mrf.mxu0
  %3143 = vdwg.mxu0
  %s3144 = scalar_lea.vmem %s6, 192
  %v3145 = vld [vmem:[%s3144] sm:$0xff]
  %v3146 = vld [vmem:[%s3144 + $0x8] sm:$0xff]
  %v3147 = vld [vmem:[%s3144 + $0x10] sm:$0xff]
  %v3148 = vld [vmem:[%s3144 + $0x18] sm:$0xff]
  %3149 = vmatprep.subr.mxu0 0.0
  %3150 = vmatpush1.msra.mxu0 0.0
  %3151 = vmatprep.subr.mxu0 0.0
  %3152 = vmatpush1.msra.mxu0 0.0
  %3153 = vmatprep.subr.mxu0 0.0
  %3154 = vmatpush1.msra.mxu0 0.0
  %3155 = vmatprep.subr.mxu0 0.0
  %3156 = vmatpush1.msra.mxu0 0.0
  %3157 = vmatprep.subr.mxu0 0.0
  %3158 = vmatpush1.msra.mxu0 0.0
  %3159 = vmatprep.subr.mxu0 0.0
  %3160 = vmatpush1.msra.mxu0 0.0
  %3161 = vmatprep.subr.mxu0 0.0
  %3162 = vmatpush1.msra.mxu0 0.0
  %3163 = vmatprep.subr.mxu0 0.0
  %3164 = vmatpush1.msra.mxu0 0.0
  %3165 = vmatprep.subr.mxu0 0.0
  %3166 = vmatpush1.msra.mxu0 0.0
  %3167 = vmatprep.subr.mxu0 0.0
  %3168 = vmatpush1.msra.mxu0 0.0
  %3169 = vmatprep.subr.mxu0 0.0
  %3170 = vmatpush1.msra.mxu0 0.0
  %3171 = vmatprep.subr.mxu0 0.0
  %3172 = vmatpush1.msra.mxu0 0.0
  %3173 = vmatprep.subr.mxu0 0.0
  %3174 = vmatpush1.msra.mxu0 %v3148
  %3175 = vmatprep.subr.mxu0 0.0
  %3176 = vmatpush1.msra.mxu0 %v3147
  %3177 = vmatprep.subr.mxu0 0.0
  %3178 = vmatpush1.msra.mxu0 %v3146
  %3179 = vmatprep.subr.mxu0 0.0
  %3180 = vmatpush1.msra.mxu0 %v3145
  %3181 = vmatprep.subr.mxu0 0.0
  %3182 = vmatpush2.msra.mxu0 0.0
  %3183 = vmatprep.subr.mxu0 0.0
  %3184 = vmatpush2.msra.mxu0 0.0
  %3185 = vmatprep.subr.mxu0 0.0
  %3186 = vmatpush2.msra.mxu0 0.0
  %3187 = vmatprep.subr.mxu0 0.0
  %3188 = vmatpush2.msra.mxu0 0.0
  %3189 = vmatprep.subr.mxu0 0.0
  %3190 = vmatpush2.msra.mxu0 0.0
  %3191 = vmatprep.subr.mxu0 0.0
  %3192 = vmatpush2.msra.mxu0 0.0
  %3193 = vmatprep.subr.mxu0 0.0
  %3194 = vmatpush2.msra.mxu0 0.0
  %3195 = vmatprep.subr.mxu0 0.0
  %3196 = vmatpush2.msra.mxu0 0.0
  %3197 = vmatprep.subr.mxu0 0.0
  %3198 = vmatpush2.msra.mxu0 0.0
  %3199 = vmatprep.subr.mxu0 0.0
  %3200 = vmatpush2.msra.mxu0 0.0
  %3201 = vmatprep.subr.mxu0 0.0
  %3202 = vmatpush2.msra.mxu0 0.0
  %3203 = vmatprep.subr.mxu0 0.0
  %3204 = vmatpush2.msra.mxu0 0.0
  %3205 = vmatprep.subr.mxu0 0.0
  %3206 = vmatpush2.msra.mxu0 0.0
  %3207 = vmatprep.subr.mxu0 0.0
  %3208 = vmatpush2.msra.mxu0 0.0
  %3209 = vmatprep.subr.mxu0 0.0
  %3210 = vmatpush2.msra.mxu0 0.0
  %3211 = vmatprep.subr.mxu0 0.0
  %3212 = vmatpush2.msra.mxu0 0.0
  %3213 = vmatprep.mubr.f32.mxu0 0.0
  %3214 = vmatmul.mubr.f32.gmra.mxu0 %v2278
  %v3215 = vpop.f32.mrf.mxu0
  %v3216 = vadd.f32 0.0, %v3215
  %v3217 = vpop.f32.mrf.mxu0
  %3218 = vmatprep.mubr.f32.mxu0 0.0
  %3219 = vmatmul.mubr.f32.gmra.mxu0 %v2281
  %v3220 = vpop.f32.mrf.mxu0
  %v3221 = vadd.f32 0.0, %v3220
  %v3222 = vpop.f32.mrf.mxu0
  %3223 = vdwg.mxu0
  %s3224 = scalar_lea.vmem %s7, 192
  %v3225 = vld [vmem:[%s3224] sm:$0xff]
  %v3226 = vld [vmem:[%s3224 + $0x8] sm:$0xff]
  %v3227 = vld [vmem:[%s3224 + $0x10] sm:$0xff]
  %v3228 = vld [vmem:[%s3224 + $0x18] sm:$0xff]
  %3229 = vmatprep.subr.mxu0 0.0
  %3230 = vmatpush1.msra.mxu0 0.0
  %3231 = vmatprep.subr.mxu0 0.0
  %3232 = vmatpush1.msra.mxu0 0.0
  %3233 = vmatprep.subr.mxu0 0.0
  %3234 = vmatpush1.msra.mxu0 0.0
  %3235 = vmatprep.subr.mxu0 0.0
  %3236 = vmatpush1.msra.mxu0 0.0
  %3237 = vmatprep.subr.mxu0 0.0
  %3238 = vmatpush1.msra.mxu0 0.0
  %3239 = vmatprep.subr.mxu0 0.0
  %3240 = vmatpush1.msra.mxu0 0.0
  %3241 = vmatprep.subr.mxu0 0.0
  %3242 = vmatpush1.msra.mxu0 0.0
  %3243 = vmatprep.subr.mxu0 0.0
  %3244 = vmatpush1.msra.mxu0 0.0
  %3245 = vmatprep.subr.mxu0 0.0
  %3246 = vmatpush1.msra.mxu0 0.0
  %3247 = vmatprep.subr.mxu0 0.0
  %3248 = vmatpush1.msra.mxu0 0.0
  %3249 = vmatprep.subr.mxu0 0.0
  %3250 = vmatpush1.msra.mxu0 0.0
  %3251 = vmatprep.subr.mxu0 0.0
  %3252 = vmatpush1.msra.mxu0 0.0
  %3253 = vmatprep.subr.mxu0 0.0
  %3254 = vmatpush1.msra.mxu0 %v3228
  %3255 = vmatprep.subr.mxu0 0.0
  %3256 = vmatpush1.msra.mxu0 %v3227
  %3257 = vmatprep.subr.mxu0 0.0
  %3258 = vmatpush1.msra.mxu0 %v3226
  %3259 = vmatprep.subr.mxu0 0.0
  %3260 = vmatpush1.msra.mxu0 %v3225
  %3261 = vmatprep.subr.mxu0 0.0
  %3262 = vmatpush2.msra.mxu0 0.0
  %3263 = vmatprep.subr.mxu0 0.0
  %3264 = vmatpush2.msra.mxu0 0.0
  %3265 = vmatprep.subr.mxu0 0.0
  %3266 = vmatpush2.msra.mxu0 0.0
  %3267 = vmatprep.subr.mxu0 0.0
  %3268 = vmatpush2.msra.mxu0 0.0
  %3269 = vmatprep.subr.mxu0 0.0
  %3270 = vmatpush2.msra.mxu0 0.0
  %3271 = vmatprep.subr.mxu0 0.0
  %3272 = vmatpush2.msra.mxu0 0.0
  %3273 = vmatprep.subr.mxu0 0.0
  %3274 = vmatpush2.msra.mxu0 0.0
  %3275 = vmatprep.subr.mxu0 0.0
  %3276 = vmatpush2.msra.mxu0 0.0
  %3277 = vmatprep.subr.mxu0 0.0
  %3278 = vmatpush2.msra.mxu0 0.0
  %3279 = vmatprep.subr.mxu0 0.0
  %3280 = vmatpush2.msra.mxu0 0.0
  %3281 = vmatprep.subr.mxu0 0.0
  %3282 = vmatpush2.msra.mxu0 0.0
  %3283 = vmatprep.subr.mxu0 0.0
  %3284 = vmatpush2.msra.mxu0 0.0
  %3285 = vmatprep.subr.mxu0 0.0
  %3286 = vmatpush2.msra.mxu0 0.0
  %3287 = vmatprep.subr.mxu0 0.0
  %3288 = vmatpush2.msra.mxu0 0.0
  %3289 = vmatprep.subr.mxu0 0.0
  %3290 = vmatpush2.msra.mxu0 0.0
  %3291 = vmatprep.subr.mxu0 0.0
  %3292 = vmatpush2.msra.mxu0 0.0
  %3293 = vmatprep.mubr.f32.mxu0 0.0
  %3294 = vmatmul.mubr.f32.gmra.mxu0 %v2278
  %v3295 = vpop.f32.mrf.mxu0
  %v3296 = vadd.f32 0.0, %v3295
  %v3297 = vpop.f32.mrf.mxu0
  %3298 = vmatprep.mubr.f32.mxu0 0.0
  %3299 = vmatmul.mubr.f32.gmra.mxu0 %v2281
  %v3300 = vpop.f32.mrf.mxu0
  %v3301 = vadd.f32 0.0, %v3300
  %v3302 = vpop.f32.mrf.mxu0
  %3303 = vdwg.mxu0
  %s3304 = scalar_lea.vmem %s8, 192
  %v3305 = vld [vmem:[%s3304] sm:$0xff]
  %v3306 = vld [vmem:[%s3304 + $0x8] sm:$0xff]
  %v3307 = vld [vmem:[%s3304 + $0x10] sm:$0xff]
  %v3308 = vld [vmem:[%s3304 + $0x18] sm:$0xff]
  %3309 = vmatprep.subr.mxu0 0.0
  %3310 = vmatpush1.msra.mxu0 0.0
  %3311 = vmatprep.subr.mxu0 0.0
  %3312 = vmatpush1.msra.mxu0 0.0
  %3313 = vmatprep.subr.mxu0 0.0
  %3314 = vmatpush1.msra.mxu0 0.0
  %3315 = vmatprep.subr.mxu0 0.0
  %3316 = vmatpush1.msra.mxu0 0.0
  %3317 = vmatprep.subr.mxu0 0.0
  %3318 = vmatpush1.msra.mxu0 0.0
  %3319 = vmatprep.subr.mxu0 0.0
  %3320 = vmatpush1.msra.mxu0 0.0
  %3321 = vmatprep.subr.mxu0 0.0
  %3322 = vmatpush1.msra.mxu0 0.0
  %3323 = vmatprep.subr.mxu0 0.0
  %3324 = vmatpush1.msra.mxu0 0.0
  %3325 = vmatprep.subr.mxu0 0.0
  %3326 = vmatpush1.msra.mxu0 0.0
  %3327 = vmatprep.subr.mxu0 0.0
  %3328 = vmatpush1.msra.mxu0 0.0
  %3329 = vmatprep.subr.mxu0 0.0
  %3330 = vmatpush1.msra.mxu0 0.0
  %3331 = vmatprep.subr.mxu0 0.0
  %3332 = vmatpush1.msra.mxu0 0.0
  %3333 = vmatprep.subr.mxu0 0.0
  %3334 = vmatpush1.msra.mxu0 %v3308
  %3335 = vmatprep.subr.mxu0 0.0
  %3336 = vmatpush1.msra.mxu0 %v3307
  %3337 = vmatprep.subr.mxu0 0.0
  %3338 = vmatpush1.msra.mxu0 %v3306
  %3339 = vmatprep.subr.mxu0 0.0
  %3340 = vmatpush1.msra.mxu0 %v3305
  %3341 = vmatprep.subr.mxu0 0.0
  %3342 = vmatpush2.msra.mxu0 0.0
  %3343 = vmatprep.subr.mxu0 0.0
  %3344 = vmatpush2.msra.mxu0 0.0
  %3345 = vmatprep.subr.mxu0 0.0
  %3346 = vmatpush2.msra.mxu0 0.0
  %3347 = vmatprep.subr.mxu0 0.0
  %3348 = vmatpush2.msra.mxu0 0.0
  %3349 = vmatprep.subr.mxu0 0.0
  %3350 = vmatpush2.msra.mxu0 0.0
  %3351 = vmatprep.subr.mxu0 0.0
  %3352 = vmatpush2.msra.mxu0 0.0
  %3353 = vmatprep.subr.mxu0 0.0
  %3354 = vmatpush2.msra.mxu0 0.0
  %3355 = vmatprep.subr.mxu0 0.0
  %3356 = vmatpush2.msra.mxu0 0.0
  %3357 = vmatprep.subr.mxu0 0.0
  %3358 = vmatpush2.msra.mxu0 0.0
  %3359 = vmatprep.subr.mxu0 0.0
  %3360 = vmatpush2.msra.mxu0 0.0
  %3361 = vmatprep.subr.mxu0 0.0
  %3362 = vmatpush2.msra.mxu0 0.0
  %3363 = vmatprep.subr.mxu0 0.0
  %3364 = vmatpush2.msra.mxu0 0.0
  %3365 = vmatprep.subr.mxu0 0.0
  %3366 = vmatpush2.msra.mxu0 0.0
  %3367 = vmatprep.subr.mxu0 0.0
  %3368 = vmatpush2.msra.mxu0 0.0
  %3369 = vmatprep.subr.mxu0 0.0
  %3370 = vmatpush2.msra.mxu0 0.0
  %3371 = vmatprep.subr.mxu0 0.0
  %3372 = vmatpush2.msra.mxu0 0.0
  %3373 = vmatprep.mubr.f32.mxu0 0.0
  %3374 = vmatmul.mubr.f32.gmra.mxu0 %v2278
  %v3375 = vpop.f32.mrf.mxu0
  %v3376 = vadd.f32 0.0, %v3375
  %v3377 = vpop.f32.mrf.mxu0
  %3378 = vmatprep.mubr.f32.mxu0 0.0
  %3379 = vmatmul.mubr.f32.gmra.mxu0 %v2281
  %v3380 = vpop.f32.mrf.mxu0
  %v3381 = vadd.f32 0.0, %v3380
  %v3382 = vpop.f32.mrf.mxu0
  %3383 = vdwg.mxu0
  %v3385 = vsel %vm469, %v3216, 0
  %v3388 = vsel %vm469, %v3221, 0
  %v3391 = vsel %vm469, %v3296, 0
  %v3394 = vsel %vm469, %v3301, 0
  %3396 = vmatprep.subr.mxu0 0.0
  %3397 = vmatpush1.xpose.msra.mxu0 0.0
  %3398 = vmatprep.subr.mxu0 0.0
  %3399 = vmatpush1.xpose.msra.mxu0 0.0
  %3400 = vmatprep.subr.mxu0 0.0
  %3401 = vmatpush1.xpose.msra.mxu0 0.0
  %3402 = vmatprep.subr.mxu0 0.0
  %3403 = vmatpush1.xpose.msra.mxu0 0.0
  %3404 = vmatprep.subr.mxu0 0.0
  %3405 = vmatpush1.xpose.msra.mxu0 0.0
  %3406 = vmatprep.subr.mxu0 0.0
  %3407 = vmatpush1.xpose.msra.mxu0 0.0
  %3408 = vmatprep.subr.mxu0 0.0
  %3409 = vmatpush1.xpose.msra.mxu0 0.0
  %3410 = vmatprep.subr.mxu0 0.0
  %3411 = vmatpush1.xpose.msra.mxu0 0.0
  %3412 = vmatprep.subr.mxu0 0.0
  %3413 = vmatpush1.xpose.msra.mxu0 0.0
  %3414 = vmatprep.subr.mxu0 0.0
  %3415 = vmatpush1.xpose.msra.mxu0 0.0
  %3416 = vmatprep.subr.mxu0 0.0
  %3417 = vmatpush1.xpose.msra.mxu0 0.0
  %3418 = vmatprep.subr.mxu0 0.0
  %3419 = vmatpush1.xpose.msra.mxu0 0.0
  %3420 = vmatprep.subr.mxu0 0.0
  %3421 = vmatpush1.xpose.msra.mxu0 0.0
  %3422 = vmatprep.subr.mxu0 0.0
  %3423 = vmatpush1.xpose.msra.mxu0 0.0
  %3424 = vmatprep.subr.mxu0 0.0
  %3425 = vmatpush1.xpose.msra.mxu0 %v3394
  %3426 = vmatprep.subr.mxu0 0.0
  %3427 = vmatpush1.xpose.msra.mxu0 %v3391
  %3428 = vmatprep.subr.mxu0 0.0
  %3429 = vmatpush2.xpose.msra.mxu0 0.0
  %3430 = vmatprep.subr.mxu0 0.0
  %3431 = vmatpush2.xpose.msra.mxu0 0.0
  %3432 = vmatprep.subr.mxu0 0.0
  %3433 = vmatpush2.xpose.msra.mxu0 0.0
  %3434 = vmatprep.subr.mxu0 0.0
  %3435 = vmatpush2.xpose.msra.mxu0 0.0
  %3436 = vmatprep.subr.mxu0 0.0
  %3437 = vmatpush2.xpose.msra.mxu0 0.0
  %3438 = vmatprep.subr.mxu0 0.0
  %3439 = vmatpush2.xpose.msra.mxu0 0.0
  %3440 = vmatprep.subr.mxu0 0.0
  %3441 = vmatpush2.xpose.msra.mxu0 0.0
  %3442 = vmatprep.subr.mxu0 0.0
  %3443 = vmatpush2.xpose.msra.mxu0 0.0
  %3444 = vmatprep.subr.mxu0 0.0
  %3445 = vmatpush2.xpose.msra.mxu0 0.0
  %3446 = vmatprep.subr.mxu0 0.0
  %3447 = vmatpush2.xpose.msra.mxu0 0.0
  %3448 = vmatprep.subr.mxu0 0.0
  %3449 = vmatpush2.xpose.msra.mxu0 0.0
  %3450 = vmatprep.subr.mxu0 0.0
  %3451 = vmatpush2.xpose.msra.mxu0 0.0
  %3452 = vmatprep.subr.mxu0 0.0
  %3453 = vmatpush2.xpose.msra.mxu0 0.0
  %3454 = vmatprep.subr.mxu0 0.0
  %3455 = vmatpush2.xpose.msra.mxu0 0.0
  %3456 = vmatprep.subr.mxu0 0.0
  %3457 = vmatpush2.xpose.msra.mxu0 0.0
  %3458 = vmatprep.subr.mxu0 0.0
  %3459 = vmatpush2.xpose.msra.mxu0 0.0
  %3460 = vmatprep.mubr.f32.mxu0 0.0
  %3461 = vmatmul.mubr.f32.gmra.mxu0 %v3385
  %v3462 = vpop.f32.mrf.mxu0
  %v3463 = vadd.f32 %v177, %v3462
  %v3464 = vpop.f32.mrf.mxu0
  %3465 = vmatprep.mubr.f32.mxu0 0.0
  %3466 = vmatmul.mubr.f32.gmra.mxu0 %v3388
  %v3467 = vpop.f32.mrf.mxu0
  %v3468 = vadd.f32 %v178, %v3467
  %v3469 = vpop.f32.mrf.mxu0
  %3470 = vdwg.mxu0
  %v3471 = vsel %vm557, %v3463, -inf
  %3472 = vmax.xlane.f32.xlu0 %v3471
  %v3473 = vpop.xlane.xlu0 %3472
  %v3474 = vsel %vm561, %v3468, -inf
  %3475 = vmax.xlane.f32.xlu0 %v3474
  %v3476 = vpop.xlane.xlu0 %3475
  %v3477 = vsub.f32 %v3463, %v3473
  %v3478 = vsub.f32 %v3468, %v3476
  %v3479 = vmul.f32 %v3477, 1.442695
  %v3480 = vpow.pop %v3479
  %v3481 = vmul.f32 %v3478, 1.442695
  %v3482 = vpow.pop %v3481
  %v3483 = vsel %vm557, %v3480, 0.0
  %3484 = vadd.xlane.f32.xlu0 %v3483
  %v3485 = vpop.xlane.xlu0 %3484
  %v3486 = vsel %vm561, %v3482, 0.0
  %3487 = vadd.xlane.f32.xlu0 %v3486
  %v3488 = vpop.xlane.xlu0 %3487
  %v3489 = vrcp.pop %v3485
  %v3490 = vrcp.pop %v3488
  %v3491 = vmul.f32 %v3480, %v3489
  %v3492 = vmul.f32 %v3482, %v3490
  %v3494 = vsel %vm557, %v3491, 0
  %v3497 = vsel %vm557, %v3492, 0
  %v3500 = vsel %vm936, %v3381, 0
  %3502 = vmatprep.subr.mxu0 0.0
  %3503 = vmatpush1.msra.mxu0 0.0
  %3504 = vmatprep.subr.mxu0 0.0
  %3505 = vmatpush1.msra.mxu0 0.0
  %3506 = vmatprep.subr.mxu0 0.0
  %3507 = vmatpush1.msra.mxu0 0.0
  %3508 = vmatprep.subr.mxu0 0.0
  %3509 = vmatpush1.msra.mxu0 0.0
  %3510 = vmatprep.subr.mxu0 0.0
  %3511 = vmatpush1.msra.mxu0 0.0
  %3512 = vmatprep.subr.mxu0 0.0
  %3513 = vmatpush1.msra.mxu0 0.0
  %3514 = vmatprep.subr.mxu0 0.0
  %3515 = vmatpush1.msra.mxu0 0.0
  %3516 = vmatprep.subr.mxu0 0.0
  %3517 = vmatpush1.msra.mxu0 0.0
  %3518 = vmatprep.subr.mxu0 0.0
  %3519 = vmatpush1.msra.mxu0 0.0
  %3520 = vmatprep.subr.mxu0 0.0
  %3521 = vmatpush1.msra.mxu0 0.0
  %3522 = vmatprep.subr.mxu0 0.0
  %3523 = vmatpush1.msra.mxu0 0.0
  %3524 = vmatprep.subr.mxu0 0.0
  %3525 = vmatpush1.msra.mxu0 0.0
  %3526 = vmatprep.subr.mxu0 0.0
  %3527 = vmatpush1.msra.mxu0 0.0
  %3528 = vmatprep.subr.mxu0 0.0
  %3529 = vmatpush1.msra.mxu0 0.0
  %3530 = vmatprep.subr.mxu0 0.0
  %3531 = vmatpush1.msra.mxu0 %v3500
  %3532 = vmatprep.subr.mxu0 0.0
  %3533 = vmatpush1.msra.mxu0 %v3376
  %3534 = vmatprep.subr.mxu0 0.0
  %3535 = vmatpush2.msra.mxu0 0.0
  %3536 = vmatprep.subr.mxu0 0.0
  %3537 = vmatpush2.msra.mxu0 0.0
  %3538 = vmatprep.subr.mxu0 0.0
  %3539 = vmatpush2.msra.mxu0 0.0
  %3540 = vmatprep.subr.mxu0 0.0
  %3541 = vmatpush2.msra.mxu0 0.0
  %3542 = vmatprep.subr.mxu0 0.0
  %3543 = vmatpush2.msra.mxu0 0.0
  %3544 = vmatprep.subr.mxu0 0.0
  %3545 = vmatpush2.msra.mxu0 0.0
  %3546 = vmatprep.subr.mxu0 0.0
  %3547 = vmatpush2.msra.mxu0 0.0
  %3548 = vmatprep.subr.mxu0 0.0
  %3549 = vmatpush2.msra.mxu0 0.0
  %3550 = vmatprep.subr.mxu0 0.0
  %3551 = vmatpush2.msra.mxu0 0.0
  %3552 = vmatprep.subr.mxu0 0.0
  %3553 = vmatpush2.msra.mxu0 0.0
  %3554 = vmatprep.subr.mxu0 0.0
  %3555 = vmatpush2.msra.mxu0 0.0
  %3556 = vmatprep.subr.mxu0 0.0
  %3557 = vmatpush2.msra.mxu0 0.0
  %3558 = vmatprep.subr.mxu0 0.0
  %3559 = vmatpush2.msra.mxu0 0.0
  %3560 = vmatprep.subr.mxu0 0.0
  %3561 = vmatpush2.msra.mxu0 0.0
  %3562 = vmatprep.subr.mxu0 0.0
  %3563 = vmatpush2.msra.mxu0 0.0
  %3564 = vmatprep.subr.mxu0 0.0
  %3565 = vmatpush2.msra.mxu0 0.0
  %3566 = vmatprep.mubr.f32.mxu0 0.0
  %3567 = vmatmul.mubr.f32.gmra.mxu0 %v3494
  %v3568 = vpop.f32.mrf.mxu0
  %v3569 = vadd.f32 0.0, %v3568
  %v3570 = vpop.f32.mrf.mxu0
  %3571 = vmatprep.mubr.f32.mxu0 0.0
  %3572 = vmatmul.mubr.f32.gmra.mxu0 %v3497
  %v3573 = vpop.f32.mrf.mxu0
  %v3574 = vadd.f32 0.0, %v3573
  %v3575 = vpop.f32.mrf.mxu0
  %3576 = vdwg.mxu0
  %v3577 = vadd.f32 %v3136, %v3569
  %v3578 = vadd.f32 %v3141, %v3574
  %s3579 = scalar_lea.vmem %s6, 224
  %v3580 = vld [vmem:[%s3579] sm:$0xff]
  %v3581 = vld [vmem:[%s3579 + $0x8] sm:$0xff]
  %v3582 = vld [vmem:[%s3579 + $0x10] sm:$0xff]
  %v3583 = vld [vmem:[%s3579 + $0x18] sm:$0xff]
  %3584 = vmatprep.subr.mxu0 0.0
  %3585 = vmatpush1.msra.mxu0 0.0
  %3586 = vmatprep.subr.mxu0 0.0
  %3587 = vmatpush1.msra.mxu0 0.0
  %3588 = vmatprep.subr.mxu0 0.0
  %3589 = vmatpush1.msra.mxu0 0.0
  %3590 = vmatprep.subr.mxu0 0.0
  %3591 = vmatpush1.msra.mxu0 0.0
  %3592 = vmatprep.subr.mxu0 0.0
  %3593 = vmatpush1.msra.mxu0 0.0
  %3594 = vmatprep.subr.mxu0 0.0
  %3595 = vmatpush1.msra.mxu0 0.0
  %3596 = vmatprep.subr.mxu0 0.0
  %3597 = vmatpush1.msra.mxu0 0.0
  %3598 = vmatprep.subr.mxu0 0.0
  %3599 = vmatpush1.msra.mxu0 0.0
  %3600 = vmatprep.subr.mxu0 0.0
  %3601 = vmatpush1.msra.mxu0 0.0
  %3602 = vmatprep.subr.mxu0 0.0
  %3603 = vmatpush1.msra.mxu0 0.0
  %3604 = vmatprep.subr.mxu0 0.0
  %3605 = vmatpush1.msra.mxu0 0.0
  %3606 = vmatprep.subr.mxu0 0.0
  %3607 = vmatpush1.msra.mxu0 0.0
  %3608 = vmatprep.subr.mxu0 0.0
  %3609 = vmatpush1.msra.mxu0 %v3583
  %3610 = vmatprep.subr.mxu0 0.0
  %3611 = vmatpush1.msra.mxu0 %v3582
  %3612 = vmatprep.subr.mxu0 0.0
  %3613 = vmatpush1.msra.mxu0 %v3581
  %3614 = vmatprep.subr.mxu0 0.0
  %3615 = vmatpush1.msra.mxu0 %v3580
  %3616 = vmatprep.subr.mxu0 0.0
  %3617 = vmatpush2.msra.mxu0 0.0
  %3618 = vmatprep.subr.mxu0 0.0
  %3619 = vmatpush2.msra.mxu0 0.0
  %3620 = vmatprep.subr.mxu0 0.0
  %3621 = vmatpush2.msra.mxu0 0.0
  %3622 = vmatprep.subr.mxu0 0.0
  %3623 = vmatpush2.msra.mxu0 0.0
  %3624 = vmatprep.subr.mxu0 0.0
  %3625 = vmatpush2.msra.mxu0 0.0
  %3626 = vmatprep.subr.mxu0 0.0
  %3627 = vmatpush2.msra.mxu0 0.0
  %3628 = vmatprep.subr.mxu0 0.0
  %3629 = vmatpush2.msra.mxu0 0.0
  %3630 = vmatprep.subr.mxu0 0.0
  %3631 = vmatpush2.msra.mxu0 0.0
  %3632 = vmatprep.subr.mxu0 0.0
  %3633 = vmatpush2.msra.mxu0 0.0
  %3634 = vmatprep.subr.mxu0 0.0
  %3635 = vmatpush2.msra.mxu0 0.0
  %3636 = vmatprep.subr.mxu0 0.0
  %3637 = vmatpush2.msra.mxu0 0.0
  %3638 = vmatprep.subr.mxu0 0.0
  %3639 = vmatpush2.msra.mxu0 0.0
  %3640 = vmatprep.subr.mxu0 0.0
  %3641 = vmatpush2.msra.mxu0 0.0
  %3642 = vmatprep.subr.mxu0 0.0
  %3643 = vmatpush2.msra.mxu0 0.0
  %3644 = vmatprep.subr.mxu0 0.0
  %3645 = vmatpush2.msra.mxu0 0.0
  %3646 = vmatprep.subr.mxu0 0.0
  %3647 = vmatpush2.msra.mxu0 0.0
  %3648 = vmatprep.mubr.f32.mxu0 0.0
  %3649 = vmatmul.mubr.f32.gmra.mxu0 %v2278
  %v3650 = vpop.f32.mrf.mxu0
  %v3651 = vadd.f32 0.0, %v3650
  %v3652 = vpop.f32.mrf.mxu0
  %3653 = vmatprep.mubr.f32.mxu0 0.0
  %3654 = vmatmul.mubr.f32.gmra.mxu0 %v2281
  %v3655 = vpop.f32.mrf.mxu0
  %v3656 = vadd.f32 0.0, %v3655
  %v3657 = vpop.f32.mrf.mxu0
  %3658 = vdwg.mxu0
  %s3659 = scalar_lea.vmem %s7, 224
  %v3660 = vld [vmem:[%s3659] sm:$0xff]
  %v3661 = vld [vmem:[%s3659 + $0x8] sm:$0xff]
  %v3662 = vld [vmem:[%s3659 + $0x10] sm:$0xff]
  %v3663 = vld [vmem:[%s3659 + $0x18] sm:$0xff]
  %3664 = vmatprep.subr.mxu0 0.0
  %3665 = vmatpush1.msra.mxu0 0.0
  %3666 = vmatprep.subr.mxu0 0.0
  %3667 = vmatpush1.msra.mxu0 0.0
  %3668 = vmatprep.subr.mxu0 0.0
  %3669 = vmatpush1.msra.mxu0 0.0
  %3670 = vmatprep.subr.mxu0 0.0
  %3671 = vmatpush1.msra.mxu0 0.0
  %3672 = vmatprep.subr.mxu0 0.0
  %3673 = vmatpush1.msra.mxu0 0.0
  %3674 = vmatprep.subr.mxu0 0.0
  %3675 = vmatpush1.msra.mxu0 0.0
  %3676 = vmatprep.subr.mxu0 0.0
  %3677 = vmatpush1.msra.mxu0 0.0
  %3678 = vmatprep.subr.mxu0 0.0
  %3679 = vmatpush1.msra.mxu0 0.0
  %3680 = vmatprep.subr.mxu0 0.0
  %3681 = vmatpush1.msra.mxu0 0.0
  %3682 = vmatprep.subr.mxu0 0.0
  %3683 = vmatpush1.msra.mxu0 0.0
  %3684 = vmatprep.subr.mxu0 0.0
  %3685 = vmatpush1.msra.mxu0 0.0
  %3686 = vmatprep.subr.mxu0 0.0
  %3687 = vmatpush1.msra.mxu0 0.0
  %3688 = vmatprep.subr.mxu0 0.0
  %3689 = vmatpush1.msra.mxu0 %v3663
  %3690 = vmatprep.subr.mxu0 0.0
  %3691 = vmatpush1.msra.mxu0 %v3662
  %3692 = vmatprep.subr.mxu0 0.0
  %3693 = vmatpush1.msra.mxu0 %v3661
  %3694 = vmatprep.subr.mxu0 0.0
  %3695 = vmatpush1.msra.mxu0 %v3660
  %3696 = vmatprep.subr.mxu0 0.0
  %3697 = vmatpush2.msra.mxu0 0.0
  %3698 = vmatprep.subr.mxu0 0.0
  %3699 = vmatpush2.msra.mxu0 0.0
  %3700 = vmatprep.subr.mxu0 0.0
  %3701 = vmatpush2.msra.mxu0 0.0
  %3702 = vmatprep.subr.mxu0 0.0
  %3703 = vmatpush2.msra.mxu0 0.0
  %3704 = vmatprep.subr.mxu0 0.0
  %3705 = vmatpush2.msra.mxu0 0.0
  %3706 = vmatprep.subr.mxu0 0.0
  %3707 = vmatpush2.msra.mxu0 0.0
  %3708 = vmatprep.subr.mxu0 0.0
  %3709 = vmatpush2.msra.mxu0 0.0
  %3710 = vmatprep.subr.mxu0 0.0
  %3711 = vmatpush2.msra.mxu0 0.0
  %3712 = vmatprep.subr.mxu0 0.0
  %3713 = vmatpush2.msra.mxu0 0.0
  %3714 = vmatprep.subr.mxu0 0.0
  %3715 = vmatpush2.msra.mxu0 0.0
  %3716 = vmatprep.subr.mxu0 0.0
  %3717 = vmatpush2.msra.mxu0 0.0
  %3718 = vmatprep.subr.mxu0 0.0
  %3719 = vmatpush2.msra.mxu0 0.0
  %3720 = vmatprep.subr.mxu0 0.0
  %3721 = vmatpush2.msra.mxu0 0.0
  %3722 = vmatprep.subr.mxu0 0.0
  %3723 = vmatpush2.msra.mxu0 0.0
  %3724 = vmatprep.subr.mxu0 0.0
  %3725 = vmatpush2.msra.mxu0 0.0
  %3726 = vmatprep.subr.mxu0 0.0
  %3727 = vmatpush2.msra.mxu0 0.0
  %3728 = vmatprep.mubr.f32.mxu0 0.0
  %3729 = vmatmul.mubr.f32.gmra.mxu0 %v2278
  %v3730 = vpop.f32.mrf.mxu0
  %v3731 = vadd.f32 0.0, %v3730
  %v3732 = vpop.f32.mrf.mxu0
  %3733 = vmatprep.mubr.f32.mxu0 0.0
  %3734 = vmatmul.mubr.f32.gmra.mxu0 %v2281
  %v3735 = vpop.f32.mrf.mxu0
  %v3736 = vadd.f32 0.0, %v3735
  %v3737 = vpop.f32.mrf.mxu0
  %3738 = vdwg.mxu0
  %s3739 = scalar_lea.vmem %s8, 224
  %v3740 = vld [vmem:[%s3739] sm:$0xff]
  %v3741 = vld [vmem:[%s3739 + $0x8] sm:$0xff]
  %v3742 = vld [vmem:[%s3739 + $0x10] sm:$0xff]
  %v3743 = vld [vmem:[%s3739 + $0x18] sm:$0xff]
  %3744 = vmatprep.subr.mxu0 0.0
  %3745 = vmatpush1.msra.mxu0 0.0
  %3746 = vmatprep.subr.mxu0 0.0
  %3747 = vmatpush1.msra.mxu0 0.0
  %3748 = vmatprep.subr.mxu0 0.0
  %3749 = vmatpush1.msra.mxu0 0.0
  %3750 = vmatprep.subr.mxu0 0.0
  %3751 = vmatpush1.msra.mxu0 0.0
  %3752 = vmatprep.subr.mxu0 0.0
  %3753 = vmatpush1.msra.mxu0 0.0
  %3754 = vmatprep.subr.mxu0 0.0
  %3755 = vmatpush1.msra.mxu0 0.0
  %3756 = vmatprep.subr.mxu0 0.0
  %3757 = vmatpush1.msra.mxu0 0.0
  %3758 = vmatprep.subr.mxu0 0.0
  %3759 = vmatpush1.msra.mxu0 0.0
  %3760 = vmatprep.subr.mxu0 0.0
  %3761 = vmatpush1.msra.mxu0 0.0
  %3762 = vmatprep.subr.mxu0 0.0
  %3763 = vmatpush1.msra.mxu0 0.0
  %3764 = vmatprep.subr.mxu0 0.0
  %3765 = vmatpush1.msra.mxu0 0.0
  %3766 = vmatprep.subr.mxu0 0.0
  %3767 = vmatpush1.msra.mxu0 0.0
  %3768 = vmatprep.subr.mxu0 0.0
  %3769 = vmatpush1.msra.mxu0 %v3743
  %3770 = vmatprep.subr.mxu0 0.0
  %3771 = vmatpush1.msra.mxu0 %v3742
  %3772 = vmatprep.subr.mxu0 0.0
  %3773 = vmatpush1.msra.mxu0 %v3741
  %3774 = vmatprep.subr.mxu0 0.0
  %3775 = vmatpush1.msra.mxu0 %v3740
  %3776 = vmatprep.subr.mxu0 0.0
  %3777 = vmatpush2.msra.mxu0 0.0
  %3778 = vmatprep.subr.mxu0 0.0
  %3779 = vmatpush2.msra.mxu0 0.0
  %3780 = vmatprep.subr.mxu0 0.0
  %3781 = vmatpush2.msra.mxu0 0.0
  %3782 = vmatprep.subr.mxu0 0.0
  %3783 = vmatpush2.msra.mxu0 0.0
  %3784 = vmatprep.subr.mxu0 0.0
  %3785 = vmatpush2.msra.mxu0 0.0
  %3786 = vmatprep.subr.mxu0 0.0
  %3787 = vmatpush2.msra.mxu0 0.0
  %3788 = vmatprep.subr.mxu0 0.0
  %3789 = vmatpush2.msra.mxu0 0.0
  %3790 = vmatprep.subr.mxu0 0.0
  %3791 = vmatpush2.msra.mxu0 0.0
  %3792 = vmatprep.subr.mxu0 0.0
  %3793 = vmatpush2.msra.mxu0 0.0
  %3794 = vmatprep.subr.mxu0 0.0
  %3795 = vmatpush2.msra.mxu0 0.0
  %3796 = vmatprep.subr.mxu0 0.0
  %3797 = vmatpush2.msra.mxu0 0.0
  %3798 = vmatprep.subr.mxu0 0.0
  %3799 = vmatpush2.msra.mxu0 0.0
  %3800 = vmatprep.subr.mxu0 0.0
  %3801 = vmatpush2.msra.mxu0 0.0
  %3802 = vmatprep.subr.mxu0 0.0
  %3803 = vmatpush2.msra.mxu0 0.0
  %3804 = vmatprep.subr.mxu0 0.0
  %3805 = vmatpush2.msra.mxu0 0.0
  %3806 = vmatprep.subr.mxu0 0.0
  %3807 = vmatpush2.msra.mxu0 0.0
  %3808 = vmatprep.mubr.f32.mxu0 0.0
  %3809 = vmatmul.mubr.f32.gmra.mxu0 %v2278
  %v3810 = vpop.f32.mrf.mxu0
  %v3811 = vadd.f32 0.0, %v3810
  %v3812 = vpop.f32.mrf.mxu0
  %3813 = vmatprep.mubr.f32.mxu0 0.0
  %3814 = vmatmul.mubr.f32.gmra.mxu0 %v2281
  %v3815 = vpop.f32.mrf.mxu0
  %v3816 = vadd.f32 0.0, %v3815
  %v3817 = vpop.f32.mrf.mxu0
  %3818 = vdwg.mxu0
  %v3820 = vsel %vm469, %v3651, 0
  %v3823 = vsel %vm469, %v3656, 0
  %v3826 = vsel %vm469, %v3731, 0
  %v3829 = vsel %vm469, %v3736, 0
  %3831 = vmatprep.subr.mxu0 0.0
  %3832 = vmatpush1.xpose.msra.mxu0 0.0
  %3833 = vmatprep.subr.mxu0 0.0
  %3834 = vmatpush1.xpose.msra.mxu0 0.0
  %3835 = vmatprep.subr.mxu0 0.0
  %3836 = vmatpush1.xpose.msra.mxu0 0.0
  %3837 = vmatprep.subr.mxu0 0.0
  %3838 = vmatpush1.xpose.msra.mxu0 0.0
  %3839 = vmatprep.subr.mxu0 0.0
  %3840 = vmatpush1.xpose.msra.mxu0 0.0
  %3841 = vmatprep.subr.mxu0 0.0
  %3842 = vmatpush1.xpose.msra.mxu0 0.0
  %3843 = vmatprep.subr.mxu0 0.0
  %3844 = vmatpush1.xpose.msra.mxu0 0.0
  %3845 = vmatprep.subr.mxu0 0.0
  %3846 = vmatpush1.xpose.msra.mxu0 0.0
  %3847 = vmatprep.subr.mxu0 0.0
  %3848 = vmatpush1.xpose.msra.mxu0 0.0
  %3849 = vmatprep.subr.mxu0 0.0
  %3850 = vmatpush1.xpose.msra.mxu0 0.0
  %3851 = vmatprep.subr.mxu0 0.0
  %3852 = vmatpush1.xpose.msra.mxu0 0.0
  %3853 = vmatprep.subr.mxu0 0.0
  %3854 = vmatpush1.xpose.msra.mxu0 0.0
  %3855 = vmatprep.subr.mxu0 0.0
  %3856 = vmatpush1.xpose.msra.mxu0 0.0
  %3857 = vmatprep.subr.mxu0 0.0
  %3858 = vmatpush1.xpose.msra.mxu0 0.0
  %3859 = vmatprep.subr.mxu0 0.0
  %3860 = vmatpush1.xpose.msra.mxu0 %v3829
  %3861 = vmatprep.subr.mxu0 0.0
  %3862 = vmatpush1.xpose.msra.mxu0 %v3826
  %3863 = vmatprep.subr.mxu0 0.0
  %3864 = vmatpush2.xpose.msra.mxu0 0.0
  %3865 = vmatprep.subr.mxu0 0.0
  %3866 = vmatpush2.xpose.msra.mxu0 0.0
  %3867 = vmatprep.subr.mxu0 0.0
  %3868 = vmatpush2.xpose.msra.mxu0 0.0
  %3869 = vmatprep.subr.mxu0 0.0
  %3870 = vmatpush2.xpose.msra.mxu0 0.0
  %3871 = vmatprep.subr.mxu0 0.0
  %3872 = vmatpush2.xpose.msra.mxu0 0.0
  %3873 = vmatprep.subr.mxu0 0.0
  %3874 = vmatpush2.xpose.msra.mxu0 0.0
  %3875 = vmatprep.subr.mxu0 0.0
  %3876 = vmatpush2.xpose.msra.mxu0 0.0
  %3877 = vmatprep.subr.mxu0 0.0
  %3878 = vmatpush2.xpose.msra.mxu0 0.0
  %3879 = vmatprep.subr.mxu0 0.0
  %3880 = vmatpush2.xpose.msra.mxu0 0.0
  %3881 = vmatprep.subr.mxu0 0.0
  %3882 = vmatpush2.xpose.msra.mxu0 0.0
  %3883 = vmatprep.subr.mxu0 0.0
  %3884 = vmatpush2.xpose.msra.mxu0 0.0
  %3885 = vmatprep.subr.mxu0 0.0
  %3886 = vmatpush2.xpose.msra.mxu0 0.0
  %3887 = vmatprep.subr.mxu0 0.0
  %3888 = vmatpush2.xpose.msra.mxu0 0.0
  %3889 = vmatprep.subr.mxu0 0.0
  %3890 = vmatpush2.xpose.msra.mxu0 0.0
  %3891 = vmatprep.subr.mxu0 0.0
  %3892 = vmatpush2.xpose.msra.mxu0 0.0
  %3893 = vmatprep.subr.mxu0 0.0
  %3894 = vmatpush2.xpose.msra.mxu0 0.0
  %3895 = vmatprep.mubr.f32.mxu0 0.0
  %3896 = vmatmul.mubr.f32.gmra.mxu0 %v3820
  %v3897 = vpop.f32.mrf.mxu0
  %v3898 = vadd.f32 %v177, %v3897
  %v3899 = vpop.f32.mrf.mxu0
  %3900 = vmatprep.mubr.f32.mxu0 0.0
  %3901 = vmatmul.mubr.f32.gmra.mxu0 %v3823
  %v3902 = vpop.f32.mrf.mxu0
  %v3903 = vadd.f32 %v178, %v3902
  %v3904 = vpop.f32.mrf.mxu0
  %3905 = vdwg.mxu0
  %v3906 = vsel %vm557, %v3898, -inf
  %3907 = vmax.xlane.f32.xlu0 %v3906
  %v3908 = vpop.xlane.xlu0 %3907
  %v3909 = vsel %vm561, %v3903, -inf
  %3910 = vmax.xlane.f32.xlu0 %v3909
  %v3911 = vpop.xlane.xlu0 %3910
  %v3912 = vsub.f32 %v3898, %v3908
  %v3913 = vsub.f32 %v3903, %v3911
  %v3914 = vmul.f32 %v3912, 1.442695
  %v3915 = vpow.pop %v3914
  %v3916 = vmul.f32 %v3913, 1.442695
  %v3917 = vpow.pop %v3916
  %v3918 = vsel %vm557, %v3915, 0.0
  %3919 = vadd.xlane.f32.xlu0 %v3918
  %v3920 = vpop.xlane.xlu0 %3919
  %v3921 = vsel %vm561, %v3917, 0.0
  %3922 = vadd.xlane.f32.xlu0 %v3921
  %v3923 = vpop.xlane.xlu0 %3922
  %v3924 = vrcp.pop %v3920
  %v3925 = vrcp.pop %v3923
  %v3926 = vmul.f32 %v3915, %v3924
  %v3927 = vmul.f32 %v3917, %v3925
  %v3929 = vsel %vm557, %v3926, 0
  %v3932 = vsel %vm557, %v3927, 0
  %v3935 = vsel %vm936, %v3816, 0
  %3937 = vmatprep.subr.mxu0 0.0
  %3938 = vmatpush1.msra.mxu0 0.0
  %3939 = vmatprep.subr.mxu0 0.0
  %3940 = vmatpush1.msra.mxu0 0.0
  %3941 = vmatprep.subr.mxu0 0.0
  %3942 = vmatpush1.msra.mxu0 0.0
  %3943 = vmatprep.subr.mxu0 0.0
  %3944 = vmatpush1.msra.mxu0 0.0
  %3945 = vmatprep.subr.mxu0 0.0
  %3946 = vmatpush1.msra.mxu0 0.0
  %3947 = vmatprep.subr.mxu0 0.0
  %3948 = vmatpush1.msra.mxu0 0.0
  %3949 = vmatprep.subr.mxu0 0.0
  %3950 = vmatpush1.msra.mxu0 0.0
  %3951 = vmatprep.subr.mxu0 0.0
  %3952 = vmatpush1.msra.mxu0 0.0
  %3953 = vmatprep.subr.mxu0 0.0
  %3954 = vmatpush1.msra.mxu0 0.0
  %3955 = vmatprep.subr.mxu0 0.0
  %3956 = vmatpush1.msra.mxu0 0.0
  %3957 = vmatprep.subr.mxu0 0.0
  %3958 = vmatpush1.msra.mxu0 0.0
  %3959 = vmatprep.subr.mxu0 0.0
  %3960 = vmatpush1.msra.mxu0 0.0
  %3961 = vmatprep.subr.mxu0 0.0
  %3962 = vmatpush1.msra.mxu0 0.0
  %3963 = vmatprep.subr.mxu0 0.0
  %3964 = vmatpush1.msra.mxu0 0.0
  %3965 = vmatprep.subr.mxu0 0.0
  %3966 = vmatpush1.msra.mxu0 %v3935
  %3967 = vmatprep.subr.mxu0 0.0
  %3968 = vmatpush1.msra.mxu0 %v3811
  %3969 = vmatprep.subr.mxu0 0.0
  %3970 = vmatpush2.msra.mxu0 0.0
  %3971 = vmatprep.subr.mxu0 0.0
  %3972 = vmatpush2.msra.mxu0 0.0
  %3973 = vmatprep.subr.mxu0 0.0
  %3974 = vmatpush2.msra.mxu0 0.0
  %3975 = vmatprep.subr.mxu0 0.0
  %3976 = vmatpush2.msra.mxu0 0.0
  %3977 = vmatprep.subr.mxu0 0.0
  %3978 = vmatpush2.msra.mxu0 0.0
  %3979 = vmatprep.subr.mxu0 0.0
  %3980 = vmatpush2.msra.mxu0 0.0
  %3981 = vmatprep.subr.mxu0 0.0
  %3982 = vmatpush2.msra.mxu0 0.0
  %3983 = vmatprep.subr.mxu0 0.0
  %3984 = vmatpush2.msra.mxu0 0.0
  %3985 = vmatprep.subr.mxu0 0.0
  %3986 = vmatpush2.msra.mxu0 0.0
  %3987 = vmatprep.subr.mxu0 0.0
  %3988 = vmatpush2.msra.mxu0 0.0
  %3989 = vmatprep.subr.mxu0 0.0
  %3990 = vmatpush2.msra.mxu0 0.0
  %3991 = vmatprep.subr.mxu0 0.0
  %3992 = vmatpush2.msra.mxu0 0.0
  %3993 = vmatprep.subr.mxu0 0.0
  %3994 = vmatpush2.msra.mxu0 0.0
  %3995 = vmatprep.subr.mxu0 0.0
  %3996 = vmatpush2.msra.mxu0 0.0
  %3997 = vmatprep.subr.mxu0 0.0
  %3998 = vmatpush2.msra.mxu0 0.0
  %3999 = vmatprep.subr.mxu0 0.0
  %4000 = vmatpush2.msra.mxu0 0.0
  %4001 = vmatprep.mubr.f32.mxu0 0.0
  %4002 = vmatmul.mubr.f32.gmra.mxu0 %v3929
  %v4003 = vpop.f32.mrf.mxu0
  %v4004 = vadd.f32 0.0, %v4003
  %v4005 = vpop.f32.mrf.mxu0
  %4006 = vmatprep.mubr.f32.mxu0 0.0
  %4007 = vmatmul.mubr.f32.gmra.mxu0 %v3932
  %v4008 = vpop.f32.mrf.mxu0
  %v4009 = vadd.f32 0.0, %v4008
  %v4010 = vpop.f32.mrf.mxu0
  %4011 = vdwg.mxu0
  %v4012 = vadd.f32 %v3577, %v4004
  %v4013 = vadd.f32 %v3578, %v4009
  %v4014 = vadd.f32 %v2224, %v4012
  %v4015 = vadd.f32 %v2225, %v4013
  %s4016 = scalar_lea.vmem %s9, 1
  %v4017 = vld [vmem:[%s4016] sm:$0x1]
  %v4019 = vlaneseq
  %v4020 = vshrl.u32 %v4019, 7
  %v4021 = vsub.s32 0, %v4020
  %v4022 = vrot.slane %v4017, %v4021
  %v4024 = vadd.f32 %v4014, %v4022
  %v4025 = vadd.f32 %v4015, %v4022
  %s4026 = scalar_lea.vmem %s10, 1
  %v4027 = vld [vmem:[%s4026] sm:$0x1]
  %s4028 = scalar_lea.vmem %s11, 1
  %v4029 = vld [vmem:[%s4028] sm:$0x1]
  %v4030 = vsel %vm181, %v4024, 0.0
  %4031 = vadd.xlane.f32.xlu0 %v4030
  %v4032 = vpop.xlane.xlu0 %4031
  %v4033 = vsel %vm185, %v4025, 0.0
  %4034 = vadd.xlane.f32.xlu0 %v4033
  %v4035 = vpop.xlane.xlu0 %4034
  %v4036 = vmul.f32 %v4032, %v189
  %v4037 = vmul.f32 %v4035, %v189
  %v4038 = vsub.f32 %v4024, %v4036
  %v4039 = vsub.f32 %v4025, %v4037
  %v4040 = vmul.f32 %v4038, %v4038
  %v4041 = vmul.f32 %v4039, %v4039
  %v4042 = vsel %vm181, %v4040, 0.0
  %4043 = vadd.xlane.f32.xlu0 %v4042
  %v4044 = vpop.xlane.xlu0 %4043
  %v4045 = vsel %vm185, %v4041, 0.0
  %4046 = vadd.xlane.f32.xlu0 %v4045
  %v4047 = vpop.xlane.xlu0 %4046
  %v4048 = vmul.f32 %v4044, %v189
  %v4049 = vmul.f32 %v4047, %v189
  %v4050 = vadd.f32 %v4048, 1e-05
  %v4051 = vadd.f32 %v4049, 1e-05
  %v4052 = vrsqrt.pop %v4050
  %v4053 = vrsqrt.pop %v4051
  %v4054 = vmul.f32 %v4038, %v4052
  %v4055 = vmul.f32 %v4039, %v4053
  %v4057 = vlaneseq
  %v4058 = vshrl.u32 %v4057, 7
  %v4059 = vsub.s32 0, %v4058
  %v4060 = vrot.slane %v4027, %v4059
  %v4062 = vmul.f32 %v4054, %v4060
  %v4063 = vmul.f32 %v4055, %v4060
  %v4065 = vlaneseq
  %v4066 = vshrl.u32 %v4065, 7
  %v4067 = vsub.s32 0, %v4066
  %v4068 = vrot.slane %v4029, %v4067
  %v4070 = vadd.f32 %v4062, %v4068
  %v4071 = vadd.f32 %v4063, %v4068
  %s4072 = scalar_lea.vmem %s12, 32
  %v4073 = vld [vmem:[%s4072] sm:$0xff]
  %v4074 = vld [vmem:[%s4072 + $0x8] sm:$0xff]
  %v4075 = vld [vmem:[%s4072 + $0x10] sm:$0xff]
  %v4076 = vld [vmem:[%s4072 + $0x18] sm:$0xff]
  %s4077 = scalar_lea.vmem %s13, 1
  %v4078 = vld [vmem:[%s4077] sm:$0x1]
  %v4080 = vlaneseq
  %v4081 = vshrl.u32 %v4080, 7
  %v4082 = vsub.s32 0, %v4081
  %v4083 = vrot.slane %v4078, %v4082
  %v4086 = vsel %vm181, %v4070, 0
  %v4089 = vsel %vm181, %v4071, 0
  %4091 = vmatprep.subr.mxu0 0.0
  %4092 = vmatpush1.msra.mxu0 0.0
  %4093 = vmatprep.subr.mxu0 0.0
  %4094 = vmatpush1.msra.mxu0 0.0
  %4095 = vmatprep.subr.mxu0 0.0
  %4096 = vmatpush1.msra.mxu0 0.0
  %4097 = vmatprep.subr.mxu0 0.0
  %4098 = vmatpush1.msra.mxu0 0.0
  %4099 = vmatprep.subr.mxu0 0.0
  %4100 = vmatpush1.msra.mxu0 0.0
  %4101 = vmatprep.subr.mxu0 0.0
  %4102 = vmatpush1.msra.mxu0 0.0
  %4103 = vmatprep.subr.mxu0 0.0
  %4104 = vmatpush1.msra.mxu0 0.0
  %4105 = vmatprep.subr.mxu0 0.0
  %4106 = vmatpush1.msra.mxu0 0.0
  %4107 = vmatprep.subr.mxu0 0.0
  %4108 = vmatpush1.msra.mxu0 0.0
  %4109 = vmatprep.subr.mxu0 0.0
  %4110 = vmatpush1.msra.mxu0 0.0
  %4111 = vmatprep.subr.mxu0 0.0
  %4112 = vmatpush1.msra.mxu0 0.0
  %4113 = vmatprep.subr.mxu0 0.0
  %4114 = vmatpush1.msra.mxu0 0.0
  %4115 = vmatprep.subr.mxu0 0.0
  %4116 = vmatpush1.msra.mxu0 %v4076
  %4117 = vmatprep.subr.mxu0 0.0
  %4118 = vmatpush1.msra.mxu0 %v4075
  %4119 = vmatprep.subr.mxu0 0.0
  %4120 = vmatpush1.msra.mxu0 %v4074
  %4121 = vmatprep.subr.mxu0 0.0
  %4122 = vmatpush1.msra.mxu0 %v4073
  %4123 = vmatprep.subr.mxu0 0.0
  %4124 = vmatpush2.msra.mxu0 0.0
  %4125 = vmatprep.subr.mxu0 0.0
  %4126 = vmatpush2.msra.mxu0 0.0
  %4127 = vmatprep.subr.mxu0 0.0
  %4128 = vmatpush2.msra.mxu0 0.0
  %4129 = vmatprep.subr.mxu0 0.0
  %4130 = vmatpush2.msra.mxu0 0.0
  %4131 = vmatprep.subr.mxu0 0.0
  %4132 = vmatpush2.msra.mxu0 0.0
  %4133 = vmatprep.subr.mxu0 0.0
  %4134 = vmatpush2.msra.mxu0 0.0
  %4135 = vmatprep.subr.mxu0 0.0
  %4136 = vmatpush2.msra.mxu0 0.0
  %4137 = vmatprep.subr.mxu0 0.0
  %4138 = vmatpush2.msra.mxu0 0.0
  %4139 = vmatprep.subr.mxu0 0.0
  %4140 = vmatpush2.msra.mxu0 0.0
  %4141 = vmatprep.subr.mxu0 0.0
  %4142 = vmatpush2.msra.mxu0 0.0
  %4143 = vmatprep.subr.mxu0 0.0
  %4144 = vmatpush2.msra.mxu0 0.0
  %4145 = vmatprep.subr.mxu0 0.0
  %4146 = vmatpush2.msra.mxu0 0.0
  %4147 = vmatprep.subr.mxu0 0.0
  %4148 = vmatpush2.msra.mxu0 0.0
  %4149 = vmatprep.subr.mxu0 0.0
  %4150 = vmatpush2.msra.mxu0 0.0
  %4151 = vmatprep.subr.mxu0 0.0
  %4152 = vmatpush2.msra.mxu0 0.0
  %4153 = vmatprep.subr.mxu0 0.0
  %4154 = vmatpush2.msra.mxu0 0.0
  %4155 = vmatprep.mubr.f32.mxu0 0.0
  %4156 = vmatmul.mubr.f32.gmra.mxu0 %v4086
  %v4157 = vpop.f32.mrf.mxu0
  %v4158 = vadd.f32 %v4083, %v4157
  %v4159 = vpop.f32.mrf.mxu0
  %4160 = vmatprep.mubr.f32.mxu0 0.0
  %4161 = vmatmul.mubr.f32.gmra.mxu0 %v4089
  %v4162 = vpop.f32.mrf.mxu0
  %v4163 = vadd.f32 %v4083, %v4162
  %v4164 = vpop.f32.mrf.mxu0
  %4165 = vdwg.mxu0
  %v4166 = vmul.f32 %v4158, 0.5
  %v4167 = vmul.f32 %v4163, 0.5
  %v4168 = vmul.f32 %v4158, 0.70710677
  %v4169 = vmul.f32 %v4163, 0.70710677
  %v4170 = verf.f32.pop %v4168
  %v4171 = verf.f32.pop %v4169
  %v4172 = vadd.f32 %v4170, 1.0
  %v4173 = vadd.f32 %v4171, 1.0
  %v4174 = vmul.f32 %v4166, %v4172
  %v4175 = vmul.f32 %v4167, %v4173
  %s4176 = scalar_lea.vmem %s14, 128
  %v4177 = vld [vmem:[%s4176] sm:$0xff]
  %v4178 = vld [vmem:[%s4176 + $0x8] sm:$0xff]
  %v4179 = vld [vmem:[%s4176 + $0x10] sm:$0xff]
  %v4180 = vld [vmem:[%s4176 + $0x18] sm:$0xff]
  %v4181 = vld [vmem:[%s4176 + $0x20] sm:$0xff]
  %v4182 = vld [vmem:[%s4176 + $0x28] sm:$0xff]
  %v4183 = vld [vmem:[%s4176 + $0x30] sm:$0xff]
  %v4184 = vld [vmem:[%s4176 + $0x38] sm:$0xff]
  %v4185 = vld [vmem:[%s4176 + $0x40] sm:$0xff]
  %v4186 = vld [vmem:[%s4176 + $0x48] sm:$0xff]
  %v4187 = vld [vmem:[%s4176 + $0x50] sm:$0xff]
  %v4188 = vld [vmem:[%s4176 + $0x58] sm:$0xff]
  %v4189 = vld [vmem:[%s4176 + $0x60] sm:$0xff]
  %v4190 = vld [vmem:[%s4176 + $0x68] sm:$0xff]
  %v4191 = vld [vmem:[%s4176 + $0x70] sm:$0xff]
  %v4192 = vld [vmem:[%s4176 + $0x78] sm:$0xff]
  %s4193 = scalar_lea.vmem %s15, 1
  %v4194 = vld [vmem:[%s4193] sm:$0x1]
  %v4196 = vlaneseq
  %v4197 = vshrl.u32 %v4196, 7
  %v4198 = vsub.s32 0, %v4197
  %v4199 = vrot.slane %v4194, %v4198
  %4201 = vmatprep.subr.mxu0 0.0
  %4202 = vmatpush1.msra.mxu0 %v4192
  %4203 = vmatprep.subr.mxu0 0.0
  %4204 = vmatpush1.msra.mxu0 %v4191
  %4205 = vmatprep.subr.mxu0 0.0
  %4206 = vmatpush1.msra.mxu0 %v4190
  %4207 = vmatprep.subr.mxu0 0.0
  %4208 = vmatpush1.msra.mxu0 %v4189
  %4209 = vmatprep.subr.mxu0 0.0
  %4210 = vmatpush1.msra.mxu0 %v4188
  %4211 = vmatprep.subr.mxu0 0.0
  %4212 = vmatpush1.msra.mxu0 %v4187
  %4213 = vmatprep.subr.mxu0 0.0
  %4214 = vmatpush1.msra.mxu0 %v4186
  %4215 = vmatprep.subr.mxu0 0.0
  %4216 = vmatpush1.msra.mxu0 %v4185
  %4217 = vmatprep.subr.mxu0 0.0
  %4218 = vmatpush1.msra.mxu0 %v4184
  %4219 = vmatprep.subr.mxu0 0.0
  %4220 = vmatpush1.msra.mxu0 %v4183
  %4221 = vmatprep.subr.mxu0 0.0
  %4222 = vmatpush1.msra.mxu0 %v4182
  %4223 = vmatprep.subr.mxu0 0.0
  %4224 = vmatpush1.msra.mxu0 %v4181
  %4225 = vmatprep.subr.mxu0 0.0
  %4226 = vmatpush1.msra.mxu0 %v4180
  %4227 = vmatprep.subr.mxu0 0.0
  %4228 = vmatpush1.msra.mxu0 %v4179
  %4229 = vmatprep.subr.mxu0 0.0
  %4230 = vmatpush1.msra.mxu0 %v4178
  %4231 = vmatprep.subr.mxu0 0.0
  %4232 = vmatpush1.msra.mxu0 %v4177
  %4233 = vmatprep.subr.mxu0 0.0
  %4234 = vmatpush2.msra.mxu0 0.0
  %4235 = vmatprep.subr.mxu0 0.0
  %4236 = vmatpush2.msra.mxu0 0.0
  %4237 = vmatprep.subr.mxu0 0.0
  %4238 = vmatpush2.msra.mxu0 0.0
  %4239 = vmatprep.subr.mxu0 0.0
  %4240 = vmatpush2.msra.mxu0 0.0
  %4241 = vmatprep.subr.mxu0 0.0
  %4242 = vmatpush2.msra.mxu0 0.0
  %4243 = vmatprep.subr.mxu0 0.0
  %4244 = vmatpush2.msra.mxu0 0.0
  %4245 = vmatprep.subr.mxu0 0.0
  %4246 = vmatpush2.msra.mxu0 0.0
  %4247 = vmatprep.subr.mxu0 0.0
  %4248 = vmatpush2.msra.mxu0 0.0
  %4249 = vmatprep.subr.mxu0 0.0
  %4250 = vmatpush2.msra.mxu0 0.0
  %4251 = vmatprep.subr.mxu0 0.0
  %4252 = vmatpush2.msra.mxu0 0.0
  %4253 = vmatprep.subr.mxu0 0.0
  %4254 = vmatpush2.msra.mxu0 0.0
  %4255 = vmatprep.subr.mxu0 0.0
  %4256 = vmatpush2.msra.mxu0 0.0
  %4257 = vmatprep.subr.mxu0 0.0
  %4258 = vmatpush2.msra.mxu0 0.0
  %4259 = vmatprep.subr.mxu0 0.0
  %4260 = vmatpush2.msra.mxu0 0.0
  %4261 = vmatprep.subr.mxu0 0.0
  %4262 = vmatpush2.msra.mxu0 0.0
  %4263 = vmatprep.subr.mxu0 0.0
  %4264 = vmatpush2.msra.mxu0 0.0
  %4265 = vmatprep.mubr.f32.mxu0 0.0
  %4266 = vmatmul.mubr.f32.gmra.mxu0 %v4174
  %v4267 = vpop.f32.mrf.mxu0
  %v4268 = vadd.f32 %v4199, %v4267
  %v4269 = vpop.f32.mrf.mxu0
  %4270 = vmatprep.mubr.f32.mxu0 0.0
  %4271 = vmatmul.mubr.f32.gmra.mxu0 %v4175
  %v4272 = vpop.f32.mrf.mxu0
  %v4273 = vadd.f32 %v4199, %v4272
  %v4274 = vpop.f32.mrf.mxu0
  %4275 = vdwg.mxu0
  %v4276 = vadd.f32 %v4024, %v4268
  %v4277 = vadd.f32 %v4025, %v4273
  %v4278 = vld [vmem:[%s16] sm:$0x1]
  %v4279 = vld [vmem:[%s17] sm:$0x1]
  %v4280 = vsel %vm181, %v4276, 0.0
  %4281 = vadd.xlane.f32.xlu0 %v4280
  %v4282 = vpop.xlane.xlu0 %4281
  %v4283 = vsel %vm185, %v4277, 0.0
  %4284 = vadd.xlane.f32.xlu0 %v4283
  %v4285 = vpop.xlane.xlu0 %4284
  %v4286 = vmul.f32 %v4282, %v189
  %v4287 = vmul.f32 %v4285, %v189
  %v4288 = vsub.f32 %v4276, %v4286
  %v4289 = vsub.f32 %v4277, %v4287
  %v4290 = vmul.f32 %v4288, %v4288
  %v4291 = vmul.f32 %v4289, %v4289
  %v4292 = vsel %vm181, %v4290, 0.0
  %4293 = vadd.xlane.f32.xlu0 %v4292
  %v4294 = vpop.xlane.xlu0 %4293
  %v4295 = vsel %vm185, %v4291, 0.0
  %4296 = vadd.xlane.f32.xlu0 %v4295
  %v4297 = vpop.xlane.xlu0 %4296
  %v4298 = vmul.f32 %v4294, %v189
  %v4299 = vmul.f32 %v4297, %v189
  %v4300 = vadd.f32 %v4298, 1e-05
  %v4301 = vadd.f32 %v4299, 1e-05
  %v4302 = vrsqrt.pop %v4300
  %v4303 = vrsqrt.pop %v4301
  %v4304 = vmul.f32 %v4288, %v4302
  %v4305 = vmul.f32 %v4289, %v4303
  %v4307 = vlaneseq
  %v4308 = vshrl.u32 %v4307, 7
  %v4309 = vsub.s32 0, %v4308
  %v4310 = vrot.slane %v4278, %v4309
  %v4312 = vmul.f32 %v4304, %v4310
  %v4313 = vmul.f32 %v4305, %v4310
  %v4315 = vlaneseq
  %v4316 = vshrl.u32 %v4315, 7
  %v4317 = vsub.s32 0, %v4316
  %v4318 = vrot.slane %v4279, %v4317
  %v4320 = vadd.f32 %v4312, %v4318
  %v4321 = vadd.f32 %v4313, %v4318
  %v4322 = vld [vmem:[%s18] sm:$0xff]
  %v4323 = vld [vmem:[%s18 + $0x8] sm:$0xff]
  %v4324 = vld [vmem:[%s18 + $0x10] sm:$0xff]
  %v4325 = vld [vmem:[%s18 + $0x18] sm:$0xff]
  %v4326 = vld [vmem:[%s19] sm:$0x1]
  %v4328 = vlaneseq
  %v4329 = vshrl.u32 %v4328, 7
  %v4330 = vsub.s32 0, %v4329
  %v4331 = vrot.slane %v4326, %v4330
  %v4334 = vsel %vm181, %v4320, 0
  %v4337 = vsel %vm181, %v4321, 0
  %4339 = vmatprep.subr.mxu0 0.0
  %4340 = vmatpush1.msra.mxu0 0.0
  %4341 = vmatprep.subr.mxu0 0.0
  %4342 = vmatpush1.msra.mxu0 0.0
  %4343 = vmatprep.subr.mxu0 0.0
  %4344 = vmatpush1.msra.mxu0 0.0
  %4345 = vmatprep.subr.mxu0 0.0
  %4346 = vmatpush1.msra.mxu0 0.0
  %4347 = vmatprep.subr.mxu0 0.0
  %4348 = vmatpush1.msra.mxu0 0.0
  %4349 = vmatprep.subr.mxu0 0.0
  %4350 = vmatpush1.msra.mxu0 0.0
  %4351 = vmatprep.subr.mxu0 0.0
  %4352 = vmatpush1.msra.mxu0 0.0
  %4353 = vmatprep.subr.mxu0 0.0
  %4354 = vmatpush1.msra.mxu0 0.0
  %4355 = vmatprep.subr.mxu0 0.0
  %4356 = vmatpush1.msra.mxu0 0.0
  %4357 = vmatprep.subr.mxu0 0.0
  %4358 = vmatpush1.msra.mxu0 0.0
  %4359 = vmatprep.subr.mxu0 0.0
  %4360 = vmatpush1.msra.mxu0 0.0
  %4361 = vmatprep.subr.mxu0 0.0
  %4362 = vmatpush1.msra.mxu0 0.0
  %4363 = vmatprep.subr.mxu0 0.0
  %4364 = vmatpush1.msra.mxu0 %v4325
  %4365 = vmatprep.subr.mxu0 0.0
  %4366 = vmatpush1.msra.mxu0 %v4324
  %4367 = vmatprep.subr.mxu0 0.0
  %4368 = vmatpush1.msra.mxu0 %v4323
  %4369 = vmatprep.subr.mxu0 0.0
  %4370 = vmatpush1.msra.mxu0 %v4322
  %4371 = vmatprep.subr.mxu0 0.0
  %4372 = vmatpush2.msra.mxu0 0.0
  %4373 = vmatprep.subr.mxu0 0.0
  %4374 = vmatpush2.msra.mxu0 0.0
  %4375 = vmatprep.subr.mxu0 0.0
  %4376 = vmatpush2.msra.mxu0 0.0
  %4377 = vmatprep.subr.mxu0 0.0
  %4378 = vmatpush2.msra.mxu0 0.0
  %4379 = vmatprep.subr.mxu0 0.0
  %4380 = vmatpush2.msra.mxu0 0.0
  %4381 = vmatprep.subr.mxu0 0.0
  %4382 = vmatpush2.msra.mxu0 0.0
  %4383 = vmatprep.subr.mxu0 0.0
  %4384 = vmatpush2.msra.mxu0 0.0
  %4385 = vmatprep.subr.mxu0 0.0
  %4386 = vmatpush2.msra.mxu0 0.0
  %4387 = vmatprep.subr.mxu0 0.0
  %4388 = vmatpush2.msra.mxu0 0.0
  %4389 = vmatprep.subr.mxu0 0.0
  %4390 = vmatpush2.msra.mxu0 0.0
  %4391 = vmatprep.subr.mxu0 0.0
  %4392 = vmatpush2.msra.mxu0 0.0
  %4393 = vmatprep.subr.mxu0 0.0
  %4394 = vmatpush2.msra.mxu0 0.0
  %4395 = vmatprep.subr.mxu0 0.0
  %4396 = vmatpush2.msra.mxu0 0.0
  %4397 = vmatprep.subr.mxu0 0.0
  %4398 = vmatpush2.msra.mxu0 0.0
  %4399 = vmatprep.subr.mxu0 0.0
  %4400 = vmatpush2.msra.mxu0 0.0
  %4401 = vmatprep.subr.mxu0 0.0
  %4402 = vmatpush2.msra.mxu0 0.0
  %4403 = vmatprep.mubr.f32.mxu0 0.0
  %4404 = vmatmul.mubr.f32.gmra.mxu0 %v4334
  %v4405 = vpop.f32.mrf.mxu0
  %v4406 = vadd.f32 %v4331, %v4405
  %v4407 = vpop.f32.mrf.mxu0
  %4408 = vmatprep.mubr.f32.mxu0 0.0
  %4409 = vmatmul.mubr.f32.gmra.mxu0 %v4337
  %v4410 = vpop.f32.mrf.mxu0
  %v4411 = vadd.f32 %v4331, %v4410
  %v4412 = vpop.f32.mrf.mxu0
  %4413 = vdwg.mxu0
  %4414 = vst [vmem:[%s20] sm:$0xff] %v4406
  %4415 = vst [vmem:[%s20 + $0x8] sm:$0x3] %v4411
  // Predicated region
  $region82: #{vit_forward.1} parent=0 // pred_check
    _
  $region83: #{vit_forward.1} parent=0 // pred_check_branch
    %4417 = sbr.rel (0) target = $region85
  $region84: #{vit_forward.1} parent=0 // pred_region
    _
  $region85: #{vit_forward.1} parent=0 // pred_fallthru
    _
  // Predicated region
  $region86: #{vit_forward.1} parent=0 // pred_check
    _
  $region87: #{vit_forward.1} parent=0 // pred_check_branch
    %4419 = sbr.rel (0) target = $region89
  $region88: #{vit_forward.1} parent=0 // pred_region
    _
  $region89: #{vit_forward.1} parent=0 // pred_fallthru
    _

</llo_original>
